<compile_context>
chip_gen: v5e
topology: v5e:2x2
jax: 0.10.0
libtpu: 0.0.40
codegen_flags: <defaults>
</compile_context>

<pallas_src>
import functools

import jax
import jax.numpy as jnp
from jax.experimental import pallas as pl
from jax.experimental.pallas import tpu as pltpu

LANE = 128        # lane width (last-dim granularity)
SUBLANE = 8       # f32 sublane granularity (second-to-last dim)
NEG_BIAS = -1e9   # bias sentinel for padded class columns (EMA-invariant)


def _round_up(x, m):
    return (x + m - 1) // m * m


def _pick_tile(F, cap=512):
    """Largest tile <= cap dividing F (lane/sublane friendly); else whole F."""
    for tf in (cap, 256, 128):
        if F % tf == 0:
            return tf
    return F


# ----------------------------------------------------------------------------
# Kernel
# ----------------------------------------------------------------------------
def _simsiam_fused_kernel(m_ref, x1_ref, x2_ref,
                          wb_q_ref, bb_q_ref, wl_q_ref, bl_q_ref,
                          wb_k_ref, bb_k_ref, wl_k_ref, bl_k_ref,
                          p1_ref, p2_ref,
                          wb_k_out, bb_k_out, wl_k_out, bl_k_out,
                          h1_acc, h2_acc):
    k = pl.program_id(0)
    nk = pl.num_programs(0)
    m = m_ref[0]                       # momentum scalar from SMEM

    @pl.when(k == 0)
    def _():
        h1_acc[...] = jnp.zeros_like(h1_acc)
        h2_acc[...] = jnp.zeros_like(h2_acc)

    # --- streamed backbone-weight tile: EMA update + both stem matmuls ---
    wb_q = wb_q_ref[...]                                   # (TF, Din) f32
    wb_k_new = wb_k_ref[...] * m + wb_q * (1.0 - m)        # VPU f32 EMA
    wb_k_out[...] = wb_k_new                               # streamed writeback

    h1_acc[...] += jnp.dot(x1_ref[...], wb_q,
                           preferred_element_type=jnp.float32)
    # p2 stem consumes the UPDATED key weight straight from VMEM (no HBM re-read)
    h2_acc[...] += jnp.dot(x2_ref[...], wb_k_new,
                           preferred_element_type=jnp.float32)

    # --- finalize: small-param EMA, classifier heads, softmax ---
    @pl.when(k == nk - 1)
    def _():
        bb_q = bb_q_ref[...]
        wl_q = wl_q_ref[...]
        bl_q = bl_q_ref[...]
        bb_k_new = bb_k_ref[...] * m + bb_q * (1.0 - m)
        wl_k_new = wl_k_ref[...] * m + wl_q * (1.0 - m)
        bl_k_new = bl_k_ref[...] * m + bl_q * (1.0 - m)
        bb_k_out[...] = bb_k_new
        wl_k_out[...] = wl_k_new
        bl_k_out[...] = bl_k_new

        def head(h_acc, bb, wl, bl):
            # backbone ReLU -> linear head -> softmax(dim=1).
            # Padded class columns carry wl=0, bl=-1e9 -> exp underflows to 0,
            # so no explicit mask is needed.
            h = jnp.maximum(h_acc + bb, 0.0)
            logits = jnp.dot(h, wl, preferred_element_type=jnp.float32) + bl
            mx = jnp.max(logits, axis=1, keepdims=True)
            e = jnp.exp(logits - mx)
            s = jnp.sum(e, axis=1, keepdims=True)
            return e / s                                   # exact divide

        p1_ref[...] = head(h1_acc[...], bb_q, wl_q, bl_q).astype(p1_ref.dtype)
        p2_ref[...] = head(h2_acc[...], bb_k_new, wl_k_new,
                           bl_k_new).astype(p2_ref.dtype)


# ----------------------------------------------------------------------------
# Wrapper
# ----------------------------------------------------------------------------
def simsiam_forward(im_aug1, im_aug2, params_q, params_k, emam, nb_classes):
    """Reproduces SimSiam.forward -> (p1, p2) and the updated key params.

    Head params (wl, bl) must be stored pre-padded to a lane-dense width
    (pad cols: wl=0, bl=NEG_BIAS). Updated key params are returned padded, so
    they can be fed back next step with zero host-side pad/slice traffic.
    """
    wb_q, bb_q, wl_q, bl_q = params_q
    wb_k, bb_k, wl_k, bl_k = params_k

    B = im_aug1.shape[0]
    F, Din = wb_q.shape
    C_pad = wl_q.shape[1]
    B_pad = _round_up(max(B, SUBLANE), SUBLANE)

    # flatten NCHW row-major (== torch.flatten on NCHW) and pad batch rows
    x1 = jnp.pad(im_aug1.reshape(B, -1).astype(jnp.float32),
                 ((0, B_pad - B), (0, 0)))
    x2 = jnp.pad(im_aug2.reshape(B, -1).astype(jnp.float32),
                 ((0, B_pad - B), (0, 0)))

    TF = _pick_tile(F)
    n_k = F // TF
    m_arr = jnp.full((1,), float(emam), jnp.float32)

    smem = pl.BlockSpec(memory_space=pltpu.MemorySpace.SMEM)
    in_specs = [
        smem,                                             # emam scalar
        pl.BlockSpec((B_pad, TF), lambda k: (0, k)),      # x1
        pl.BlockSpec((B_pad, TF), lambda k: (0, k)),      # x2
        pl.BlockSpec((TF, Din), lambda k: (k, 0)),        # wb_q (streamed)
        pl.BlockSpec((1, Din), lambda k: (0, 0)),         # bb_q
        pl.BlockSpec((Din, C_pad), lambda k: (0, 0)),     # wl_q (padded)
        pl.BlockSpec((1, C_pad), lambda k: (0, 0)),       # bl_q (padded)
        pl.BlockSpec((TF, Din), lambda k: (k, 0)),        # wb_k (streamed)
        pl.BlockSpec((1, Din), lambda k: (0, 0)),         # bb_k
        pl.BlockSpec((Din, C_pad), lambda k: (0, 0)),     # wl_k (padded)
        pl.BlockSpec((1, C_pad), lambda k: (0, 0)),       # bl_k (padded)
    ]
    out_specs = (
        pl.BlockSpec((B_pad, C_pad), lambda k: (0, 0)),   # p1 (lane-dense)
        pl.BlockSpec((B_pad, C_pad), lambda k: (0, 0)),   # p2 (lane-dense)
        pl.BlockSpec((TF, Din), lambda k: (k, 0)),        # wb_k new (streamed)
        pl.BlockSpec((1, Din), lambda k: (0, 0)),         # bb_k new
        pl.BlockSpec((Din, C_pad), lambda k: (0, 0)),     # wl_k new (padded)
        pl.BlockSpec((1, C_pad), lambda k: (0, 0)),       # bl_k new (padded)
    )
    out_shape = (
        jax.ShapeDtypeStruct((B_pad, C_pad), jnp.float32),
        jax.ShapeDtypeStruct((B_pad, C_pad), jnp.float32),
        jax.ShapeDtypeStruct(wb_k.shape, jnp.float32),
        jax.ShapeDtypeStruct(bb_k.shape, jnp.float32),
        jax.ShapeDtypeStruct(wl_k.shape, jnp.float32),
        jax.ShapeDtypeStruct(bl_k.shape, jnp.float32),
    )

    flops = 4 * B_pad * F * Din + 4 * B_pad * Din * C_pad \
        + 2 * (F * Din + Din + Din * C_pad + C_pad)
    in_bytes = 4 * (2 * B_pad * F + 2 * (F * Din + Din + Din * C_pad + C_pad)) + 4
    out_bytes = 4 * (2 * B_pad * C_pad + F * Din + Din + Din * C_pad + C_pad)

    outs = pl.pallas_call(
        _simsiam_fused_kernel,
        out_shape=out_shape,
        grid_spec=pltpu.PrefetchScalarGridSpec(
            num_scalar_prefetch=0,
            grid=(n_k,),
            in_specs=in_specs,
            out_specs=out_specs,
            scratch_shapes=[pltpu.VMEM((B_pad, Din), jnp.float32),   # h1 acc
                            pltpu.VMEM((B_pad, Din), jnp.float32)],  # h2 acc
        ),
        cost_estimate=pl.CostEstimate(
            flops=int(flops),
            transcendentals=int(2 * B_pad * C_pad),
            bytes_accessed=int(in_bytes + out_bytes)),
        compiler_params=pltpu.CompilerParams(
            dimension_semantics=("arbitrary",)),
    )(m_arr, x1, x2, wb_q, bb_q, wl_q, bl_q, wb_k, bb_k, wl_k, bl_k)

    p1_pad, p2_pad, wb_k_n, bb_k_n, wl_k_n, bl_k_n = outs
    p1 = p1_pad[:B, :nb_classes]
    p2 = p2_pad[:B, :nb_classes]
    params_k_new = (wb_k_n, bb_k_n, wl_k_n, bl_k_n)   # still padded (persistent)
    return (p1, p2), params_k_new


# ----------------------------------------------------------------------------
# Main
# ----------------------------------------------------------------------------
if __name__ == "__main__":
    B, Cin, H, W = 2, 4, 16, 16      # small NCHW inputs
    feat = Cin * H * W               # 1024
    dim_in = 512                     # resnet18 fc in-features
    nb_classes = 10
    emam = 0.99
    C_pad = _round_up(max(nb_classes, LANE), LANE)   # 128

    key = jax.random.PRNGKey(0)
    k_wb, k_wl, k_x1, k_x2 = jax.random.split(key, 4)

    # query-branch params; classifier head stored persistently padded to C_pad
    w_backbone_q = jax.random.normal(k_wb, (feat, dim_in), jnp.float32) * 0.02
    b_backbone_q = jnp.zeros((1, dim_in), jnp.float32)
    w_linear_q = jnp.zeros((dim_in, C_pad), jnp.float32).at[:, :nb_classes].set(
        jax.random.normal(k_wl, (dim_in, nb_classes), jnp.float32) * 0.02)
    b_linear_q = jnp.full((1, C_pad), NEG_BIAS, jnp.float32).at[:, :nb_classes].set(0.0)
    params_q = (w_backbone_q, b_backbone_q, w_linear_q, b_linear_q)

    # key branch initialized as an exact copy (param_k.data.copy_(param_q.data))
    params_k = tuple(jnp.array(p) for p in params_q)

    im_aug1 = jax.random.normal(k_x1, (B, Cin, H, W), jnp.float32)
    im_aug2 = jax.random.normal(k_x2, (B, Cin, H, W), jnp.float32)

    (p1, p2), params_k_new = simsiam_forward(
        im_aug1, im_aug2, params_q, params_k, emam, nb_classes)
    jax.block_until_ready((p1, p2, params_k_new))

    # ---- pure-JAX reference (same math as the PyTorch module) ----
    def ref_branch(x, wb, bb, wl, bl):
        h = jnp.maximum(x @ wb + bb, 0.0)
        logits = (h @ wl + bl)[:, :nb_classes]
        return jax.nn.softmax(logits, axis=1)

    x1r = im_aug1.reshape(B, -1)
    x2r = im_aug2.reshape(B, -1)
    p1_ref = ref_branch(x1r, *params_q)
    pk_ref = tuple(k_ * emam + q_ * (1.0 - emam)
                   for q_, k_ in zip(params_q, params_k))
    p2_ref = ref_branch(x2r, *pk_ref)

    assert p1.shape == (B, nb_classes) and p2.shape == (B, nb_classes)
    assert bool(jnp.all(jnp.isfinite(p1))) and bool(jnp.all(jnp.isfinite(p2)))
    assert jnp.allclose(jnp.sum(p1, axis=1), 1.0, atol=1e-4)
    assert jnp.allclose(jnp.sum(p2, axis=1), 1.0, atol=1e-4)
    assert jnp.allclose(p1, p1_ref, atol=5e-3)
    assert jnp.allclose(p2, p2_ref, atol=5e-3)
    assert jnp.allclose(params_k_new[0], pk_ref[0], atol=1e-5)
    assert jnp.allclose(params_k_new[2], pk_ref[2], atol=1e-5)
    print("KERNEL_OK")
</pallas_src>

<mosaic_0001>
module attributes {stable_mosaic.version = 11 : i64} {
  func.func @_simsiam_fused_kernel(%arg0: i32, %arg1: memref<1xf32, #tpu.memory_space<smem>>, %arg2: memref<8x512xf32, #tpu.memory_space<vmem>>, %arg3: memref<8x512xf32, #tpu.memory_space<vmem>>, %arg4: memref<512x512xf32, #tpu.memory_space<vmem>>, %arg5: memref<1x512xf32, #tpu.memory_space<vmem>>, %arg6: memref<512x128xf32, #tpu.memory_space<vmem>>, %arg7: memref<1x128xf32, #tpu.memory_space<vmem>>, %arg8: memref<512x512xf32, #tpu.memory_space<vmem>>, %arg9: memref<1x512xf32, #tpu.memory_space<vmem>>, %arg10: memref<512x128xf32, #tpu.memory_space<vmem>>, %arg11: memref<1x128xf32, #tpu.memory_space<vmem>>, %arg12: memref<8x128xf32, #tpu.memory_space<vmem>>, %arg13: memref<8x128xf32, #tpu.memory_space<vmem>>, %arg14: memref<512x512xf32, #tpu.memory_space<vmem>>, %arg15: memref<1x512xf32, #tpu.memory_space<vmem>>, %arg16: memref<512x128xf32, #tpu.memory_space<vmem>>, %arg17: memref<1x128xf32, #tpu.memory_space<vmem>>, %arg18: memref<8x512xf32, #tpu.memory_space<vmem>>, %arg19: memref<8x512xf32, #tpu.memory_space<vmem>>) attributes {dimension_semantics = [#tpu.dimension_semantics<arbitrary>], iteration_bounds = array<i64: 2>, scalar_prefetch = 0 : i64, scratch_operands = 2 : i64, tpu.core_type = #tpu.core_type<tc>, window_params = [{transform_indices = @transform_0, window_bounds = array<i64: 1>}, {transform_indices = @transform_1, window_bounds = array<i64: 8, 512>}, {transform_indices = @transform_2, window_bounds = array<i64: 8, 512>}, {transform_indices = @transform_3, window_bounds = array<i64: 512, 512>}, {pipeline_mode = #tpu.pipeline_mode<synchronous>, transform_indices = @transform_4, window_bounds = array<i64: 1, 512>}, {pipeline_mode = #tpu.pipeline_mode<synchronous>, transform_indices = @transform_5, window_bounds = array<i64: 512, 128>}, {pipeline_mode = #tpu.pipeline_mode<synchronous>, transform_indices = @transform_6, window_bounds = array<i64: 1, 128>}, {transform_indices = @transform_7, window_bounds = array<i64: 512, 512>}, {pipeline_mode = #tpu.pipeline_mode<synchronous>, transform_indices = @transform_8, window_bounds = array<i64: 1, 512>}, {pipeline_mode = #tpu.pipeline_mode<synchronous>, transform_indices = @transform_9, window_bounds = array<i64: 512, 128>}, {pipeline_mode = #tpu.pipeline_mode<synchronous>, transform_indices = @transform_10, window_bounds = array<i64: 1, 128>}, {pipeline_mode = #tpu.pipeline_mode<synchronous>, transform_indices = @transform_11, window_bounds = array<i64: 8, 128>}, {pipeline_mode = #tpu.pipeline_mode<synchronous>, transform_indices = @transform_12, window_bounds = array<i64: 8, 128>}, {transform_indices = @transform_13, window_bounds = array<i64: 512, 512>}, {pipeline_mode = #tpu.pipeline_mode<synchronous>, transform_indices = @transform_14, window_bounds = array<i64: 1, 512>}, {pipeline_mode = #tpu.pipeline_mode<synchronous>, transform_indices = @transform_15, window_bounds = array<i64: 512, 128>}, {pipeline_mode = #tpu.pipeline_mode<synchronous>, transform_indices = @transform_16, window_bounds = array<i64: 1, 128>}]} {
    %c0 = arith.constant 0 : index
    %0 = memref.load %arg1[%c0] : memref<1xf32, #tpu.memory_space<smem>>
    %c0_i32 = arith.constant 0 : i32
    %1 = arith.cmpi eq, %arg0, %c0_i32 : i32
    %2 = arith.extui %1 : i1 to i32
    %c0_i32_0 = arith.constant 0 : i32
    %3 = arith.cmpi ne, %2, %c0_i32_0 : i32
    scf.if %3 {
      %cst_22 = arith.constant 0.000000e+00 : f32
      %26 = vector.broadcast %cst_22 : f32 to vector<8x512xf32>
      %c0_23 = arith.constant 0 : index
      %c0_24 = arith.constant 0 : index
      %27 = vector.load %arg18[%c0_23, %c0_24] : memref<8x512xf32, #tpu.memory_space<vmem>>, vector<8x512xf32>
      tpu.vector_store %arg18[%c0_23, %c0_24], %26 {strides = array<i32>} : memref<8x512xf32, #tpu.memory_space<vmem>>, vector<8x512xf32>,
      %cst_25 = arith.constant 0.000000e+00 : f32
      %28 = vector.broadcast %cst_25 : f32 to vector<8x512xf32>
      %c0_26 = arith.constant 0 : index
      %c0_27 = arith.constant 0 : index
      %29 = vector.load %arg19[%c0_26, %c0_27] : memref<8x512xf32, #tpu.memory_space<vmem>>, vector<8x512xf32>
      tpu.vector_store %arg19[%c0_26, %c0_27], %28 {strides = array<i32>} : memref<8x512xf32, #tpu.memory_space<vmem>>, vector<8x512xf32>,
    } else {
    }
    %c0_1 = arith.constant 0 : index
    %c0_2 = arith.constant 0 : index
    %4 = vector.load %arg4[%c0_1, %c0_2] : memref<512x512xf32, #tpu.memory_space<vmem>>, vector<512x512xf32>
    %c0_3 = arith.constant 0 : index
    %c0_4 = arith.constant 0 : index
    %5 = vector.load %arg8[%c0_3, %c0_4] : memref<512x512xf32, #tpu.memory_space<vmem>>, vector<512x512xf32>
    %6 = vector.broadcast %0 : f32 to vector<512x512xf32>
    %7 = arith.mulf %5, %6 : vector<512x512xf32>
    %cst = arith.constant 1.000000e+00 : f32
    %8 = arith.subf %cst, %0 : f32
    %9 = vector.broadcast %8 : f32 to vector<512x512xf32>
    %10 = arith.mulf %4, %9 : vector<512x512xf32>
    %11 = arith.addf %7, %10 : vector<512x512xf32>
    %c0_5 = arith.constant 0 : index
    %c0_6 = arith.constant 0 : index
    %12 = vector.load %arg14[%c0_5, %c0_6] : memref<512x512xf32, #tpu.memory_space<vmem>>, vector<512x512xf32>
    tpu.vector_store %arg14[%c0_5, %c0_6], %11 {strides = array<i32>} : memref<512x512xf32, #tpu.memory_space<vmem>>, vector<512x512xf32>,
    %c0_7 = arith.constant 0 : index
    %c0_8 = arith.constant 0 : index
    %13 = vector.load %arg18[%c0_7, %c0_8] : memref<8x512xf32, #tpu.memory_space<vmem>>, vector<8x512xf32>
    %c0_9 = arith.constant 0 : index
    %c0_10 = arith.constant 0 : index
    %14 = vector.load %arg2[%c0_9, %c0_10] : memref<8x512xf32, #tpu.memory_space<vmem>>, vector<8x512xf32>
    %cst_11 = arith.constant dense<0.000000e+00> : vector<8x512xf32>
    %15 = tpu.matmul %14, %4, %cst_11 {dimension_numbers = #tpu.dot_dimension_numbers<[1], [0], [0], [1], [0, 0, 1, 1], [], []>} : vector<8x512xf32>, vector<512x512xf32>, vector<8x512xf32> -> vector<8x512xf32>
    %16 = arith.addf %13, %15 : vector<8x512xf32>
    %c0_12 = arith.constant 0 : index
    %c0_13 = arith.constant 0 : index
    %17 = vector.load %arg18[%c0_12, %c0_13] : memref<8x512xf32, #tpu.memory_space<vmem>>, vector<8x512xf32>
    tpu.vector_store %arg18[%c0_12, %c0_13], %16 {strides = array<i32>} : memref<8x512xf32, #tpu.memory_space<vmem>>, vector<8x512xf32>,
    %c0_14 = arith.constant 0 : index
    %c0_15 = arith.constant 0 : index
    %18 = vector.load %arg19[%c0_14, %c0_15] : memref<8x512xf32, #tpu.memory_space<vmem>>, vector<8x512xf32>
    %c0_16 = arith.constant 0 : index
    %c0_17 = arith.constant 0 : index
    %19 = vector.load %arg3[%c0_16, %c0_17] : memref<8x512xf32, #tpu.memory_space<vmem>>, vector<8x512xf32>
    %cst_18 = arith.constant dense<0.000000e+00> : vector<8x512xf32>
    %20 = tpu.matmul %19, %11, %cst_18 {dimension_numbers = #tpu.dot_dimension_numbers<[1], [0], [0], [1], [0, 0, 1, 1], [], []>} : vector<8x512xf32>, vector<512x512xf32>, vector<8x512xf32> -> vector<8x512xf32>
    %21 = arith.addf %18, %20 : vector<8x512xf32>
    %c0_19 = arith.constant 0 : index
    %c0_20 = arith.constant 0 : index
    %22 = vector.load %arg19[%c0_19, %c0_20] : memref<8x512xf32, #tpu.memory_space<vmem>>, vector<8x512xf32>
    tpu.vector_store %arg19[%c0_19, %c0_20], %21 {strides = array<i32>} : memref<8x512xf32, #tpu.memory_space<vmem>>, vector<8x512xf32>,
    %c1_i32 = arith.constant 1 : i32
    %23 = arith.cmpi eq, %arg0, %c1_i32 : i32
    %24 = arith.extui %23 : i1 to i32
    %c0_i32_21 = arith.constant 0 : i32
    %25 = arith.cmpi ne, %24, %c0_i32_21 : i32
    scf.if %25 {
      %c0_22 = arith.constant 0 : index
      %c0_23 = arith.constant 0 : index
      %26 = vector.load %arg5[%c0_22, %c0_23] : memref<1x512xf32, #tpu.memory_space<vmem>>, vector<1x512xf32>
      %c0_24 = arith.constant 0 : index
      %c0_25 = arith.constant 0 : index
      %27 = vector.load %arg6[%c0_24, %c0_25] : memref<512x128xf32, #tpu.memory_space<vmem>>, vector<512x128xf32>
      %c0_26 = arith.constant 0 : index
      %c0_27 = arith.constant 0 : index
      %28 = vector.load %arg7[%c0_26, %c0_27] : memref<1x128xf32, #tpu.memory_space<vmem>>, vector<1x128xf32>
      %c0_28 = arith.constant 0 : index
      %c0_29 = arith.constant 0 : index
      %29 = vector.load %arg9[%c0_28, %c0_29] : memref<1x512xf32, #tpu.memory_space<vmem>>, vector<1x512xf32>
      %30 = vector.broadcast %0 : f32 to vector<1x512xf32>
      %31 = arith.mulf %29, %30 : vector<1x512xf32>
      %cst_30 = arith.constant 1.000000e+00 : f32
      %32 = arith.subf %cst_30, %0 : f32
      %33 = vector.broadcast %32 : f32 to vector<1x512xf32>
      %34 = arith.mulf %26, %33 : vector<1x512xf32>
      %35 = arith.addf %31, %34 : vector<1x512xf32>
      %c0_31 = arith.constant 0 : index
      %c0_32 = arith.constant 0 : index
      %36 = vector.load %arg10[%c0_31, %c0_32] : memref<512x128xf32, #tpu.memory_space<vmem>>, vector<512x128xf32>
      %37 = vector.broadcast %0 : f32 to vector<512x128xf32>
      %38 = arith.mulf %36, %37 : vector<512x128xf32>
      %cst_33 = arith.constant 1.000000e+00 : f32
      %39 = arith.subf %cst_33, %0 : f32
      %40 = vector.broadcast %39 : f32 to vector<512x128xf32>
      %41 = arith.mulf %27, %40 : vector<512x128xf32>
      %42 = arith.addf %38, %41 : vector<512x128xf32>
      %c0_34 = arith.constant 0 : index
      %c0_35 = arith.constant 0 : index
      %43 = vector.load %arg11[%c0_34, %c0_35] : memref<1x128xf32, #tpu.memory_space<vmem>>, vector<1x128xf32>
      %44 = vector.broadcast %0 : f32 to vector<1x128xf32>
      %45 = arith.mulf %43, %44 : vector<1x128xf32>
      %cst_36 = arith.constant 1.000000e+00 : f32
      %46 = arith.subf %cst_36, %0 : f32
      %47 = vector.broadcast %46 : f32 to vector<1x128xf32>
      %48 = arith.mulf %28, %47 : vector<1x128xf32>
      %49 = arith.addf %45, %48 : vector<1x128xf32>
      %c0_37 = arith.constant 0 : index
      %c0_38 = arith.constant 0 : index
      %50 = vector.load %arg15[%c0_37, %c0_38] : memref<1x512xf32, #tpu.memory_space<vmem>>, vector<1x512xf32>
      tpu.vector_store %arg15[%c0_37, %c0_38], %35 {strides = array<i32>} : memref<1x512xf32, #tpu.memory_space<vmem>>, vector<1x512xf32>,
      %c0_39 = arith.constant 0 : index
      %c0_40 = arith.constant 0 : index
      %51 = vector.load %arg16[%c0_39, %c0_40] : memref<512x128xf32, #tpu.memory_space<vmem>>, vector<512x128xf32>
      tpu.vector_store %arg16[%c0_39, %c0_40], %42 {strides = array<i32>} : memref<512x128xf32, #tpu.memory_space<vmem>>, vector<512x128xf32>,
      %c0_41 = arith.constant 0 : index
      %c0_42 = arith.constant 0 : index
      %52 = vector.load %arg17[%c0_41, %c0_42] : memref<1x128xf32, #tpu.memory_space<vmem>>, vector<1x128xf32>
      tpu.vector_store %arg17[%c0_41, %c0_42], %49 {strides = array<i32>} : memref<1x128xf32, #tpu.memory_space<vmem>>, vector<1x128xf32>,
      %c0_43 = arith.constant 0 : index
      %c0_44 = arith.constant 0 : index
      %53 = vector.load %arg18[%c0_43, %c0_44] : memref<8x512xf32, #tpu.memory_space<vmem>>, vector<8x512xf32>
      %54 = vector.broadcast %26 : vector<1x512xf32> to vector<8x512xf32>
      %55 = arith.addf %53, %54 : vector<8x512xf32>
      %cst_45 = arith.constant 0.000000e+00 : f32
      %56 = vector.broadcast %cst_45 : f32 to vector<8x512xf32>
      %57 = arith.maximumf %55, %56 : vector<8x512xf32>
      %cst_46 = arith.constant dense<0.000000e+00> : vector<8x128xf32>
      %58 = tpu.matmul %57, %27, %cst_46 {dimension_numbers = #tpu.dot_dimension_numbers<[1], [0], [0], [1], [0, 0, 1, 1], [], []>} : vector<8x512xf32>, vector<512x128xf32>, vector<8x128xf32> -> vector<8x128xf32>
      %59 = vector.broadcast %28 : vector<1x128xf32> to vector<8x128xf32>
      %60 = arith.addf %58, %59 : vector<8x128xf32>
      %cst_47 = arith.constant dense<0xFF800000> : vector<8xf32>
      %61 = vector.multi_reduction <maximumf>, %60, %cst_47 [1] : vector<8x128xf32> to vector<8xf32>
      %62 = vector.shape_cast %61 : vector<8xf32> to vector<8x1xf32>
      %63 = vector.broadcast %62 : vector<8x1xf32> to vector<8x128xf32>
      %64 = arith.subf %60, %63 : vector<8x128xf32>
      %65 = math.exp %64 : vector<8x128xf32>
      %cst_48 = arith.constant dense<0.000000e+00> : vector<8xf32>
      %66 = vector.multi_reduction <add>, %65, %cst_48 [1] : vector<8x128xf32> to vector<8xf32>
      %67 = vector.shape_cast %66 : vector<8xf32> to vector<8x1xf32>
      %68 = vector.broadcast %67 : vector<8x1xf32> to vector<8x128xf32>
      %69 = arith.divf %65, %68 : vector<8x128xf32>
      %c0_49 = arith.constant 0 : index
      %c0_50 = arith.constant 0 : index
      %70 = vector.load %arg12[%c0_49, %c0_50] : memref<8x128xf32, #tpu.memory_space<vmem>>, vector<8x128xf32>
      tpu.vector_store %arg12[%c0_49, %c0_50], %69 {strides = array<i32>} : memref<8x128xf32, #tpu.memory_space<vmem>>, vector<8x128xf32>,
      %c0_51 = arith.constant 0 : index
      %c0_52 = arith.constant 0 : index
      %71 = vector.load %arg19[%c0_51, %c0_52] : memref<8x512xf32, #tpu.memory_space<vmem>>, vector<8x512xf32>
      %72 = vector.broadcast %35 : vector<1x512xf32> to vector<8x512xf32>
      %73 = arith.addf %71, %72 : vector<8x512xf32>
      %cst_53 = arith.constant 0.000000e+00 : f32
      %74 = vector.broadcast %cst_53 : f32 to vector<8x512xf32>
      %75 = arith.maximumf %73, %74 : vector<8x512xf32>
      %cst_54 = arith.constant dense<0.000000e+00> : vector<8x128xf32>
      %76 = tpu.matmul %75, %42, %cst_54 {dimension_numbers = #tpu.dot_dimension_numbers<[1], [0], [0], [1], [0, 0, 1, 1], [], []>} : vector<8x512xf32>, vector<512x128xf32>, vector<8x128xf32> -> vector<8x128xf32>
      %77 = vector.broadcast %49 : vector<1x128xf32> to vector<8x128xf32>
      %78 = arith.addf %76, %77 : vector<8x128xf32>
      %cst_55 = arith.constant dense<0xFF800000> : vector<8xf32>
      %79 = vector.multi_reduction <maximumf>, %78, %cst_55 [1] : vector<8x128xf32> to vector<8xf32>
      %80 = vector.shape_cast %79 : vector<8xf32> to vector<8x1xf32>
      %81 = vector.broadcast %80 : vector<8x1xf32> to vector<8x128xf32>
      %82 = arith.subf %78, %81 : vector<8x128xf32>
      %83 = math.exp %82 : vector<8x128xf32>
      %cst_56 = arith.constant dense<0.000000e+00> : vector<8xf32>
      %84 = vector.multi_reduction <add>, %83, %cst_56 [1] : vector<8x128xf32> to vector<8xf32>
      %85 = vector.shape_cast %84 : vector<8xf32> to vector<8x1xf32>
      %86 = vector.broadcast %85 : vector<8x1xf32> to vector<8x128xf32>
      %87 = arith.divf %83, %86 : vector<8x128xf32>
      %c0_57 = arith.constant 0 : index
      %c0_58 = arith.constant 0 : index
      %88 = vector.load %arg13[%c0_57, %c0_58] : memref<8x128xf32, #tpu.memory_space<vmem>>, vector<8x128xf32>
      tpu.vector_store %arg13[%c0_57, %c0_58], %87 {strides = array<i32>} : memref<8x128xf32, #tpu.memory_space<vmem>>, vector<8x128xf32>,
    } else {
    }
    return
  }
  func.func @transform_0(%arg0: i32) -> i32 {
    %c0_i32 = arith.constant 0 : i32
    %c0_i32_0 = arith.constant 0 : i32
    return %c0_i32 : i32
  }
  func.func @transform_1(%arg0: i32) -> (i32, i32) {
    %c0_i32 = arith.constant 0 : i32
    %c0_i32_0 = arith.constant 0 : i32
    return %c0_i32, %arg0 : i32, i32
  }
  func.func @transform_2(%arg0: i32) -> (i32, i32) {
    %c0_i32 = arith.constant 0 : i32
    %c0_i32_0 = arith.constant 0 : i32
    return %c0_i32, %arg0 : i32, i32
  }
  func.func @transform_3(%arg0: i32) -> (i32, i32) {
    %c0_i32 = arith.constant 0 : i32
    %c0_i32_0 = arith.constant 0 : i32
    return %arg0, %c0_i32 : i32, i32
  }
  func.func @transform_4(%arg0: i32) -> (i32, i32) {
    %c0_i32 = arith.constant 0 : i32
    %c0_i32_0 = arith.constant 0 : i32
    %c0_i32_1 = arith.constant 0 : i32
    return %c0_i32, %c0_i32_0 : i32, i32
  }
  func.func @transform_5(%arg0: i32) -> (i32, i32) {
    %c0_i32 = arith.constant 0 : i32
    %c0_i32_0 = arith.constant 0 : i32
    %c0_i32_1 = arith.constant 0 : i32
    return %c0_i32, %c0_i32_0 : i32, i32
  }
  func.func @transform_6(%arg0: i32) -> (i32, i32) {
    %c0_i32 = arith.constant 0 : i32
    %c0_i32_0 = arith.constant 0 : i32
    %c0_i32_1 = arith.constant 0 : i32
    return %c0_i32, %c0_i32_0 : i32, i32
  }
  func.func @transform_7(%arg0: i32) -> (i32, i32) {
    %c0_i32 = arith.constant 0 : i32
    %c0_i32_0 = arith.constant 0 : i32
    return %arg0, %c0_i32 : i32, i32
  }
  func.func @transform_8(%arg0: i32) -> (i32, i32) {
    %c0_i32 = arith.constant 0 : i32
    %c0_i32_0 = arith.constant 0 : i32
    %c0_i32_1 = arith.constant 0 : i32
    return %c0_i32, %c0_i32_0 : i32, i32
  }
  func.func @transform_9(%arg0: i32) -> (i32, i32) {
    %c0_i32 = arith.constant 0 : i32
    %c0_i32_0 = arith.constant 0 : i32
    %c0_i32_1 = arith.constant 0 : i32
    return %c0_i32, %c0_i32_0 : i32, i32
  }
  func.func @transform_10(%arg0: i32) -> (i32, i32) {
    %c0_i32 = arith.constant 0 : i32
    %c0_i32_0 = arith.constant 0 : i32
    %c0_i32_1 = arith.constant 0 : i32
    return %c0_i32, %c0_i32_0 : i32, i32
  }
  func.func @transform_11(%arg0: i32) -> (i32, i32) {
    %c0_i32 = arith.constant 0 : i32
    %c0_i32_0 = arith.constant 0 : i32
    %c0_i32_1 = arith.constant 0 : i32
    return %c0_i32, %c0_i32_0 : i32, i32
  }
  func.func @transform_12(%arg0: i32) -> (i32, i32) {
    %c0_i32 = arith.constant 0 : i32
    %c0_i32_0 = arith.constant 0 : i32
    %c0_i32_1 = arith.constant 0 : i32
    return %c0_i32, %c0_i32_0 : i32, i32
  }
  func.func @transform_13(%arg0: i32) -> (i32, i32) {
    %c0_i32 = arith.constant 0 : i32
    %c0_i32_0 = arith.constant 0 : i32
    return %arg0, %c0_i32 : i32, i32
  }
  func.func @transform_14(%arg0: i32) -> (i32, i32) {
    %c0_i32 = arith.constant 0 : i32
    %c0_i32_0 = arith.constant 0 : i32
    %c0_i32_1 = arith.constant 0 : i32
    return %c0_i32, %c0_i32_0 : i32, i32
  }
  func.func @transform_15(%arg0: i32) -> (i32, i32) {
    %c0_i32 = arith.constant 0 : i32
    %c0_i32_0 = arith.constant 0 : i32
    %c0_i32_1 = arith.constant 0 : i32
    return %c0_i32, %c0_i32_0 : i32, i32
  }
  func.func @transform_16(%arg0: i32) -> (i32, i32) {
    %c0_i32 = arith.constant 0 : i32
    %c0_i32_0 = arith.constant 0 : i32
    %c0_i32_1 = arith.constant 0 : i32
    return %c0_i32, %c0_i32_0 : i32, i32
  }
}

</mosaic_0001>

<llo_original>
// kernel: tpu_custom_call.1
$region0: #{tpu_custom_call.1}
  #allocation0 [shape = 'u32[]', space=smem, size = 0x4, offset = 0x4, fixed_abs, tag = 'smem constant byte address 0x4 - core index']
  #allocation1 [shape = 'u32[72,128]{1,0:T(1,128)}', space=vmem, size = 0x9000, scoped, tag = 'internal scratch']
  #allocation2 [shape = 'f32[8,512]{1,0:T(8,128)}', space=vmem, size = 0x4000, scoped, tag = 'scratch operand']
  #allocation3 [shape = 'f32[8,512]{1,0:T(8,128)}', space=vmem, size = 0x4000, scoped, tag = 'scratch operand']
  #allocation4 [shape = 'f32[1]{0:T(128)S(6)}', space=smem, size = 0x200, scoped, tag = 'scoped memory for tpu_custom_call.1']
  %s0 = inlined_call_operand.<no memory space> [shape: f32[1], index: 0, kind: input, shape index: {}]
  %s1 = inlined_call_operand.hbm [shape: f32[8,1024], index: 1, kind: input, shape index: {}]
  %s2 = inlined_call_operand.hbm [shape: f32[8,1024], index: 2, kind: input, shape index: {}]
  %s3 = inlined_call_operand.hbm [shape: f32[1024,512], index: 3, kind: input, shape index: {}]
  %s4 = inlined_call_operand.hbm [shape: f32[1,512], index: 4, kind: input, shape index: {}]
  %s5 = inlined_call_operand.hbm [shape: f32[512,128], index: 5, kind: input, shape index: {}]
  %s6 = inlined_call_operand.hbm [shape: f32[1,128], index: 6, kind: input, shape index: {}]
  %s7 = inlined_call_operand.hbm [shape: f32[1024,512], index: 7, kind: input, shape index: {}]
  %s8 = inlined_call_operand.hbm [shape: f32[1,512], index: 8, kind: input, shape index: {}]
  %s9 = inlined_call_operand.hbm [shape: f32[512,128], index: 9, kind: input, shape index: {}]
  %s10 = inlined_call_operand.hbm [shape: f32[1,128], index: 10, kind: input, shape index: {}]
  %s11 = inlined_call_operand.hbm [shape: f32[8,128], index: 11, kind: output, shape index: {0}]
  %s12 = inlined_call_operand.hbm [shape: f32[8,128], index: 12, kind: output, shape index: {1}]
  %s13 = inlined_call_operand.hbm [shape: f32[1024,512], index: 13, kind: output, shape index: {2}]
  %s14 = inlined_call_operand.hbm [shape: f32[1,512], index: 14, kind: output, shape index: {3}]
  %s15 = inlined_call_operand.hbm [shape: f32[512,128], index: 15, kind: output, shape index: {4}]
  %s16 = inlined_call_operand.hbm [shape: f32[1,128], index: 16, kind: output, shape index: {5}]
  %17 = xla_tuple %s11, %s12, %s13, %s14, %s15, %s16
  %s18 = sld [smem:[#allocation0]]
  $region165: #{tpu_custom_call.1} parent=0
    _
  %s20 = ssub.s32 1, %s18
  %s21 = scalar_select 0, %s20, %s18
  %22 = sst [smem:[#allocation4]] %s0
  $region1: #{tpu_custom_call.1} parent=0
    #allocation5 [shape = 'u8[32768]{0}', space=vmem, size = 0x8000, scoped, tag = 'input window, operand 1']
    #allocation6 [shape = 's32[2]{0}', space=sflag, size = 0x8, scoped, tag = 'scoped memory for tpu_custom_call.1']
    #allocation7 [shape = 's32[2]{0}', space=sflag, size = 0x8, scoped, tag = 'scoped memory for tpu_custom_call.1']
    #allocation8 [shape = 'u8[32768]{0}', space=vmem, size = 0x8000, scoped, tag = 'input window, operand 2']
    #allocation9 [shape = 's32[2]{0}', space=sflag, size = 0x8, scoped, tag = 'scoped memory for tpu_custom_call.1']
    #allocation10 [shape = 'u8[2097152]{0}', space=vmem, size = 0x200000, scoped, tag = 'input window, operand 3']
    #allocation11 [shape = 'u8[2048]{0}', space=vmem, size = 0x800, scoped, tag = 'input window, operand 4, single buffered']
    #allocation12 [shape = 's32[1]{0}', space=sflag, size = 0x4, scoped, tag = 'scoped memory for tpu_custom_call.1']
    #allocation13 [shape = 'u8[262144]{0}', space=vmem, size = 0x40000, scoped, tag = 'input window, operand 5, single buffered']
    #allocation14 [shape = 'u8[512]{0}', space=vmem, size = 0x400, scoped, tag = 'input window, operand 6, single buffered']
    #allocation15 [shape = 's32[1]{0}', space=sflag, size = 0x4, scoped, tag = 'scoped memory for tpu_custom_call.1']
    #allocation16 [shape = 'u8[2097152]{0}', space=vmem, size = 0x200000, scoped, tag = 'input window, operand 7']
    #allocation17 [shape = 'u8[2048]{0}', space=vmem, size = 0x800, scoped, tag = 'input window, operand 8, single buffered']
    #allocation18 [shape = 'u8[262144]{0}', space=vmem, size = 0x40000, scoped, tag = 'input window, operand 9, single buffered']
    #allocation19 [shape = 'u8[512]{0}', space=vmem, size = 0x400, scoped, tag = 'input window, operand 10, single buffered']
    #allocation20 [shape = 'u8[4096]{0}', space=vmem, size = 0x1000, scoped, tag = 'output window, operand 0, single buffered']
    #allocation21 [shape = 'u8[4096]{0}', space=vmem, size = 0x1000, scoped, tag = 'output window, operand 1, single buffered']
    #allocation22 [shape = 's32[1]{0}', space=sflag, size = 0x4, scoped, tag = 'scoped memory for tpu_custom_call.1']
    #allocation23 [shape = 'u8[2097152]{0}', space=vmem, size = 0x200000, scoped, tag = 'output window, operand 2']
    #allocation24 [shape = 'u8[2048]{0}', space=vmem, size = 0x800, scoped, tag = 'output window, operand 3, single buffered']
    #allocation25 [shape = 'u8[262144]{0}', space=vmem, size = 0x40000, scoped, tag = 'output window, operand 4, single buffered']
    #allocation26 [shape = 's32[1]{0}', space=sflag, size = 0x4, scoped, tag = 'scoped memory for tpu_custom_call.1']
    #allocation27 [shape = 'u8[512]{0}', space=vmem, size = 0x400, scoped, tag = 'output window, operand 5, single buffered']
    %23 = vsyncpa [#allocation6], 0
    %s24 = scalar_lea.sflag [#allocation6], 1
    %25 = vsyncpa %s24, 0
    %26 = vsyncpa [#allocation9], 0
    %s27 = scalar_lea.sflag [#allocation9], 1
    %28 = vsyncpa %s27, 0
    %29 = vsyncpa [#allocation12], 0
    %30 = vsyncpa [#allocation15], 0
    %31 = vsyncpa [#allocation7], 0
    %32 = vsyncpa [#allocation22], 0
    %33 = vsyncpa [#allocation26], 0
    loop: start=0, step=1, limit=4
    $region2: #{tpu_custom_call.1} parent=1 // loop_pre_header
      _
    $region3: #{tpu_custom_call.1} parent=1 // loop_header
      %s35 = sphi 0, %s39
      %p36 = scmp.ge.s32.totalorder %s35, 4
      %s43 = sphi 0, %s43
      %s45 = sphi 0, %s43
      %s46 = sphi 0, %s45
      %s60 = sphi 0, %s46
      %s66 = sphi 0, %s68
      %s69 = sphi 0, %s66
      %s70 = sphi 0, %s69
      %s86 = sphi 0, %s70
      %s92 = sphi 0, %s94
      %s95 = sphi 0, %s92
      %s96 = sphi 0, %s95
      %s112 = sphi 0, %s96
      %s118 = sphi 0, %s120
      %s121 = sphi 0, %s118
      %s122 = sphi 0, %s121
      %s138 = sphi 0, %s122
      %s142 = sphi 0, %s142
      %s144 = sphi 0, %s142
      %s145 = sphi 0, %s144
      %s159 = sphi 0, %s145
      %s163 = sphi 0, %s163
      %s165 = sphi 0, %s163
      %s166 = sphi 0, %s165
      %s180 = sphi 0, %s166
      %s184 = sphi 0, %s184
      %s186 = sphi 0, %s184
      %s187 = sphi 0, %s186
      %s201 = sphi 0, %s187
      %s207 = sphi 0, %s209
      %s210 = sphi 0, %s207
      %s211 = sphi 0, %s210
      %s227 = sphi 0, %s211
      %s231 = sphi 0, %s231
      %s233 = sphi 0, %s231
      %s234 = sphi 0, %s233
      %s248 = sphi 0, %s234
      %s252 = sphi 0, %s252
      %s254 = sphi 0, %s252
      %s255 = sphi 0, %s254
      %s269 = sphi 0, %s255
      %s273 = sphi 0, %s273
      %s275 = sphi 0, %s273
      %s276 = sphi 0, %s275
      %s290 = sphi 0, %s276
      %s294 = sphi 0, %s294
      %s296 = sphi 0, %s294
      %s297 = sphi 0, %s296
      %s311 = sphi 0, %s297
      %s315 = sphi 0, %s315
      %s317 = sphi 0, %s315
      %s318 = sphi 0, %s317
      %s332 = sphi 0, %s318
      %s338 = sphi 0, %s340
      %s341 = sphi 0, %s338
      %s342 = sphi 0, %s341
      %s358 = sphi 0, %s342
      %s362 = sphi 0, %s362
      %s364 = sphi 0, %s362
      %s365 = sphi 0, %s364
      %s379 = sphi 0, %s365
      %s383 = sphi 0, %s383
      %s385 = sphi 0, %s383
      %s386 = sphi 0, %s385
      %s400 = sphi 0, %s386
      %s404 = sphi 0, %s404
      %s406 = sphi 0, %s404
      %s407 = sphi 0, %s406
      %s421 = sphi 0, %s407
    $region4: #{tpu_custom_call.1} parent=1 // loop_header_branch
      %38 = sbr.rel (%p36) target = $region8
    $region5: #{tpu_custom_call.1} parent=1 // loop_body
      %s40 = ssub.s32 %s35, 1
      %s41 = ssub.s32 %s35, 2
      %s42 = sadd.s32 %s35, 1
      %s44 = sadd.s32 %s43, 1
      %p47 = scmp.eq.s32.totalorder %s35, 1
      %p48 = scmp.ne.s32.totalorder %s43, %s45
      %p49 = scmp.eq.s32.totalorder %s35, 0
      %p50 = por %p48, %p49
      %p51 = scmp.ne.s32.totalorder %s43, %s45
      %p52 = scmp.eq.s32.totalorder %s40, 1
      %p53 = por %p51, %p52
      %p54 = scmp.ne.s32.totalorder %s45, %s46
      %p55 = scmp.eq.s32.totalorder %s40, 0
      %p56 = por %p54, %p55
      %p57 = scmp.ne.s32.totalorder %s45, %s46
      %p58 = scmp.eq.s32.totalorder %s41, 1
      %p59 = por %p57, %p58
      %p61 = scmp.ne.s32.totalorder %s46, %s60
      %p62 = scmp.eq.s32.totalorder %s41, 0
      %p63 = por %p61, %p62
      %s64 = ssub.s32 %s35, %s42
      %p65 = scmp.eq.s32.totalorder %s64, 0
      %s67 = sadd.s32 %s66, 1
      %s68 = scalar_select %p65, %s66, %s67
      %p71 = pneg %p65
      %p72 = scmp.eq.s32.totalorder %s35, 1
      %p73 = por %p71, %p72
      %p74 = scmp.ne.s32.totalorder %s66, %s69
      %p75 = scmp.eq.s32.totalorder %s35, 0
      %p76 = por %p74, %p75
      %p77 = scmp.ne.s32.totalorder %s66, %s69
      %p78 = scmp.eq.s32.totalorder %s40, 1
      %p79 = por %p77, %p78
      %p80 = scmp.ne.s32.totalorder %s69, %s70
      %p81 = scmp.eq.s32.totalorder %s40, 0
      %p82 = por %p80, %p81
      %p83 = scmp.ne.s32.totalorder %s69, %s70
      %p84 = scmp.eq.s32.totalorder %s41, 1
      %p85 = por %p83, %p84
      %p87 = scmp.ne.s32.totalorder %s70, %s86
      %p88 = scmp.eq.s32.totalorder %s41, 0
      %p89 = por %p87, %p88
      %s90 = ssub.s32 %s35, %s42
      %p91 = scmp.eq.s32.totalorder %s90, 0
      %s93 = sadd.s32 %s92, 1
      %s94 = scalar_select %p91, %s92, %s93
      %p97 = pneg %p91
      %p98 = scmp.eq.s32.totalorder %s35, 1
      %p99 = por %p97, %p98
      %p100 = scmp.ne.s32.totalorder %s92, %s95
      %p101 = scmp.eq.s32.totalorder %s35, 0
      %p102 = por %p100, %p101
      %p103 = scmp.ne.s32.totalorder %s92, %s95
      %p104 = scmp.eq.s32.totalorder %s40, 1
      %p105 = por %p103, %p104
      %p106 = scmp.ne.s32.totalorder %s95, %s96
      %p107 = scmp.eq.s32.totalorder %s40, 0
      %p108 = por %p106, %p107
      %p109 = scmp.ne.s32.totalorder %s95, %s96
      %p110 = scmp.eq.s32.totalorder %s41, 1
      %p111 = por %p109, %p110
      %p113 = scmp.ne.s32.totalorder %s96, %s112
      %p114 = scmp.eq.s32.totalorder %s41, 0
      %p115 = por %p113, %p114
      %s116 = ssub.s32 %s35, %s42
      %p117 = scmp.eq.s32.totalorder %s116, 0
      %s119 = sadd.s32 %s118, 1
      %s120 = scalar_select %p117, %s118, %s119
      %p123 = pneg %p117
      %p124 = scmp.eq.s32.totalorder %s35, 1
      %p125 = por %p123, %p124
      %p126 = scmp.ne.s32.totalorder %s118, %s121
      %p127 = scmp.eq.s32.totalorder %s35, 0
      %p128 = por %p126, %p127
      %p129 = scmp.ne.s32.totalorder %s118, %s121
      %p130 = scmp.eq.s32.totalorder %s40, 1
      %p131 = por %p129, %p130
      %p132 = scmp.ne.s32.totalorder %s121, %s122
      %p133 = scmp.eq.s32.totalorder %s40, 0
      %p134 = por %p132, %p133
      %p135 = scmp.ne.s32.totalorder %s121, %s122
      %p136 = scmp.eq.s32.totalorder %s41, 1
      %p137 = por %p135, %p136
      %p139 = scmp.ne.s32.totalorder %s122, %s138
      %p140 = scmp.eq.s32.totalorder %s41, 0
      %p141 = por %p139, %p140
      %s143 = sadd.s32 %s142, 1
      %p146 = scmp.eq.s32.totalorder %s35, 1
      %p147 = scmp.ne.s32.totalorder %s142, %s144
      %p148 = scmp.eq.s32.totalorder %s35, 0
      %p149 = por %p147, %p148
      %p150 = scmp.ne.s32.totalorder %s142, %s144
      %p151 = scmp.eq.s32.totalorder %s40, 1
      %p152 = por %p150, %p151
      %p153 = scmp.ne.s32.totalorder %s144, %s145
      %p154 = scmp.eq.s32.totalorder %s40, 0
      %p155 = por %p153, %p154
      %p156 = scmp.ne.s32.totalorder %s144, %s145
      %p157 = scmp.eq.s32.totalorder %s41, 1
      %p158 = por %p156, %p157
      %p160 = scmp.ne.s32.totalorder %s145, %s159
      %p161 = scmp.eq.s32.totalorder %s41, 0
      %p162 = por %p160, %p161
      %s164 = sadd.s32 %s163, 1
      %p167 = scmp.eq.s32.totalorder %s35, 1
      %p168 = scmp.ne.s32.totalorder %s163, %s165
      %p169 = scmp.eq.s32.totalorder %s35, 0
      %p170 = por %p168, %p169
      %p171 = scmp.ne.s32.totalorder %s163, %s165
      %p172 = scmp.eq.s32.totalorder %s40, 1
      %p173 = por %p171, %p172
      %p174 = scmp.ne.s32.totalorder %s165, %s166
      %p175 = scmp.eq.s32.totalorder %s40, 0
      %p176 = por %p174, %p175
      %p177 = scmp.ne.s32.totalorder %s165, %s166
      %p178 = scmp.eq.s32.totalorder %s41, 1
      %p179 = por %p177, %p178
      %p181 = scmp.ne.s32.totalorder %s166, %s180
      %p182 = scmp.eq.s32.totalorder %s41, 0
      %p183 = por %p181, %p182
      %s185 = sadd.s32 %s184, 1
      %p188 = scmp.eq.s32.totalorder %s35, 1
      %p189 = scmp.ne.s32.totalorder %s184, %s186
      %p190 = scmp.eq.s32.totalorder %s35, 0
      %p191 = por %p189, %p190
      %p192 = scmp.ne.s32.totalorder %s184, %s186
      %p193 = scmp.eq.s32.totalorder %s40, 1
      %p194 = por %p192, %p193
      %p195 = scmp.ne.s32.totalorder %s186, %s187
      %p196 = scmp.eq.s32.totalorder %s40, 0
      %p197 = por %p195, %p196
      %p198 = scmp.ne.s32.totalorder %s186, %s187
      %p199 = scmp.eq.s32.totalorder %s41, 1
      %p200 = por %p198, %p199
      %p202 = scmp.ne.s32.totalorder %s187, %s201
      %p203 = scmp.eq.s32.totalorder %s41, 0
      %p204 = por %p202, %p203
      %s205 = ssub.s32 %s35, %s42
      %p206 = scmp.eq.s32.totalorder %s205, 0
      %s208 = sadd.s32 %s207, 1
      %s209 = scalar_select %p206, %s207, %s208
      %p212 = pneg %p206
      %p213 = scmp.eq.s32.totalorder %s35, 1
      %p214 = por %p212, %p213
      %p215 = scmp.ne.s32.totalorder %s207, %s210
      %p216 = scmp.eq.s32.totalorder %s35, 0
      %p217 = por %p215, %p216
      %p218 = scmp.ne.s32.totalorder %s207, %s210
      %p219 = scmp.eq.s32.totalorder %s40, 1
      %p220 = por %p218, %p219
      %p221 = scmp.ne.s32.totalorder %s210, %s211
      %p222 = scmp.eq.s32.totalorder %s40, 0
      %p223 = por %p221, %p222
      %p224 = scmp.ne.s32.totalorder %s210, %s211
      %p225 = scmp.eq.s32.totalorder %s41, 1
      %p226 = por %p224, %p225
      %p228 = scmp.ne.s32.totalorder %s211, %s227
      %p229 = scmp.eq.s32.totalorder %s41, 0
      %p230 = por %p228, %p229
      %s232 = sadd.s32 %s231, 1
      %p235 = scmp.eq.s32.totalorder %s35, 1
      %p236 = scmp.ne.s32.totalorder %s231, %s233
      %p237 = scmp.eq.s32.totalorder %s35, 0
      %p238 = por %p236, %p237
      %p239 = scmp.ne.s32.totalorder %s231, %s233
      %p240 = scmp.eq.s32.totalorder %s40, 1
      %p241 = por %p239, %p240
      %p242 = scmp.ne.s32.totalorder %s233, %s234
      %p243 = scmp.eq.s32.totalorder %s40, 0
      %p244 = por %p242, %p243
      %p245 = scmp.ne.s32.totalorder %s233, %s234
      %p246 = scmp.eq.s32.totalorder %s41, 1
      %p247 = por %p245, %p246
      %p249 = scmp.ne.s32.totalorder %s234, %s248
      %p250 = scmp.eq.s32.totalorder %s41, 0
      %p251 = por %p249, %p250
      %s253 = sadd.s32 %s252, 1
      %p256 = scmp.eq.s32.totalorder %s35, 1
      %p257 = scmp.ne.s32.totalorder %s252, %s254
      %p258 = scmp.eq.s32.totalorder %s35, 0
      %p259 = por %p257, %p258
      %p260 = scmp.ne.s32.totalorder %s252, %s254
      %p261 = scmp.eq.s32.totalorder %s40, 1
      %p262 = por %p260, %p261
      %p263 = scmp.ne.s32.totalorder %s254, %s255
      %p264 = scmp.eq.s32.totalorder %s40, 0
      %p265 = por %p263, %p264
      %p266 = scmp.ne.s32.totalorder %s254, %s255
      %p267 = scmp.eq.s32.totalorder %s41, 1
      %p268 = por %p266, %p267
      %p270 = scmp.ne.s32.totalorder %s255, %s269
      %p271 = scmp.eq.s32.totalorder %s41, 0
      %p272 = por %p270, %p271
      %s274 = sadd.s32 %s273, 1
      %p277 = scmp.eq.s32.totalorder %s35, 1
      %p278 = scmp.ne.s32.totalorder %s273, %s275
      %p279 = scmp.eq.s32.totalorder %s35, 0
      %p280 = por %p278, %p279
      %p281 = scmp.ne.s32.totalorder %s273, %s275
      %p282 = scmp.eq.s32.totalorder %s40, 1
      %p283 = por %p281, %p282
      %p284 = scmp.ne.s32.totalorder %s275, %s276
      %p285 = scmp.eq.s32.totalorder %s40, 0
      %p286 = por %p284, %p285
      %p287 = scmp.ne.s32.totalorder %s275, %s276
      %p288 = scmp.eq.s32.totalorder %s41, 1
      %p289 = por %p287, %p288
      %p291 = scmp.ne.s32.totalorder %s276, %s290
      %p292 = scmp.eq.s32.totalorder %s41, 0
      %p293 = por %p291, %p292
      %s295 = sadd.s32 %s294, 1
      %p298 = scmp.eq.s32.totalorder %s35, 1
      %p299 = scmp.ne.s32.totalorder %s294, %s296
      %p300 = scmp.eq.s32.totalorder %s35, 0
      %p301 = por %p299, %p300
      %p302 = scmp.ne.s32.totalorder %s294, %s296
      %p303 = scmp.eq.s32.totalorder %s40, 1
      %p304 = por %p302, %p303
      %p305 = scmp.ne.s32.totalorder %s296, %s297
      %p306 = scmp.eq.s32.totalorder %s40, 0
      %p307 = por %p305, %p306
      %p308 = scmp.ne.s32.totalorder %s296, %s297
      %p309 = scmp.eq.s32.totalorder %s41, 1
      %p310 = por %p308, %p309
      %p312 = scmp.ne.s32.totalorder %s297, %s311
      %p313 = scmp.eq.s32.totalorder %s41, 0
      %p314 = por %p312, %p313
      %s316 = sadd.s32 %s315, 1
      %p319 = scmp.eq.s32.totalorder %s35, 1
      %p320 = scmp.ne.s32.totalorder %s315, %s317
      %p321 = scmp.eq.s32.totalorder %s35, 0
      %p322 = por %p320, %p321
      %p323 = scmp.ne.s32.totalorder %s315, %s317
      %p324 = scmp.eq.s32.totalorder %s40, 1
      %p325 = por %p323, %p324
      %p326 = scmp.ne.s32.totalorder %s317, %s318
      %p327 = scmp.eq.s32.totalorder %s40, 0
      %p328 = por %p326, %p327
      %p329 = scmp.ne.s32.totalorder %s317, %s318
      %p330 = scmp.eq.s32.totalorder %s41, 1
      %p331 = por %p329, %p330
      %p333 = scmp.ne.s32.totalorder %s318, %s332
      %p334 = scmp.eq.s32.totalorder %s41, 0
      %p335 = por %p333, %p334
      %s336 = ssub.s32 %s35, %s42
      %p337 = scmp.eq.s32.totalorder %s336, 0
      %s339 = sadd.s32 %s338, 1
      %s340 = scalar_select %p337, %s338, %s339
      %p343 = pneg %p337
      %p344 = scmp.eq.s32.totalorder %s35, 1
      %p345 = por %p343, %p344
      %p346 = scmp.ne.s32.totalorder %s338, %s341
      %p347 = scmp.eq.s32.totalorder %s35, 0
      %p348 = por %p346, %p347
      %p349 = scmp.ne.s32.totalorder %s338, %s341
      %p350 = scmp.eq.s32.totalorder %s40, 1
      %p351 = por %p349, %p350
      %p352 = scmp.ne.s32.totalorder %s341, %s342
      %p353 = scmp.eq.s32.totalorder %s40, 0
      %p354 = por %p352, %p353
      %p355 = scmp.ne.s32.totalorder %s341, %s342
      %p356 = scmp.eq.s32.totalorder %s41, 1
      %p357 = por %p355, %p356
      %p359 = scmp.ne.s32.totalorder %s342, %s358
      %p360 = scmp.eq.s32.totalorder %s41, 0
      %p361 = por %p359, %p360
      %s363 = sadd.s32 %s362, 1
      %p366 = scmp.eq.s32.totalorder %s35, 1
      %p367 = scmp.ne.s32.totalorder %s362, %s364
      %p368 = scmp.eq.s32.totalorder %s35, 0
      %p369 = por %p367, %p368
      %p370 = scmp.ne.s32.totalorder %s362, %s364
      %p371 = scmp.eq.s32.totalorder %s40, 1
      %p372 = por %p370, %p371
      %p373 = scmp.ne.s32.totalorder %s364, %s365
      %p374 = scmp.eq.s32.totalorder %s40, 0
      %p375 = por %p373, %p374
      %p376 = scmp.ne.s32.totalorder %s364, %s365
      %p377 = scmp.eq.s32.totalorder %s41, 1
      %p378 = por %p376, %p377
      %p380 = scmp.ne.s32.totalorder %s365, %s379
      %p381 = scmp.eq.s32.totalorder %s41, 0
      %p382 = por %p380, %p381
      %s384 = sadd.s32 %s383, 1
      %p387 = scmp.eq.s32.totalorder %s35, 1
      %p388 = scmp.ne.s32.totalorder %s383, %s385
      %p389 = scmp.eq.s32.totalorder %s35, 0
      %p390 = por %p388, %p389
      %p391 = scmp.ne.s32.totalorder %s383, %s385
      %p392 = scmp.eq.s32.totalorder %s40, 1
      %p393 = por %p391, %p392
      %p394 = scmp.ne.s32.totalorder %s385, %s386
      %p395 = scmp.eq.s32.totalorder %s40, 0
      %p396 = por %p394, %p395
      %p397 = scmp.ne.s32.totalorder %s385, %s386
      %p398 = scmp.eq.s32.totalorder %s41, 1
      %p399 = por %p397, %p398
      %p401 = scmp.ne.s32.totalorder %s386, %s400
      %p402 = scmp.eq.s32.totalorder %s41, 0
      %p403 = por %p401, %p402
      %s405 = sadd.s32 %s404, 1
      %p408 = scmp.eq.s32.totalorder %s35, 1
      %p409 = scmp.ne.s32.totalorder %s404, %s406
      %p410 = scmp.eq.s32.totalorder %s35, 0
      %p411 = por %p409, %p410
      %p412 = scmp.ne.s32.totalorder %s404, %s406
      %p413 = scmp.eq.s32.totalorder %s40, 1
      %p414 = por %p412, %p413
      %p415 = scmp.ne.s32.totalorder %s406, %s407
      %p416 = scmp.eq.s32.totalorder %s40, 0
      %p417 = por %p415, %p416
      %p418 = scmp.ne.s32.totalorder %s406, %s407
      %p419 = scmp.eq.s32.totalorder %s41, 1
      %p420 = por %p418, %p419
      %p422 = scmp.ne.s32.totalorder %s407, %s421
      %p423 = scmp.eq.s32.totalorder %s41, 0
      %p424 = por %p422, %p423
      %p425 = scmp.le.s32.totalorder 1, %s35
      %p426 = scmp.lt.s32.totalorder %s35, 3
      %p427 = pnand %p425, %p426
      %p428 = pneg %p427
      // Predicated region
      $region9: #{tpu_custom_call.1} parent=5 // pred_check
        _
      $region10: #{tpu_custom_call.1} parent=5 // pred_check_branch
        %430 = sbr.rel (%p427) target = $region12
      $region11: #{tpu_custom_call.1} parent=5 // pred_region
        %s431 = ssub.s32 %s35, 1
        // Predicated region
        $region13: #{tpu_custom_call.1} parent=11 // pred_check
          %p432 = pneg %p56
        $region14: #{tpu_custom_call.1} parent=11 // pred_check_branch
          %434 = sbr.rel (%p432) target = $region16
        $region15: #{tpu_custom_call.1} parent=11 // pred_region
          _
        $region16: #{tpu_custom_call.1} parent=11 // pred_fallthru
          _
        // Predicated region
        $region17: #{tpu_custom_call.1} parent=11 // pred_check
          %p435 = pneg %p155
        $region18: #{tpu_custom_call.1} parent=11 // pred_check_branch
          %437 = sbr.rel (%p435) target = $region20
        $region19: #{tpu_custom_call.1} parent=11 // pred_region
          %439 = vsyncadd [#allocation12], 0
          %s441 = sshll.u32 %s4, 4
          %s442 = int_to_ptr.hbm [resolvable:$true] %s441
          %s443 = sshll.u32 [#allocation11], 4
          %s444 = int_to_ptr.vmem [resolvable:$true] %s443
          %446 = dma.hbm_to_vmem [thread:$0]  %s442, 64, %s444, [#allocation12]
        $region20: #{tpu_custom_call.1} parent=11 // pred_fallthru
          _
        // Predicated region
        $region21: #{tpu_custom_call.1} parent=11 // pred_check
          %p447 = pneg %p176
        $region22: #{tpu_custom_call.1} parent=11 // pred_check_branch
          %449 = sbr.rel (%p447) target = $region24
        $region23: #{tpu_custom_call.1} parent=11 // pred_region
          %451 = vsyncadd [#allocation12], 0
          %s452 = sshll.u32 %s5, 4
          %s453 = int_to_ptr.hbm [resolvable:$true] %s452
          %s454 = sshll.u32 [#allocation13], 4
          %s455 = int_to_ptr.vmem [resolvable:$true] %s454
          %460 = dma.hbm_to_vmem [thread:$0]  %s453, 8192, %s455, [#allocation12], 128, 128, 8
        $region24: #{tpu_custom_call.1} parent=11 // pred_fallthru
          _
        // Predicated region
        $region25: #{tpu_custom_call.1} parent=11 // pred_check
          %p461 = pneg %p197
        $region26: #{tpu_custom_call.1} parent=11 // pred_check_branch
          %463 = sbr.rel (%p461) target = $region28
        $region27: #{tpu_custom_call.1} parent=11 // pred_region
          %465 = vsyncadd [#allocation15], 0
          %s467 = sshll.u32 %s6, 4
          %s468 = int_to_ptr.hbm [resolvable:$true] %s467
          %s469 = sshll.u32 [#allocation14], 4
          %s470 = int_to_ptr.vmem [resolvable:$true] %s469
          %472 = dma.hbm_to_vmem [thread:$0]  %s468, 16, %s470, [#allocation15]
        $region28: #{tpu_custom_call.1} parent=11 // pred_fallthru
          _
        // Predicated region
        $region29: #{tpu_custom_call.1} parent=11 // pred_check
          %p473 = pneg %p244
        $region30: #{tpu_custom_call.1} parent=11 // pred_check_branch
          %475 = sbr.rel (%p473) target = $region32
        $region31: #{tpu_custom_call.1} parent=11 // pred_region
          %477 = vsyncadd [#allocation9], 0
          %s479 = sshll.u32 %s8, 4
          %s480 = int_to_ptr.hbm [resolvable:$true] %s479
          %s481 = sshll.u32 [#allocation17], 4
          %s482 = int_to_ptr.vmem [resolvable:$true] %s481
          %484 = dma.hbm_to_vmem [thread:$0]  %s480, 64, %s482, [#allocation9]
        $region32: #{tpu_custom_call.1} parent=11 // pred_fallthru
          _
        // Predicated region
        $region33: #{tpu_custom_call.1} parent=11 // pred_check
          %p485 = pneg %p265
        $region34: #{tpu_custom_call.1} parent=11 // pred_check_branch
          %487 = sbr.rel (%p485) target = $region36
        $region35: #{tpu_custom_call.1} parent=11 // pred_region
          %489 = vsyncadd [#allocation12], 0
          %s490 = sshll.u32 %s9, 4
          %s491 = int_to_ptr.hbm [resolvable:$true] %s490
          %s492 = sshll.u32 [#allocation18], 4
          %s493 = int_to_ptr.vmem [resolvable:$true] %s492
          %498 = dma.hbm_to_vmem [thread:$0]  %s491, 8192, %s493, [#allocation12], 128, 128, 8
        $region36: #{tpu_custom_call.1} parent=11 // pred_fallthru
          _
        // Predicated region
        $region37: #{tpu_custom_call.1} parent=11 // pred_check
          %p499 = pneg %p286
        $region38: #{tpu_custom_call.1} parent=11 // pred_check_branch
          %501 = sbr.rel (%p499) target = $region40
        $region39: #{tpu_custom_call.1} parent=11 // pred_region
          %503 = vsyncadd [#allocation15], 0
          %s505 = sshll.u32 %s10, 4
          %s506 = int_to_ptr.hbm [resolvable:$true] %s505
          %s507 = sshll.u32 [#allocation19], 4
          %s508 = int_to_ptr.vmem [resolvable:$true] %s507
          %510 = dma.hbm_to_vmem [thread:$0]  %s506, 16, %s508, [#allocation15]
        $region40: #{tpu_custom_call.1} parent=11 // pred_fallthru
          _
      $region12: #{tpu_custom_call.1} parent=5 // pred_fallthru
        _
      %p511 = scmp.lt.s32.totalorder %s35, 2
      // Predicated region
      $region41: #{tpu_custom_call.1} parent=5 // pred_check
        %p512 = pneg %p511
      $region42: #{tpu_custom_call.1} parent=5 // pred_check_branch
        %514 = sbr.rel (%p512) target = $region44
      $region43: #{tpu_custom_call.1} parent=5 // pred_region
        // Predicated region
        $region45: #{tpu_custom_call.1} parent=43 // pred_check
          %p515 = pneg %p76
        $region46: #{tpu_custom_call.1} parent=43 // pred_check_branch
          %517 = sbr.rel (%p515) target = $region48
        $region47: #{tpu_custom_call.1} parent=43 // pred_region
          %s518 = sand.u32 %s35, 1
          %s519 = scalar_lea.sflag [#allocation6], %s518
          %s520 = sand.u32 %s66, 1
          %s521 = smul.addr %s520, 32
          %s522 = scalar_lea.vmem [#allocation5], %s521
          %s523 = smul.u32 4, %s35
          %525 = vsyncadd %s519, 0
          %s526 = smul.addr %s523, 8
          %s527 = scalar_lea.hbm %s1, %s526
          %s529 = sshll.u32 %s527, 4
          %s530 = int_to_ptr.hbm [resolvable:$true] %s529
          %s531 = sshll.u32 %s522, 4
          %s532 = int_to_ptr.vmem [resolvable:$true] %s531
          %534 = dma.hbm_to_vmem [thread:$0]  %s530, 512, %s532, %s519
        $region48: #{tpu_custom_call.1} parent=43 // pred_fallthru
          _
        // Predicated region
        $region49: #{tpu_custom_call.1} parent=43 // pred_check
          %p535 = pneg %p102
        $region50: #{tpu_custom_call.1} parent=43 // pred_check_branch
          %537 = sbr.rel (%p535) target = $region52
        $region51: #{tpu_custom_call.1} parent=43 // pred_region
          %s538 = sand.u32 %s35, 1
          %s539 = scalar_lea.sflag [#allocation9], %s538
          %s540 = sand.u32 %s92, 1
          %s541 = smul.addr %s540, 32
          %s542 = scalar_lea.vmem [#allocation8], %s541
          %s543 = smul.u32 4, %s35
          %545 = vsyncadd %s539, 0
          %s546 = smul.addr %s543, 8
          %s547 = scalar_lea.hbm %s2, %s546
          %s549 = sshll.u32 %s547, 4
          %s550 = int_to_ptr.hbm [resolvable:$true] %s549
          %s551 = sshll.u32 %s542, 4
          %s552 = int_to_ptr.vmem [resolvable:$true] %s551
          %554 = dma.hbm_to_vmem [thread:$0]  %s550, 512, %s552, %s539
        $region52: #{tpu_custom_call.1} parent=43 // pred_fallthru
          _
        // Predicated region
        $region53: #{tpu_custom_call.1} parent=43 // pred_check
          %p555 = pneg %p128
        $region54: #{tpu_custom_call.1} parent=43 // pred_check_branch
          %557 = sbr.rel (%p555) target = $region56
        $region55: #{tpu_custom_call.1} parent=43 // pred_region
          %s558 = sand.u32 %s35, 1
          %s559 = scalar_lea.sflag [#allocation9], %s558
          %s560 = sand.u32 %s118, 1
          %s561 = smul.addr %s560, 2048
          %s562 = scalar_lea.vmem [#allocation10], %s561
          %s563 = smul.u32 64, %s35
          %565 = vsyncadd %s559, 0
          %s566 = smul.addr %s563, 4
          %s567 = smul.addr %s566, 8
          %s568 = scalar_lea.hbm %s3, %s567
          %s569 = sshll.u32 %s568, 4
          %s570 = int_to_ptr.hbm [resolvable:$true] %s569
          %s571 = sshll.u32 %s562, 4
          %s572 = int_to_ptr.vmem [resolvable:$true] %s571
          %577 = dma.hbm_to_vmem [thread:$0]  %s570, 32768, %s572, %s559, 512, 512, 32
        $region56: #{tpu_custom_call.1} parent=43 // pred_fallthru
          _
        // Predicated region
        $region57: #{tpu_custom_call.1} parent=43 // pred_check
          %p578 = pneg %p217
        $region58: #{tpu_custom_call.1} parent=43 // pred_check_branch
          %580 = sbr.rel (%p578) target = $region60
        $region59: #{tpu_custom_call.1} parent=43 // pred_region
          %s581 = sand.u32 %s35, 1
          %s582 = scalar_lea.sflag [#allocation6], %s581
          %s583 = sand.u32 %s207, 1
          %s584 = smul.addr %s583, 2048
          %s585 = scalar_lea.vmem [#allocation16], %s584
          %s586 = smul.u32 64, %s35
          %588 = vsyncadd %s582, 0
          %s589 = smul.addr %s586, 4
          %s590 = smul.addr %s589, 8
          %s591 = scalar_lea.hbm %s7, %s590
          %s592 = sshll.u32 %s591, 4
          %s593 = int_to_ptr.hbm [resolvable:$true] %s592
          %s594 = sshll.u32 %s585, 4
          %s595 = int_to_ptr.vmem [resolvable:$true] %s594
          %600 = dma.hbm_to_vmem [thread:$0]  %s593, 32768, %s595, %s582, 512, 512, 32
        $region60: #{tpu_custom_call.1} parent=43 // pred_fallthru
          _
      $region44: #{tpu_custom_call.1} parent=5 // pred_fallthru
        _
      %p601 = scmp.le.s32.totalorder 1, %s35
      %p602 = scmp.lt.s32.totalorder %s35, 3
      %p603 = pnand %p601, %p602
      %p604 = pneg %p603
      // Predicated region
      $region61: #{tpu_custom_call.1} parent=5 // pred_check
        _
      $region62: #{tpu_custom_call.1} parent=5 // pred_check_branch
        %606 = sbr.rel (%p603) target = $region64
      $region63: #{tpu_custom_call.1} parent=5 // pred_region
        %s607 = ssub.s32 %s35, 1
        %s608 = sand.u32 %s40, 1
        %s609 = scalar_lea.sflag [#allocation6], %s608
        %s610 = sand.u32 %s69, 1
        %s611 = smul.addr %s610, 32
        %s612 = scalar_lea.vmem [#allocation5], %s611
        // Predicated region
        $region65: #{tpu_custom_call.1} parent=63 // pred_check
          %p613 = pneg %p82
        $region66: #{tpu_custom_call.1} parent=63 // pred_check_branch
          %615 = sbr.rel (%p613) target = $region68
        $region67: #{tpu_custom_call.1} parent=63 // pred_region
          %617 = dma.done %s609, 512
        $region68: #{tpu_custom_call.1} parent=63 // pred_fallthru
          _
        %s618 = sand.u32 %s40, 1
        %s619 = scalar_lea.sflag [#allocation9], %s618
        %s620 = sand.u32 %s95, 1
        %s621 = smul.addr %s620, 32
        %s622 = scalar_lea.vmem [#allocation8], %s621
        // Predicated region
        $region69: #{tpu_custom_call.1} parent=63 // pred_check
          %p623 = pneg %p108
        $region70: #{tpu_custom_call.1} parent=63 // pred_check_branch
          %625 = sbr.rel (%p623) target = $region72
        $region71: #{tpu_custom_call.1} parent=63 // pred_region
          %627 = dma.done %s619, 512
        $region72: #{tpu_custom_call.1} parent=63 // pred_fallthru
          _
        %s628 = sand.u32 %s40, 1
        %s629 = scalar_lea.sflag [#allocation9], %s628
        %s630 = sand.u32 %s121, 1
        %s631 = smul.addr %s630, 2048
        %s632 = scalar_lea.vmem [#allocation10], %s631
        // Predicated region
        $region73: #{tpu_custom_call.1} parent=63 // pred_check
          %p633 = pneg %p134
        $region74: #{tpu_custom_call.1} parent=63 // pred_check_branch
          %635 = sbr.rel (%p633) target = $region76
        $region75: #{tpu_custom_call.1} parent=63 // pred_region
          %637 = dma.done %s629, 32768
        $region76: #{tpu_custom_call.1} parent=63 // pred_fallthru
          _
        // Predicated region
        $region77: #{tpu_custom_call.1} parent=63 // pred_check
          %p638 = pneg %p155
        $region78: #{tpu_custom_call.1} parent=63 // pred_check_branch
          %640 = sbr.rel (%p638) target = $region80
        $region79: #{tpu_custom_call.1} parent=63 // pred_region
          %642 = dma.done [#allocation12], 64
        $region80: #{tpu_custom_call.1} parent=63 // pred_fallthru
          _
        // Predicated region
        $region81: #{tpu_custom_call.1} parent=63 // pred_check
          %p643 = pneg %p176
        $region82: #{tpu_custom_call.1} parent=63 // pred_check_branch
          %645 = sbr.rel (%p643) target = $region84
        $region83: #{tpu_custom_call.1} parent=63 // pred_region
          %647 = dma.done [#allocation12], 8192
        $region84: #{tpu_custom_call.1} parent=63 // pred_fallthru
          _
        // Predicated region
        $region85: #{tpu_custom_call.1} parent=63 // pred_check
          %p648 = pneg %p197
        $region86: #{tpu_custom_call.1} parent=63 // pred_check_branch
          %650 = sbr.rel (%p648) target = $region88
        $region87: #{tpu_custom_call.1} parent=63 // pred_region
          %652 = dma.done [#allocation15], 16
        $region88: #{tpu_custom_call.1} parent=63 // pred_fallthru
          _
        %s653 = sand.u32 %s40, 1
        %s654 = scalar_lea.sflag [#allocation6], %s653
        %s655 = sand.u32 %s210, 1
        %s656 = smul.addr %s655, 2048
        %s657 = scalar_lea.vmem [#allocation16], %s656
        // Predicated region
        $region89: #{tpu_custom_call.1} parent=63 // pred_check
          %p658 = pneg %p223
        $region90: #{tpu_custom_call.1} parent=63 // pred_check_branch
          %660 = sbr.rel (%p658) target = $region92
        $region91: #{tpu_custom_call.1} parent=63 // pred_region
          %662 = dma.done %s654, 32768
        $region92: #{tpu_custom_call.1} parent=63 // pred_fallthru
          _
        // Predicated region
        $region93: #{tpu_custom_call.1} parent=63 // pred_check
          %p663 = pneg %p244
        $region94: #{tpu_custom_call.1} parent=63 // pred_check_branch
          %665 = sbr.rel (%p663) target = $region96
        $region95: #{tpu_custom_call.1} parent=63 // pred_region
          %667 = dma.done [#allocation9], 64
        $region96: #{tpu_custom_call.1} parent=63 // pred_fallthru
          _
        // Predicated region
        $region97: #{tpu_custom_call.1} parent=63 // pred_check
          %p668 = pneg %p265
        $region98: #{tpu_custom_call.1} parent=63 // pred_check_branch
          %670 = sbr.rel (%p668) target = $region100
        $region99: #{tpu_custom_call.1} parent=63 // pred_region
          %672 = dma.done [#allocation12], 8192
        $region100: #{tpu_custom_call.1} parent=63 // pred_fallthru
          _
        // Predicated region
        $region101: #{tpu_custom_call.1} parent=63 // pred_check
          %p673 = pneg %p286
        $region102: #{tpu_custom_call.1} parent=63 // pred_check_branch
          %675 = sbr.rel (%p673) target = $region104
        $region103: #{tpu_custom_call.1} parent=63 // pred_region
          %677 = dma.done [#allocation15], 16
        $region104: #{tpu_custom_call.1} parent=63 // pred_fallthru
          _
        %p678 = pneg %p56
        %p679 = pneg %p53
        %s680 = sand.u32 %s40, 1
        %s681 = scalar_lea.sflag [#allocation6], %s680
        %s682 = sand.u32 %s69, 1
        %s683 = smul.addr %s682, 32
        %s684 = scalar_lea.vmem [#allocation5], %s683
        %p685 = pneg %p82
        %p686 = pneg %p79
        %s687 = sand.u32 %s40, 1
        %s688 = scalar_lea.sflag [#allocation9], %s687
        %s689 = sand.u32 %s95, 1
        %s690 = smul.addr %s689, 32
        %s691 = scalar_lea.vmem [#allocation8], %s690
        %p692 = pneg %p108
        %p693 = pneg %p105
        %s694 = sand.u32 %s40, 1
        %s695 = scalar_lea.sflag [#allocation9], %s694
        %s696 = sand.u32 %s121, 1
        %s697 = smul.addr %s696, 2048
        %s698 = scalar_lea.vmem [#allocation10], %s697
        %p699 = pneg %p134
        %p700 = pneg %p131
        %p701 = pneg %p155
        %p702 = pneg %p152
        %p703 = pneg %p176
        %p704 = pneg %p173
        %p705 = pneg %p197
        %p706 = pneg %p194
        %s707 = sand.u32 %s40, 1
        %s708 = scalar_lea.sflag [#allocation6], %s707
        %s709 = sand.u32 %s210, 1
        %s710 = smul.addr %s709, 2048
        %s711 = scalar_lea.vmem [#allocation16], %s710
        %p712 = pneg %p223
        %p713 = pneg %p220
        %p714 = pneg %p244
        %p715 = pneg %p241
        %p716 = pneg %p265
        %p717 = pneg %p262
        %p718 = pneg %p286
        %p719 = pneg %p283
        %p720 = pneg %p307
        %p721 = pneg %p304
        %p722 = pneg %p328
        %p723 = pneg %p325
        %p724 = pneg %p354
        %p725 = pneg %p351
        %s726 = sand.u32 %s40, 1
        %s727 = scalar_lea.sflag [#allocation7], %s726
        %s728 = sand.u32 %s341, 1
        %s729 = smul.addr %s728, 2048
        %s730 = scalar_lea.vmem [#allocation23], %s729
        %p731 = pneg %p375
        %p732 = pneg %p372
        %p733 = pneg %p396
        %p734 = pneg %p393
        %p735 = pneg %p417
        %p736 = pneg %p414
        %s737 = smul.u32 4, %s40
        %s738 = smul.u32 4, %s40
        %s739 = smul.u32 64, %s40
        %s740 = smul.u32 64, %s40
        %s741 = smul.u32 64, %s40
        %s742 = sld [smem:[#allocation4]]
        %p743 = scmp.eq.s32.totalorder %s40, 0
        // Predicated region
        $region105: #{tpu_custom_call.1} parent=63 // pred_check
          %p744 = pneg %p743
        $region106: #{tpu_custom_call.1} parent=63 // pred_check_branch
          %746 = sbr.rel (%p744) target = $region108
        $region107: #{tpu_custom_call.1} parent=63 // pred_region
          %747 = vst [vmem:[#allocation2] sm:$0xff] 0.0
          %748 = vst [vmem:[#allocation2 + $0x8] sm:$0xff] 0.0
          %749 = vst [vmem:[#allocation2 + $0x10] sm:$0xff] 0.0
          %750 = vst [vmem:[#allocation2 + $0x18] sm:$0xff] 0.0
          %751 = vst [vmem:[#allocation3] sm:$0xff] 0.0
          %752 = vst [vmem:[#allocation3 + $0x8] sm:$0xff] 0.0
          %753 = vst [vmem:[#allocation3 + $0x10] sm:$0xff] 0.0
          %754 = vst [vmem:[#allocation3 + $0x18] sm:$0xff] 0.0
        $region108: #{tpu_custom_call.1} parent=63 // pred_fallthru
          _
        %v755 = vld [vmem:[%s632] sm:$0xff]
        %v756 = vld [vmem:[%s632 + $0x8] sm:$0xff]
        %v757 = vld [vmem:[%s632 + $0x10] sm:$0xff]
        %v758 = vld [vmem:[%s632 + $0x18] sm:$0xff]
        %v759 = vld [vmem:[%s632 + $0x20] sm:$0xff]
        %v760 = vld [vmem:[%s632 + $0x28] sm:$0xff]
        %v761 = vld [vmem:[%s632 + $0x30] sm:$0xff]
        %v762 = vld [vmem:[%s632 + $0x38] sm:$0xff]
        %v763 = vld [vmem:[%s632 + $0x40] sm:$0xff]
        %v764 = vld [vmem:[%s632 + $0x48] sm:$0xff]
        %v765 = vld [vmem:[%s632 + $0x50] sm:$0xff]
        %v766 = vld [vmem:[%s632 + $0x58] sm:$0xff]
        %v767 = vld [vmem:[%s632 + $0x60] sm:$0xff]
        %v768 = vld [vmem:[%s632 + $0x68] sm:$0xff]
        %v769 = vld [vmem:[%s632 + $0x70] sm:$0xff]
        %v770 = vld [vmem:[%s632 + $0x78] sm:$0xff]
        %v771 = vld [vmem:[%s632 + $0x80] sm:$0xff]
        %v772 = vld [vmem:[%s632 + $0x88] sm:$0xff]
        %v773 = vld [vmem:[%s632 + $0x90] sm:$0xff]
        %v774 = vld [vmem:[%s632 + $0x98] sm:$0xff]
        %v775 = vld [vmem:[%s632 + $0xa0] sm:$0xff]
        %v776 = vld [vmem:[%s632 + $0xa8] sm:$0xff]
        %v777 = vld [vmem:[%s632 + $0xb0] sm:$0xff]
        %v778 = vld [vmem:[%s632 + $0xb8] sm:$0xff]
        %v779 = vld [vmem:[%s632 + $0xc0] sm:$0xff]
        %v780 = vld [vmem:[%s632 + $0xc8] sm:$0xff]
        %v781 = vld [vmem:[%s632 + $0xd0] sm:$0xff]
        %v782 = vld [vmem:[%s632 + $0xd8] sm:$0xff]
        %v783 = vld [vmem:[%s632 + $0xe0] sm:$0xff]
        %v784 = vld [vmem:[%s632 + $0xe8] sm:$0xff]
        %v785 = vld [vmem:[%s632 + $0xf0] sm:$0xff]
        %v786 = vld [vmem:[%s632 + $0xf8] sm:$0xff]
        %v787 = vld [vmem:[%s632 + $0x100] sm:$0xff]
        %v788 = vld [vmem:[%s632 + $0x108] sm:$0xff]
        %v789 = vld [vmem:[%s632 + $0x110] sm:$0xff]
        %v790 = vld [vmem:[%s632 + $0x118] sm:$0xff]
        %v791 = vld [vmem:[%s632 + $0x120] sm:$0xff]
        %v792 = vld [vmem:[%s632 + $0x128] sm:$0xff]
        %v793 = vld [vmem:[%s632 + $0x130] sm:$0xff]
        %v794 = vld [vmem:[%s632 + $0x138] sm:$0xff]
        %v795 = vld [vmem:[%s632 + $0x140] sm:$0xff]
        %v796 = vld [vmem:[%s632 + $0x148] sm:$0xff]
        %v797 = vld [vmem:[%s632 + $0x150] sm:$0xff]
        %v798 = vld [vmem:[%s632 + $0x158] sm:$0xff]
        %v799 = vld [vmem:[%s632 + $0x160] sm:$0xff]
        %v800 = vld [vmem:[%s632 + $0x168] sm:$0xff]
        %v801 = vld [vmem:[%s632 + $0x170] sm:$0xff]
        %v802 = vld [vmem:[%s632 + $0x178] sm:$0xff]
        %v803 = vld [vmem:[%s632 + $0x180] sm:$0xff]
        %v804 = vld [vmem:[%s632 + $0x188] sm:$0xff]
        %v805 = vld [vmem:[%s632 + $0x190] sm:$0xff]
        %v806 = vld [vmem:[%s632 + $0x198] sm:$0xff]
        %v807 = vld [vmem:[%s632 + $0x1a0] sm:$0xff]
        %v808 = vld [vmem:[%s632 + $0x1a8] sm:$0xff]
        %v809 = vld [vmem:[%s632 + $0x1b0] sm:$0xff]
        %v810 = vld [vmem:[%s632 + $0x1b8] sm:$0xff]
        %v811 = vld [vmem:[%s632 + $0x1c0] sm:$0xff]
        %v812 = vld [vmem:[%s632 + $0x1c8] sm:$0xff]
        %v813 = vld [vmem:[%s632 + $0x1d0] sm:$0xff]
        %v814 = vld [vmem:[%s632 + $0x1d8] sm:$0xff]
        %v815 = vld [vmem:[%s632 + $0x1e0] sm:$0xff]
        %v816 = vld [vmem:[%s632 + $0x1e8] sm:$0xff]
        %v817 = vld [vmem:[%s632 + $0x1f0] sm:$0xff]
        %v818 = vld [vmem:[%s632 + $0x1f8] sm:$0xff]
        %v819 = vld [vmem:[%s632 + $0x200] sm:$0xff]
        %v820 = vld [vmem:[%s632 + $0x208] sm:$0xff]
        %v821 = vld [vmem:[%s632 + $0x210] sm:$0xff]
        %v822 = vld [vmem:[%s632 + $0x218] sm:$0xff]
        %v823 = vld [vmem:[%s632 + $0x220] sm:$0xff]
        %v824 = vld [vmem:[%s632 + $0x228] sm:$0xff]
        %v825 = vld [vmem:[%s632 + $0x230] sm:$0xff]
        %v826 = vld [vmem:[%s632 + $0x238] sm:$0xff]
        %v827 = vld [vmem:[%s632 + $0x240] sm:$0xff]
        %v828 = vld [vmem:[%s632 + $0x248] sm:$0xff]
        %v829 = vld [vmem:[%s632 + $0x250] sm:$0xff]
        %v830 = vld [vmem:[%s632 + $0x258] sm:$0xff]
        %v831 = vld [vmem:[%s632 + $0x260] sm:$0xff]
        %v832 = vld [vmem:[%s632 + $0x268] sm:$0xff]
        %v833 = vld [vmem:[%s632 + $0x270] sm:$0xff]
        %v834 = vld [vmem:[%s632 + $0x278] sm:$0xff]
        %v835 = vld [vmem:[%s632 + $0x280] sm:$0xff]
        %v836 = vld [vmem:[%s632 + $0x288] sm:$0xff]
        %v837 = vld [vmem:[%s632 + $0x290] sm:$0xff]
        %v838 = vld [vmem:[%s632 + $0x298] sm:$0xff]
        %v839 = vld [vmem:[%s632 + $0x2a0] sm:$0xff]
        %v840 = vld [vmem:[%s632 + $0x2a8] sm:$0xff]
        %v841 = vld [vmem:[%s632 + $0x2b0] sm:$0xff]
        %v842 = vld [vmem:[%s632 + $0x2b8] sm:$0xff]
        %v843 = vld [vmem:[%s632 + $0x2c0] sm:$0xff]
        %v844 = vld [vmem:[%s632 + $0x2c8] sm:$0xff]
        %v845 = vld [vmem:[%s632 + $0x2d0] sm:$0xff]
        %v846 = vld [vmem:[%s632 + $0x2d8] sm:$0xff]
        %v847 = vld [vmem:[%s632 + $0x2e0] sm:$0xff]
        %v848 = vld [vmem:[%s632 + $0x2e8] sm:$0xff]
        %v849 = vld [vmem:[%s632 + $0x2f0] sm:$0xff]
        %v850 = vld [vmem:[%s632 + $0x2f8] sm:$0xff]
        %v851 = vld [vmem:[%s632 + $0x300] sm:$0xff]
        %v852 = vld [vmem:[%s632 + $0x308] sm:$0xff]
        %v853 = vld [vmem:[%s632 + $0x310] sm:$0xff]
        %v854 = vld [vmem:[%s632 + $0x318] sm:$0xff]
        %v855 = vld [vmem:[%s632 + $0x320] sm:$0xff]
        %v856 = vld [vmem:[%s632 + $0x328] sm:$0xff]
        %v857 = vld [vmem:[%s632 + $0x330] sm:$0xff]
        %v858 = vld [vmem:[%s632 + $0x338] sm:$0xff]
        %v859 = vld [vmem:[%s632 + $0x340] sm:$0xff]
        %v860 = vld [vmem:[%s632 + $0x348] sm:$0xff]
        %v861 = vld [vmem:[%s632 + $0x350] sm:$0xff]
        %v862 = vld [vmem:[%s632 + $0x358] sm:$0xff]
        %v863 = vld [vmem:[%s632 + $0x360] sm:$0xff]
        %v864 = vld [vmem:[%s632 + $0x368] sm:$0xff]
        %v865 = vld [vmem:[%s632 + $0x370] sm:$0xff]
        %v866 = vld [vmem:[%s632 + $0x378] sm:$0xff]
        %v867 = vld [vmem:[%s632 + $0x380] sm:$0xff]
        %v868 = vld [vmem:[%s632 + $0x388] sm:$0xff]
        %v869 = vld [vmem:[%s632 + $0x390] sm:$0xff]
        %v870 = vld [vmem:[%s632 + $0x398] sm:$0xff]
        %v871 = vld [vmem:[%s632 + $0x3a0] sm:$0xff]
        %v872 = vld [vmem:[%s632 + $0x3a8] sm:$0xff]
        %v873 = vld [vmem:[%s632 + $0x3b0] sm:$0xff]
        %v874 = vld [vmem:[%s632 + $0x3b8] sm:$0xff]
        %v875 = vld [vmem:[%s632 + $0x3c0] sm:$0xff]
        %v876 = vld [vmem:[%s632 + $0x3c8] sm:$0xff]
        %v877 = vld [vmem:[%s632 + $0x3d0] sm:$0xff]
        %v878 = vld [vmem:[%s632 + $0x3d8] sm:$0xff]
        %v879 = vld [vmem:[%s632 + $0x3e0] sm:$0xff]
        %v880 = vld [vmem:[%s632 + $0x3e8] sm:$0xff]
        %v881 = vld [vmem:[%s632 + $0x3f0] sm:$0xff]
        %v882 = vld [vmem:[%s632 + $0x3f8] sm:$0xff]
        %v883 = vld [vmem:[%s632 + $0x400] sm:$0xff]
        %v884 = vld [vmem:[%s632 + $0x408] sm:$0xff]
        %v885 = vld [vmem:[%s632 + $0x410] sm:$0xff]
        %v886 = vld [vmem:[%s632 + $0x418] sm:$0xff]
        %v887 = vld [vmem:[%s632 + $0x420] sm:$0xff]
        %v888 = vld [vmem:[%s632 + $0x428] sm:$0xff]
        %v889 = vld [vmem:[%s632 + $0x430] sm:$0xff]
        %v890 = vld [vmem:[%s632 + $0x438] sm:$0xff]
        %v891 = vld [vmem:[%s632 + $0x440] sm:$0xff]
        %v892 = vld [vmem:[%s632 + $0x448] sm:$0xff]
        %v893 = vld [vmem:[%s632 + $0x450] sm:$0xff]
        %v894 = vld [vmem:[%s632 + $0x458] sm:$0xff]
        %v895 = vld [vmem:[%s632 + $0x460] sm:$0xff]
        %v896 = vld [vmem:[%s632 + $0x468] sm:$0xff]
        %v897 = vld [vmem:[%s632 + $0x470] sm:$0xff]
        %v898 = vld [vmem:[%s632 + $0x478] sm:$0xff]
        %v899 = vld [vmem:[%s632 + $0x480] sm:$0xff]
        %v900 = vld [vmem:[%s632 + $0x488] sm:$0xff]
        %v901 = vld [vmem:[%s632 + $0x490] sm:$0xff]
        %v902 = vld [vmem:[%s632 + $0x498] sm:$0xff]
        %v903 = vld [vmem:[%s632 + $0x4a0] sm:$0xff]
        %v904 = vld [vmem:[%s632 + $0x4a8] sm:$0xff]
        %v905 = vld [vmem:[%s632 + $0x4b0] sm:$0xff]
        %v906 = vld [vmem:[%s632 + $0x4b8] sm:$0xff]
        %v907 = vld [vmem:[%s632 + $0x4c0] sm:$0xff]
        %v908 = vld [vmem:[%s632 + $0x4c8] sm:$0xff]
        %v909 = vld [vmem:[%s632 + $0x4d0] sm:$0xff]
        %v910 = vld [vmem:[%s632 + $0x4d8] sm:$0xff]
        %v911 = vld [vmem:[%s632 + $0x4e0] sm:$0xff]
        %v912 = vld [vmem:[%s632 + $0x4e8] sm:$0xff]
        %v913 = vld [vmem:[%s632 + $0x4f0] sm:$0xff]
        %v914 = vld [vmem:[%s632 + $0x4f8] sm:$0xff]
        %v915 = vld [vmem:[%s632 + $0x500] sm:$0xff]
        %v916 = vld [vmem:[%s632 + $0x508] sm:$0xff]
        %v917 = vld [vmem:[%s632 + $0x510] sm:$0xff]
        %v918 = vld [vmem:[%s632 + $0x518] sm:$0xff]
        %v919 = vld [vmem:[%s632 + $0x520] sm:$0xff]
        %v920 = vld [vmem:[%s632 + $0x528] sm:$0xff]
        %v921 = vld [vmem:[%s632 + $0x530] sm:$0xff]
        %v922 = vld [vmem:[%s632 + $0x538] sm:$0xff]
        %v923 = vld [vmem:[%s632 + $0x540] sm:$0xff]
        %v924 = vld [vmem:[%s632 + $0x548] sm:$0xff]
        %v925 = vld [vmem:[%s632 + $0x550] sm:$0xff]
        %v926 = vld [vmem:[%s632 + $0x558] sm:$0xff]
        %v927 = vld [vmem:[%s632 + $0x560] sm:$0xff]
        %v928 = vld [vmem:[%s632 + $0x568] sm:$0xff]
        %v929 = vld [vmem:[%s632 + $0x570] sm:$0xff]
        %v930 = vld [vmem:[%s632 + $0x578] sm:$0xff]
        %v931 = vld [vmem:[%s632 + $0x580] sm:$0xff]
        %v932 = vld [vmem:[%s632 + $0x588] sm:$0xff]
        %v933 = vld [vmem:[%s632 + $0x590] sm:$0xff]
        %v934 = vld [vmem:[%s632 + $0x598] sm:$0xff]
        %v935 = vld [vmem:[%s632 + $0x5a0] sm:$0xff]
        %v936 = vld [vmem:[%s632 + $0x5a8] sm:$0xff]
        %v937 = vld [vmem:[%s632 + $0x5b0] sm:$0xff]
        %v938 = vld [vmem:[%s632 + $0x5b8] sm:$0xff]
        %v939 = vld [vmem:[%s632 + $0x5c0] sm:$0xff]
        %v940 = vld [vmem:[%s632 + $0x5c8] sm:$0xff]
        %v941 = vld [vmem:[%s632 + $0x5d0] sm:$0xff]
        %v942 = vld [vmem:[%s632 + $0x5d8] sm:$0xff]
        %v943 = vld [vmem:[%s632 + $0x5e0] sm:$0xff]
        %v944 = vld [vmem:[%s632 + $0x5e8] sm:$0xff]
        %v945 = vld [vmem:[%s632 + $0x5f0] sm:$0xff]
        %v946 = vld [vmem:[%s632 + $0x5f8] sm:$0xff]
        %v947 = vld [vmem:[%s632 + $0x600] sm:$0xff]
        %v948 = vld [vmem:[%s632 + $0x608] sm:$0xff]
        %v949 = vld [vmem:[%s632 + $0x610] sm:$0xff]
        %v950 = vld [vmem:[%s632 + $0x618] sm:$0xff]
        %v951 = vld [vmem:[%s632 + $0x620] sm:$0xff]
        %v952 = vld [vmem:[%s632 + $0x628] sm:$0xff]
        %v953 = vld [vmem:[%s632 + $0x630] sm:$0xff]
        %v954 = vld [vmem:[%s632 + $0x638] sm:$0xff]
        %v955 = vld [vmem:[%s632 + $0x640] sm:$0xff]
        %v956 = vld [vmem:[%s632 + $0x648] sm:$0xff]
        %v957 = vld [vmem:[%s632 + $0x650] sm:$0xff]
        %v958 = vld [vmem:[%s632 + $0x658] sm:$0xff]
        %v959 = vld [vmem:[%s632 + $0x660] sm:$0xff]
        %v960 = vld [vmem:[%s632 + $0x668] sm:$0xff]
        %v961 = vld [vmem:[%s632 + $0x670] sm:$0xff]
        %v962 = vld [vmem:[%s632 + $0x678] sm:$0xff]
        %v963 = vld [vmem:[%s632 + $0x680] sm:$0xff]
        %v964 = vld [vmem:[%s632 + $0x688] sm:$0xff]
        %v965 = vld [vmem:[%s632 + $0x690] sm:$0xff]
        %v966 = vld [vmem:[%s632 + $0x698] sm:$0xff]
        %v967 = vld [vmem:[%s632 + $0x6a0] sm:$0xff]
        %v968 = vld [vmem:[%s632 + $0x6a8] sm:$0xff]
        %v969 = vld [vmem:[%s632 + $0x6b0] sm:$0xff]
        %v970 = vld [vmem:[%s632 + $0x6b8] sm:$0xff]
        %v971 = vld [vmem:[%s632 + $0x6c0] sm:$0xff]
        %v972 = vld [vmem:[%s632 + $0x6c8] sm:$0xff]
        %v973 = vld [vmem:[%s632 + $0x6d0] sm:$0xff]
        %v974 = vld [vmem:[%s632 + $0x6d8] sm:$0xff]
        %v975 = vld [vmem:[%s632 + $0x6e0] sm:$0xff]
        %v976 = vld [vmem:[%s632 + $0x6e8] sm:$0xff]
        %v977 = vld [vmem:[%s632 + $0x6f0] sm:$0xff]
        %v978 = vld [vmem:[%s632 + $0x6f8] sm:$0xff]
        %v979 = vld [vmem:[%s632 + $0x700] sm:$0xff]
        %v980 = vld [vmem:[%s632 + $0x708] sm:$0xff]
        %v981 = vld [vmem:[%s632 + $0x710] sm:$0xff]
        %v982 = vld [vmem:[%s632 + $0x718] sm:$0xff]
        %v983 = vld [vmem:[%s632 + $0x720] sm:$0xff]
        %v984 = vld [vmem:[%s632 + $0x728] sm:$0xff]
        %v985 = vld [vmem:[%s632 + $0x730] sm:$0xff]
        %v986 = vld [vmem:[%s632 + $0x738] sm:$0xff]
        %v987 = vld [vmem:[%s632 + $0x740] sm:$0xff]
        %v988 = vld [vmem:[%s632 + $0x748] sm:$0xff]
        %v989 = vld [vmem:[%s632 + $0x750] sm:$0xff]
        %v990 = vld [vmem:[%s632 + $0x758] sm:$0xff]
        %v991 = vld [vmem:[%s632 + $0x760] sm:$0xff]
        %v992 = vld [vmem:[%s632 + $0x768] sm:$0xff]
        %v993 = vld [vmem:[%s632 + $0x770] sm:$0xff]
        %v994 = vld [vmem:[%s632 + $0x778] sm:$0xff]
        %v995 = vld [vmem:[%s632 + $0x780] sm:$0xff]
        %v996 = vld [vmem:[%s632 + $0x788] sm:$0xff]
        %v997 = vld [vmem:[%s632 + $0x790] sm:$0xff]
        %v998 = vld [vmem:[%s632 + $0x798] sm:$0xff]
        %v999 = vld [vmem:[%s632 + $0x7a0] sm:$0xff]
        %v1000 = vld [vmem:[%s632 + $0x7a8] sm:$0xff]
        %v1001 = vld [vmem:[%s632 + $0x7b0] sm:$0xff]
        %v1002 = vld [vmem:[%s632 + $0x7b8] sm:$0xff]
        %v1003 = vld [vmem:[%s632 + $0x7c0] sm:$0xff]
        %v1004 = vld [vmem:[%s632 + $0x7c8] sm:$0xff]
        %v1005 = vld [vmem:[%s632 + $0x7d0] sm:$0xff]
        %v1006 = vld [vmem:[%s632 + $0x7d8] sm:$0xff]
        %v1007 = vld [vmem:[%s632 + $0x7e0] sm:$0xff]
        %v1008 = vld [vmem:[%s632 + $0x7e8] sm:$0xff]
        %v1009 = vld [vmem:[%s632 + $0x7f0] sm:$0xff]
        %v1010 = vld [vmem:[%s632 + $0x7f8] sm:$0xff]
        %v1011 = vld [vmem:[%s657] sm:$0xff]
        %v1012 = vld [vmem:[%s657 + $0x8] sm:$0xff]
        %v1013 = vld [vmem:[%s657 + $0x10] sm:$0xff]
        %v1014 = vld [vmem:[%s657 + $0x18] sm:$0xff]
        %v1015 = vld [vmem:[%s657 + $0x20] sm:$0xff]
        %v1016 = vld [vmem:[%s657 + $0x28] sm:$0xff]
        %v1017 = vld [vmem:[%s657 + $0x30] sm:$0xff]
        %v1018 = vld [vmem:[%s657 + $0x38] sm:$0xff]
        %v1019 = vld [vmem:[%s657 + $0x40] sm:$0xff]
        %v1020 = vld [vmem:[%s657 + $0x48] sm:$0xff]
        %v1021 = vld [vmem:[%s657 + $0x50] sm:$0xff]
        %v1022 = vld [vmem:[%s657 + $0x58] sm:$0xff]
        %v1023 = vld [vmem:[%s657 + $0x60] sm:$0xff]
        %v1024 = vld [vmem:[%s657 + $0x68] sm:$0xff]
        %v1025 = vld [vmem:[%s657 + $0x70] sm:$0xff]
        %v1026 = vld [vmem:[%s657 + $0x78] sm:$0xff]
        %v1027 = vld [vmem:[%s657 + $0x80] sm:$0xff]
        %v1028 = vld [vmem:[%s657 + $0x88] sm:$0xff]
        %v1029 = vld [vmem:[%s657 + $0x90] sm:$0xff]
        %v1030 = vld [vmem:[%s657 + $0x98] sm:$0xff]
        %v1031 = vld [vmem:[%s657 + $0xa0] sm:$0xff]
        %v1032 = vld [vmem:[%s657 + $0xa8] sm:$0xff]
        %v1033 = vld [vmem:[%s657 + $0xb0] sm:$0xff]
        %v1034 = vld [vmem:[%s657 + $0xb8] sm:$0xff]
        %v1035 = vld [vmem:[%s657 + $0xc0] sm:$0xff]
        %v1036 = vld [vmem:[%s657 + $0xc8] sm:$0xff]
        %v1037 = vld [vmem:[%s657 + $0xd0] sm:$0xff]
        %v1038 = vld [vmem:[%s657 + $0xd8] sm:$0xff]
        %v1039 = vld [vmem:[%s657 + $0xe0] sm:$0xff]
        %v1040 = vld [vmem:[%s657 + $0xe8] sm:$0xff]
        %v1041 = vld [vmem:[%s657 + $0xf0] sm:$0xff]
        %v1042 = vld [vmem:[%s657 + $0xf8] sm:$0xff]
        %v1043 = vld [vmem:[%s657 + $0x100] sm:$0xff]
        %v1044 = vld [vmem:[%s657 + $0x108] sm:$0xff]
        %v1045 = vld [vmem:[%s657 + $0x110] sm:$0xff]
        %v1046 = vld [vmem:[%s657 + $0x118] sm:$0xff]
        %v1047 = vld [vmem:[%s657 + $0x120] sm:$0xff]
        %v1048 = vld [vmem:[%s657 + $0x128] sm:$0xff]
        %v1049 = vld [vmem:[%s657 + $0x130] sm:$0xff]
        %v1050 = vld [vmem:[%s657 + $0x138] sm:$0xff]
        %v1051 = vld [vmem:[%s657 + $0x140] sm:$0xff]
        %v1052 = vld [vmem:[%s657 + $0x148] sm:$0xff]
        %v1053 = vld [vmem:[%s657 + $0x150] sm:$0xff]
        %v1054 = vld [vmem:[%s657 + $0x158] sm:$0xff]
        %v1055 = vld [vmem:[%s657 + $0x160] sm:$0xff]
        %v1056 = vld [vmem:[%s657 + $0x168] sm:$0xff]
        %v1057 = vld [vmem:[%s657 + $0x170] sm:$0xff]
        %v1058 = vld [vmem:[%s657 + $0x178] sm:$0xff]
        %v1059 = vld [vmem:[%s657 + $0x180] sm:$0xff]
        %v1060 = vld [vmem:[%s657 + $0x188] sm:$0xff]
        %v1061 = vld [vmem:[%s657 + $0x190] sm:$0xff]
        %v1062 = vld [vmem:[%s657 + $0x198] sm:$0xff]
        %v1063 = vld [vmem:[%s657 + $0x1a0] sm:$0xff]
        %v1064 = vld [vmem:[%s657 + $0x1a8] sm:$0xff]
        %v1065 = vld [vmem:[%s657 + $0x1b0] sm:$0xff]
        %v1066 = vld [vmem:[%s657 + $0x1b8] sm:$0xff]
        %v1067 = vld [vmem:[%s657 + $0x1c0] sm:$0xff]
        %v1068 = vld [vmem:[%s657 + $0x1c8] sm:$0xff]
        %v1069 = vld [vmem:[%s657 + $0x1d0] sm:$0xff]
        %v1070 = vld [vmem:[%s657 + $0x1d8] sm:$0xff]
        %v1071 = vld [vmem:[%s657 + $0x1e0] sm:$0xff]
        %v1072 = vld [vmem:[%s657 + $0x1e8] sm:$0xff]
        %v1073 = vld [vmem:[%s657 + $0x1f0] sm:$0xff]
        %v1074 = vld [vmem:[%s657 + $0x1f8] sm:$0xff]
        %v1075 = vld [vmem:[%s657 + $0x200] sm:$0xff]
        %v1076 = vld [vmem:[%s657 + $0x208] sm:$0xff]
        %v1077 = vld [vmem:[%s657 + $0x210] sm:$0xff]
        %v1078 = vld [vmem:[%s657 + $0x218] sm:$0xff]
        %v1079 = vld [vmem:[%s657 + $0x220] sm:$0xff]
        %v1080 = vld [vmem:[%s657 + $0x228] sm:$0xff]
        %v1081 = vld [vmem:[%s657 + $0x230] sm:$0xff]
        %v1082 = vld [vmem:[%s657 + $0x238] sm:$0xff]
        %v1083 = vld [vmem:[%s657 + $0x240] sm:$0xff]
        %v1084 = vld [vmem:[%s657 + $0x248] sm:$0xff]
        %v1085 = vld [vmem:[%s657 + $0x250] sm:$0xff]
        %v1086 = vld [vmem:[%s657 + $0x258] sm:$0xff]
        %v1087 = vld [vmem:[%s657 + $0x260] sm:$0xff]
        %v1088 = vld [vmem:[%s657 + $0x268] sm:$0xff]
        %v1089 = vld [vmem:[%s657 + $0x270] sm:$0xff]
        %v1090 = vld [vmem:[%s657 + $0x278] sm:$0xff]
        %v1091 = vld [vmem:[%s657 + $0x280] sm:$0xff]
        %v1092 = vld [vmem:[%s657 + $0x288] sm:$0xff]
        %v1093 = vld [vmem:[%s657 + $0x290] sm:$0xff]
        %v1094 = vld [vmem:[%s657 + $0x298] sm:$0xff]
        %v1095 = vld [vmem:[%s657 + $0x2a0] sm:$0xff]
        %v1096 = vld [vmem:[%s657 + $0x2a8] sm:$0xff]
        %v1097 = vld [vmem:[%s657 + $0x2b0] sm:$0xff]
        %v1098 = vld [vmem:[%s657 + $0x2b8] sm:$0xff]
        %v1099 = vld [vmem:[%s657 + $0x2c0] sm:$0xff]
        %v1100 = vld [vmem:[%s657 + $0x2c8] sm:$0xff]
        %v1101 = vld [vmem:[%s657 + $0x2d0] sm:$0xff]
        %v1102 = vld [vmem:[%s657 + $0x2d8] sm:$0xff]
        %v1103 = vld [vmem:[%s657 + $0x2e0] sm:$0xff]
        %v1104 = vld [vmem:[%s657 + $0x2e8] sm:$0xff]
        %v1105 = vld [vmem:[%s657 + $0x2f0] sm:$0xff]
        %v1106 = vld [vmem:[%s657 + $0x2f8] sm:$0xff]
        %v1107 = vld [vmem:[%s657 + $0x300] sm:$0xff]
        %v1108 = vld [vmem:[%s657 + $0x308] sm:$0xff]
        %v1109 = vld [vmem:[%s657 + $0x310] sm:$0xff]
        %v1110 = vld [vmem:[%s657 + $0x318] sm:$0xff]
        %v1111 = vld [vmem:[%s657 + $0x320] sm:$0xff]
        %v1112 = vld [vmem:[%s657 + $0x328] sm:$0xff]
        %v1113 = vld [vmem:[%s657 + $0x330] sm:$0xff]
        %v1114 = vld [vmem:[%s657 + $0x338] sm:$0xff]
        %v1115 = vld [vmem:[%s657 + $0x340] sm:$0xff]
        %v1116 = vld [vmem:[%s657 + $0x348] sm:$0xff]
        %v1117 = vld [vmem:[%s657 + $0x350] sm:$0xff]
        %v1118 = vld [vmem:[%s657 + $0x358] sm:$0xff]
        %v1119 = vld [vmem:[%s657 + $0x360] sm:$0xff]
        %v1120 = vld [vmem:[%s657 + $0x368] sm:$0xff]
        %v1121 = vld [vmem:[%s657 + $0x370] sm:$0xff]
        %v1122 = vld [vmem:[%s657 + $0x378] sm:$0xff]
        %v1123 = vld [vmem:[%s657 + $0x380] sm:$0xff]
        %v1124 = vld [vmem:[%s657 + $0x388] sm:$0xff]
        %v1125 = vld [vmem:[%s657 + $0x390] sm:$0xff]
        %v1126 = vld [vmem:[%s657 + $0x398] sm:$0xff]
        %v1127 = vld [vmem:[%s657 + $0x3a0] sm:$0xff]
        %v1128 = vld [vmem:[%s657 + $0x3a8] sm:$0xff]
        %v1129 = vld [vmem:[%s657 + $0x3b0] sm:$0xff]
        %v1130 = vld [vmem:[%s657 + $0x3b8] sm:$0xff]
        %v1131 = vld [vmem:[%s657 + $0x3c0] sm:$0xff]
        %v1132 = vld [vmem:[%s657 + $0x3c8] sm:$0xff]
        %v1133 = vld [vmem:[%s657 + $0x3d0] sm:$0xff]
        %v1134 = vld [vmem:[%s657 + $0x3d8] sm:$0xff]
        %v1135 = vld [vmem:[%s657 + $0x3e0] sm:$0xff]
        %v1136 = vld [vmem:[%s657 + $0x3e8] sm:$0xff]
        %v1137 = vld [vmem:[%s657 + $0x3f0] sm:$0xff]
        %v1138 = vld [vmem:[%s657 + $0x3f8] sm:$0xff]
        %v1139 = vld [vmem:[%s657 + $0x400] sm:$0xff]
        %v1140 = vld [vmem:[%s657 + $0x408] sm:$0xff]
        %v1141 = vld [vmem:[%s657 + $0x410] sm:$0xff]
        %v1142 = vld [vmem:[%s657 + $0x418] sm:$0xff]
        %v1143 = vld [vmem:[%s657 + $0x420] sm:$0xff]
        %v1144 = vld [vmem:[%s657 + $0x428] sm:$0xff]
        %v1145 = vld [vmem:[%s657 + $0x430] sm:$0xff]
        %v1146 = vld [vmem:[%s657 + $0x438] sm:$0xff]
        %v1147 = vld [vmem:[%s657 + $0x440] sm:$0xff]
        %v1148 = vld [vmem:[%s657 + $0x448] sm:$0xff]
        %v1149 = vld [vmem:[%s657 + $0x450] sm:$0xff]
        %v1150 = vld [vmem:[%s657 + $0x458] sm:$0xff]
        %v1151 = vld [vmem:[%s657 + $0x460] sm:$0xff]
        %v1152 = vld [vmem:[%s657 + $0x468] sm:$0xff]
        %v1153 = vld [vmem:[%s657 + $0x470] sm:$0xff]
        %v1154 = vld [vmem:[%s657 + $0x478] sm:$0xff]
        %v1155 = vld [vmem:[%s657 + $0x480] sm:$0xff]
        %v1156 = vld [vmem:[%s657 + $0x488] sm:$0xff]
        %v1157 = vld [vmem:[%s657 + $0x490] sm:$0xff]
        %v1158 = vld [vmem:[%s657 + $0x498] sm:$0xff]
        %v1159 = vld [vmem:[%s657 + $0x4a0] sm:$0xff]
        %v1160 = vld [vmem:[%s657 + $0x4a8] sm:$0xff]
        %v1161 = vld [vmem:[%s657 + $0x4b0] sm:$0xff]
        %v1162 = vld [vmem:[%s657 + $0x4b8] sm:$0xff]
        %v1163 = vld [vmem:[%s657 + $0x4c0] sm:$0xff]
        %v1164 = vld [vmem:[%s657 + $0x4c8] sm:$0xff]
        %v1165 = vld [vmem:[%s657 + $0x4d0] sm:$0xff]
        %v1166 = vld [vmem:[%s657 + $0x4d8] sm:$0xff]
        %v1167 = vld [vmem:[%s657 + $0x4e0] sm:$0xff]
        %v1168 = vld [vmem:[%s657 + $0x4e8] sm:$0xff]
        %v1169 = vld [vmem:[%s657 + $0x4f0] sm:$0xff]
        %v1170 = vld [vmem:[%s657 + $0x4f8] sm:$0xff]
        %v1171 = vld [vmem:[%s657 + $0x500] sm:$0xff]
        %v1172 = vld [vmem:[%s657 + $0x508] sm:$0xff]
        %v1173 = vld [vmem:[%s657 + $0x510] sm:$0xff]
        %v1174 = vld [vmem:[%s657 + $0x518] sm:$0xff]
        %v1175 = vld [vmem:[%s657 + $0x520] sm:$0xff]
        %v1176 = vld [vmem:[%s657 + $0x528] sm:$0xff]
        %v1177 = vld [vmem:[%s657 + $0x530] sm:$0xff]
        %v1178 = vld [vmem:[%s657 + $0x538] sm:$0xff]
        %v1179 = vld [vmem:[%s657 + $0x540] sm:$0xff]
        %v1180 = vld [vmem:[%s657 + $0x548] sm:$0xff]
        %v1181 = vld [vmem:[%s657 + $0x550] sm:$0xff]
        %v1182 = vld [vmem:[%s657 + $0x558] sm:$0xff]
        %v1183 = vld [vmem:[%s657 + $0x560] sm:$0xff]
        %v1184 = vld [vmem:[%s657 + $0x568] sm:$0xff]
        %v1185 = vld [vmem:[%s657 + $0x570] sm:$0xff]
        %v1186 = vld [vmem:[%s657 + $0x578] sm:$0xff]
        %v1187 = vld [vmem:[%s657 + $0x580] sm:$0xff]
        %v1188 = vld [vmem:[%s657 + $0x588] sm:$0xff]
        %v1189 = vld [vmem:[%s657 + $0x590] sm:$0xff]
        %v1190 = vld [vmem:[%s657 + $0x598] sm:$0xff]
        %v1191 = vld [vmem:[%s657 + $0x5a0] sm:$0xff]
        %v1192 = vld [vmem:[%s657 + $0x5a8] sm:$0xff]
        %v1193 = vld [vmem:[%s657 + $0x5b0] sm:$0xff]
        %v1194 = vld [vmem:[%s657 + $0x5b8] sm:$0xff]
        %v1195 = vld [vmem:[%s657 + $0x5c0] sm:$0xff]
        %v1196 = vld [vmem:[%s657 + $0x5c8] sm:$0xff]
        %v1197 = vld [vmem:[%s657 + $0x5d0] sm:$0xff]
        %v1198 = vld [vmem:[%s657 + $0x5d8] sm:$0xff]
        %v1199 = vld [vmem:[%s657 + $0x5e0] sm:$0xff]
        %v1200 = vld [vmem:[%s657 + $0x5e8] sm:$0xff]
        %v1201 = vld [vmem:[%s657 + $0x5f0] sm:$0xff]
        %v1202 = vld [vmem:[%s657 + $0x5f8] sm:$0xff]
        %v1203 = vld [vmem:[%s657 + $0x600] sm:$0xff]
        %v1204 = vld [vmem:[%s657 + $0x608] sm:$0xff]
        %v1205 = vld [vmem:[%s657 + $0x610] sm:$0xff]
        %v1206 = vld [vmem:[%s657 + $0x618] sm:$0xff]
        %v1207 = vld [vmem:[%s657 + $0x620] sm:$0xff]
        %v1208 = vld [vmem:[%s657 + $0x628] sm:$0xff]
        %v1209 = vld [vmem:[%s657 + $0x630] sm:$0xff]
        %v1210 = vld [vmem:[%s657 + $0x638] sm:$0xff]
        %v1211 = vld [vmem:[%s657 + $0x640] sm:$0xff]
        %v1212 = vld [vmem:[%s657 + $0x648] sm:$0xff]
        %v1213 = vld [vmem:[%s657 + $0x650] sm:$0xff]
        %v1214 = vld [vmem:[%s657 + $0x658] sm:$0xff]
        %v1215 = vld [vmem:[%s657 + $0x660] sm:$0xff]
        %v1216 = vld [vmem:[%s657 + $0x668] sm:$0xff]
        %v1217 = vld [vmem:[%s657 + $0x670] sm:$0xff]
        %v1218 = vld [vmem:[%s657 + $0x678] sm:$0xff]
        %v1219 = vld [vmem:[%s657 + $0x680] sm:$0xff]
        %v1220 = vld [vmem:[%s657 + $0x688] sm:$0xff]
        %v1221 = vld [vmem:[%s657 + $0x690] sm:$0xff]
        %v1222 = vld [vmem:[%s657 + $0x698] sm:$0xff]
        %v1223 = vld [vmem:[%s657 + $0x6a0] sm:$0xff]
        %v1224 = vld [vmem:[%s657 + $0x6a8] sm:$0xff]
        %v1225 = vld [vmem:[%s657 + $0x6b0] sm:$0xff]
        %v1226 = vld [vmem:[%s657 + $0x6b8] sm:$0xff]
        %v1227 = vld [vmem:[%s657 + $0x6c0] sm:$0xff]
        %v1228 = vld [vmem:[%s657 + $0x6c8] sm:$0xff]
        %v1229 = vld [vmem:[%s657 + $0x6d0] sm:$0xff]
        %v1230 = vld [vmem:[%s657 + $0x6d8] sm:$0xff]
        %v1231 = vld [vmem:[%s657 + $0x6e0] sm:$0xff]
        %v1232 = vld [vmem:[%s657 + $0x6e8] sm:$0xff]
        %v1233 = vld [vmem:[%s657 + $0x6f0] sm:$0xff]
        %v1234 = vld [vmem:[%s657 + $0x6f8] sm:$0xff]
        %v1235 = vld [vmem:[%s657 + $0x700] sm:$0xff]
        %v1236 = vld [vmem:[%s657 + $0x708] sm:$0xff]
        %v1237 = vld [vmem:[%s657 + $0x710] sm:$0xff]
        %v1238 = vld [vmem:[%s657 + $0x718] sm:$0xff]
        %v1239 = vld [vmem:[%s657 + $0x720] sm:$0xff]
        %v1240 = vld [vmem:[%s657 + $0x728] sm:$0xff]
        %v1241 = vld [vmem:[%s657 + $0x730] sm:$0xff]
        %v1242 = vld [vmem:[%s657 + $0x738] sm:$0xff]
        %v1243 = vld [vmem:[%s657 + $0x740] sm:$0xff]
        %v1244 = vld [vmem:[%s657 + $0x748] sm:$0xff]
        %v1245 = vld [vmem:[%s657 + $0x750] sm:$0xff]
        %v1246 = vld [vmem:[%s657 + $0x758] sm:$0xff]
        %v1247 = vld [vmem:[%s657 + $0x760] sm:$0xff]
        %v1248 = vld [vmem:[%s657 + $0x768] sm:$0xff]
        %v1249 = vld [vmem:[%s657 + $0x770] sm:$0xff]
        %v1250 = vld [vmem:[%s657 + $0x778] sm:$0xff]
        %v1251 = vld [vmem:[%s657 + $0x780] sm:$0xff]
        %v1252 = vld [vmem:[%s657 + $0x788] sm:$0xff]
        %v1253 = vld [vmem:[%s657 + $0x790] sm:$0xff]
        %v1254 = vld [vmem:[%s657 + $0x798] sm:$0xff]
        %v1255 = vld [vmem:[%s657 + $0x7a0] sm:$0xff]
        %v1256 = vld [vmem:[%s657 + $0x7a8] sm:$0xff]
        %v1257 = vld [vmem:[%s657 + $0x7b0] sm:$0xff]
        %v1258 = vld [vmem:[%s657 + $0x7b8] sm:$0xff]
        %v1259 = vld [vmem:[%s657 + $0x7c0] sm:$0xff]
        %v1260 = vld [vmem:[%s657 + $0x7c8] sm:$0xff]
        %v1261 = vld [vmem:[%s657 + $0x7d0] sm:$0xff]
        %v1262 = vld [vmem:[%s657 + $0x7d8] sm:$0xff]
        %v1263 = vld [vmem:[%s657 + $0x7e0] sm:$0xff]
        %v1264 = vld [vmem:[%s657 + $0x7e8] sm:$0xff]
        %v1265 = vld [vmem:[%s657 + $0x7f0] sm:$0xff]
        %v1266 = vld [vmem:[%s657 + $0x7f8] sm:$0xff]
        %v1267 = vstv %s742
        %v1268 = vmul.f32 %v1011, %v1267
        %v1269 = vmul.f32 %v1012, %v1267
        %v1270 = vmul.f32 %v1013, %v1267
        %v1271 = vmul.f32 %v1014, %v1267
        %v1272 = vmul.f32 %v1015, %v1267
        %v1273 = vmul.f32 %v1016, %v1267
        %v1274 = vmul.f32 %v1017, %v1267
        %v1275 = vmul.f32 %v1018, %v1267
        %v1276 = vmul.f32 %v1019, %v1267
        %v1277 = vmul.f32 %v1020, %v1267
        %v1278 = vmul.f32 %v1021, %v1267
        %v1279 = vmul.f32 %v1022, %v1267
        %v1280 = vmul.f32 %v1023, %v1267
        %v1281 = vmul.f32 %v1024, %v1267
        %v1282 = vmul.f32 %v1025, %v1267
        %v1283 = vmul.f32 %v1026, %v1267
        %v1284 = vmul.f32 %v1027, %v1267
        %v1285 = vmul.f32 %v1028, %v1267
        %v1286 = vmul.f32 %v1029, %v1267
        %v1287 = vmul.f32 %v1030, %v1267
        %v1288 = vmul.f32 %v1031, %v1267
        %v1289 = vmul.f32 %v1032, %v1267
        %v1290 = vmul.f32 %v1033, %v1267
        %v1291 = vmul.f32 %v1034, %v1267
        %v1292 = vmul.f32 %v1035, %v1267
        %v1293 = vmul.f32 %v1036, %v1267
        %v1294 = vmul.f32 %v1037, %v1267
        %v1295 = vmul.f32 %v1038, %v1267
        %v1296 = vmul.f32 %v1039, %v1267
        %v1297 = vmul.f32 %v1040, %v1267
        %v1298 = vmul.f32 %v1041, %v1267
        %v1299 = vmul.f32 %v1042, %v1267
        %v1300 = vmul.f32 %v1043, %v1267
        %v1301 = vmul.f32 %v1044, %v1267
        %v1302 = vmul.f32 %v1045, %v1267
        %v1303 = vmul.f32 %v1046, %v1267
        %v1304 = vmul.f32 %v1047, %v1267
        %v1305 = vmul.f32 %v1048, %v1267
        %v1306 = vmul.f32 %v1049, %v1267
        %v1307 = vmul.f32 %v1050, %v1267
        %v1308 = vmul.f32 %v1051, %v1267
        %v1309 = vmul.f32 %v1052, %v1267
        %v1310 = vmul.f32 %v1053, %v1267
        %v1311 = vmul.f32 %v1054, %v1267
        %v1312 = vmul.f32 %v1055, %v1267
        %v1313 = vmul.f32 %v1056, %v1267
        %v1314 = vmul.f32 %v1057, %v1267
        %v1315 = vmul.f32 %v1058, %v1267
        %v1316 = vmul.f32 %v1059, %v1267
        %v1317 = vmul.f32 %v1060, %v1267
        %v1318 = vmul.f32 %v1061, %v1267
        %v1319 = vmul.f32 %v1062, %v1267
        %v1320 = vmul.f32 %v1063, %v1267
        %v1321 = vmul.f32 %v1064, %v1267
        %v1322 = vmul.f32 %v1065, %v1267
        %v1323 = vmul.f32 %v1066, %v1267
        %v1324 = vmul.f32 %v1067, %v1267
        %v1325 = vmul.f32 %v1068, %v1267
        %v1326 = vmul.f32 %v1069, %v1267
        %v1327 = vmul.f32 %v1070, %v1267
        %v1328 = vmul.f32 %v1071, %v1267
        %v1329 = vmul.f32 %v1072, %v1267
        %v1330 = vmul.f32 %v1073, %v1267
        %v1331 = vmul.f32 %v1074, %v1267
        %v1332 = vmul.f32 %v1075, %v1267
        %v1333 = vmul.f32 %v1076, %v1267
        %v1334 = vmul.f32 %v1077, %v1267
        %v1335 = vmul.f32 %v1078, %v1267
        %v1336 = vmul.f32 %v1079, %v1267
        %v1337 = vmul.f32 %v1080, %v1267
        %v1338 = vmul.f32 %v1081, %v1267
        %v1339 = vmul.f32 %v1082, %v1267
        %v1340 = vmul.f32 %v1083, %v1267
        %v1341 = vmul.f32 %v1084, %v1267
        %v1342 = vmul.f32 %v1085, %v1267
        %v1343 = vmul.f32 %v1086, %v1267
        %v1344 = vmul.f32 %v1087, %v1267
        %v1345 = vmul.f32 %v1088, %v1267
        %v1346 = vmul.f32 %v1089, %v1267
        %v1347 = vmul.f32 %v1090, %v1267
        %v1348 = vmul.f32 %v1091, %v1267
        %v1349 = vmul.f32 %v1092, %v1267
        %v1350 = vmul.f32 %v1093, %v1267
        %v1351 = vmul.f32 %v1094, %v1267
        %v1352 = vmul.f32 %v1095, %v1267
        %v1353 = vmul.f32 %v1096, %v1267
        %v1354 = vmul.f32 %v1097, %v1267
        %v1355 = vmul.f32 %v1098, %v1267
        %v1356 = vmul.f32 %v1099, %v1267
        %v1357 = vmul.f32 %v1100, %v1267
        %v1358 = vmul.f32 %v1101, %v1267
        %v1359 = vmul.f32 %v1102, %v1267
        %v1360 = vmul.f32 %v1103, %v1267
        %v1361 = vmul.f32 %v1104, %v1267
        %v1362 = vmul.f32 %v1105, %v1267
        %v1363 = vmul.f32 %v1106, %v1267
        %v1364 = vmul.f32 %v1107, %v1267
        %v1365 = vmul.f32 %v1108, %v1267
        %v1366 = vmul.f32 %v1109, %v1267
        %v1367 = vmul.f32 %v1110, %v1267
        %v1368 = vmul.f32 %v1111, %v1267
        %v1369 = vmul.f32 %v1112, %v1267
        %v1370 = vmul.f32 %v1113, %v1267
        %v1371 = vmul.f32 %v1114, %v1267
        %v1372 = vmul.f32 %v1115, %v1267
        %v1373 = vmul.f32 %v1116, %v1267
        %v1374 = vmul.f32 %v1117, %v1267
        %v1375 = vmul.f32 %v1118, %v1267
        %v1376 = vmul.f32 %v1119, %v1267
        %v1377 = vmul.f32 %v1120, %v1267
        %v1378 = vmul.f32 %v1121, %v1267
        %v1379 = vmul.f32 %v1122, %v1267
        %v1380 = vmul.f32 %v1123, %v1267
        %v1381 = vmul.f32 %v1124, %v1267
        %v1382 = vmul.f32 %v1125, %v1267
        %v1383 = vmul.f32 %v1126, %v1267
        %v1384 = vmul.f32 %v1127, %v1267
        %v1385 = vmul.f32 %v1128, %v1267
        %v1386 = vmul.f32 %v1129, %v1267
        %v1387 = vmul.f32 %v1130, %v1267
        %v1388 = vmul.f32 %v1131, %v1267
        %v1389 = vmul.f32 %v1132, %v1267
        %v1390 = vmul.f32 %v1133, %v1267
        %v1391 = vmul.f32 %v1134, %v1267
        %v1392 = vmul.f32 %v1135, %v1267
        %v1393 = vmul.f32 %v1136, %v1267
        %v1394 = vmul.f32 %v1137, %v1267
        %v1395 = vmul.f32 %v1138, %v1267
        %v1396 = vmul.f32 %v1139, %v1267
        %v1397 = vmul.f32 %v1140, %v1267
        %v1398 = vmul.f32 %v1141, %v1267
        %v1399 = vmul.f32 %v1142, %v1267
        %v1400 = vmul.f32 %v1143, %v1267
        %v1401 = vmul.f32 %v1144, %v1267
        %v1402 = vmul.f32 %v1145, %v1267
        %v1403 = vmul.f32 %v1146, %v1267
        %v1404 = vmul.f32 %v1147, %v1267
        %v1405 = vmul.f32 %v1148, %v1267
        %v1406 = vmul.f32 %v1149, %v1267
        %v1407 = vmul.f32 %v1150, %v1267
        %v1408 = vmul.f32 %v1151, %v1267
        %v1409 = vmul.f32 %v1152, %v1267
        %v1410 = vmul.f32 %v1153, %v1267
        %v1411 = vmul.f32 %v1154, %v1267
        %v1412 = vmul.f32 %v1155, %v1267
        %v1413 = vmul.f32 %v1156, %v1267
        %v1414 = vmul.f32 %v1157, %v1267
        %v1415 = vmul.f32 %v1158, %v1267
        %v1416 = vmul.f32 %v1159, %v1267
        %v1417 = vmul.f32 %v1160, %v1267
        %v1418 = vmul.f32 %v1161, %v1267
        %v1419 = vmul.f32 %v1162, %v1267
        %v1420 = vmul.f32 %v1163, %v1267
        %v1421 = vmul.f32 %v1164, %v1267
        %v1422 = vmul.f32 %v1165, %v1267
        %v1423 = vmul.f32 %v1166, %v1267
        %v1424 = vmul.f32 %v1167, %v1267
        %v1425 = vmul.f32 %v1168, %v1267
        %v1426 = vmul.f32 %v1169, %v1267
        %v1427 = vmul.f32 %v1170, %v1267
        %v1428 = vmul.f32 %v1171, %v1267
        %v1429 = vmul.f32 %v1172, %v1267
        %v1430 = vmul.f32 %v1173, %v1267
        %v1431 = vmul.f32 %v1174, %v1267
        %v1432 = vmul.f32 %v1175, %v1267
        %v1433 = vmul.f32 %v1176, %v1267
        %v1434 = vmul.f32 %v1177, %v1267
        %v1435 = vmul.f32 %v1178, %v1267
        %v1436 = vmul.f32 %v1179, %v1267
        %v1437 = vmul.f32 %v1180, %v1267
        %v1438 = vmul.f32 %v1181, %v1267
        %v1439 = vmul.f32 %v1182, %v1267
        %v1440 = vmul.f32 %v1183, %v1267
        %v1441 = vmul.f32 %v1184, %v1267
        %v1442 = vmul.f32 %v1185, %v1267
        %v1443 = vmul.f32 %v1186, %v1267
        %v1444 = vmul.f32 %v1187, %v1267
        %v1445 = vmul.f32 %v1188, %v1267
        %v1446 = vmul.f32 %v1189, %v1267
        %v1447 = vmul.f32 %v1190, %v1267
        %v1448 = vmul.f32 %v1191, %v1267
        %v1449 = vmul.f32 %v1192, %v1267
        %v1450 = vmul.f32 %v1193, %v1267
        %v1451 = vmul.f32 %v1194, %v1267
        %v1452 = vmul.f32 %v1195, %v1267
        %v1453 = vmul.f32 %v1196, %v1267
        %v1454 = vmul.f32 %v1197, %v1267
        %v1455 = vmul.f32 %v1198, %v1267
        %v1456 = vmul.f32 %v1199, %v1267
        %v1457 = vmul.f32 %v1200, %v1267
        %v1458 = vmul.f32 %v1201, %v1267
        %v1459 = vmul.f32 %v1202, %v1267
        %v1460 = vmul.f32 %v1203, %v1267
        %v1461 = vmul.f32 %v1204, %v1267
        %v1462 = vmul.f32 %v1205, %v1267
        %v1463 = vmul.f32 %v1206, %v1267
        %v1464 = vmul.f32 %v1207, %v1267
        %v1465 = vmul.f32 %v1208, %v1267
        %v1466 = vmul.f32 %v1209, %v1267
        %v1467 = vmul.f32 %v1210, %v1267
        %v1468 = vmul.f32 %v1211, %v1267
        %v1469 = vmul.f32 %v1212, %v1267
        %v1470 = vmul.f32 %v1213, %v1267
        %v1471 = vmul.f32 %v1214, %v1267
        %v1472 = vmul.f32 %v1215, %v1267
        %v1473 = vmul.f32 %v1216, %v1267
        %v1474 = vmul.f32 %v1217, %v1267
        %v1475 = vmul.f32 %v1218, %v1267
        %v1476 = vmul.f32 %v1219, %v1267
        %v1477 = vmul.f32 %v1220, %v1267
        %v1478 = vmul.f32 %v1221, %v1267
        %v1479 = vmul.f32 %v1222, %v1267
        %v1480 = vmul.f32 %v1223, %v1267
        %v1481 = vmul.f32 %v1224, %v1267
        %v1482 = vmul.f32 %v1225, %v1267
        %v1483 = vmul.f32 %v1226, %v1267
        %v1484 = vmul.f32 %v1227, %v1267
        %v1485 = vmul.f32 %v1228, %v1267
        %v1486 = vmul.f32 %v1229, %v1267
        %v1487 = vmul.f32 %v1230, %v1267
        %v1488 = vmul.f32 %v1231, %v1267
        %v1489 = vmul.f32 %v1232, %v1267
        %v1490 = vmul.f32 %v1233, %v1267
        %v1491 = vmul.f32 %v1234, %v1267
        %v1492 = vmul.f32 %v1235, %v1267
        %v1493 = vmul.f32 %v1236, %v1267
        %v1494 = vmul.f32 %v1237, %v1267
        %v1495 = vmul.f32 %v1238, %v1267
        %v1496 = vmul.f32 %v1239, %v1267
        %v1497 = vmul.f32 %v1240, %v1267
        %v1498 = vmul.f32 %v1241, %v1267
        %v1499 = vmul.f32 %v1242, %v1267
        %v1500 = vmul.f32 %v1243, %v1267
        %v1501 = vmul.f32 %v1244, %v1267
        %v1502 = vmul.f32 %v1245, %v1267
        %v1503 = vmul.f32 %v1246, %v1267
        %v1504 = vmul.f32 %v1247, %v1267
        %v1505 = vmul.f32 %v1248, %v1267
        %v1506 = vmul.f32 %v1249, %v1267
        %v1507 = vmul.f32 %v1250, %v1267
        %v1508 = vmul.f32 %v1251, %v1267
        %v1509 = vmul.f32 %v1252, %v1267
        %v1510 = vmul.f32 %v1253, %v1267
        %v1511 = vmul.f32 %v1254, %v1267
        %v1512 = vmul.f32 %v1255, %v1267
        %v1513 = vmul.f32 %v1256, %v1267
        %v1514 = vmul.f32 %v1257, %v1267
        %v1515 = vmul.f32 %v1258, %v1267
        %v1516 = vmul.f32 %v1259, %v1267
        %v1517 = vmul.f32 %v1260, %v1267
        %v1518 = vmul.f32 %v1261, %v1267
        %v1519 = vmul.f32 %v1262, %v1267
        %v1520 = vmul.f32 %v1263, %v1267
        %v1521 = vmul.f32 %v1264, %v1267
        %v1522 = vmul.f32 %v1265, %v1267
        %v1523 = vmul.f32 %v1266, %v1267
        %s1524 = ssub.f32 1.0, %s742
        %v1525 = vstv %s1524
        %v1526 = vmul.f32 %v755, %v1525
        %v1527 = vmul.f32 %v756, %v1525
        %v1528 = vmul.f32 %v757, %v1525
        %v1529 = vmul.f32 %v758, %v1525
        %v1530 = vmul.f32 %v759, %v1525
        %v1531 = vmul.f32 %v760, %v1525
        %v1532 = vmul.f32 %v761, %v1525
        %v1533 = vmul.f32 %v762, %v1525
        %v1534 = vmul.f32 %v763, %v1525
        %v1535 = vmul.f32 %v764, %v1525
        %v1536 = vmul.f32 %v765, %v1525
        %v1537 = vmul.f32 %v766, %v1525
        %v1538 = vmul.f32 %v767, %v1525
        %v1539 = vmul.f32 %v768, %v1525
        %v1540 = vmul.f32 %v769, %v1525
        %v1541 = vmul.f32 %v770, %v1525
        %v1542 = vmul.f32 %v771, %v1525
        %v1543 = vmul.f32 %v772, %v1525
        %v1544 = vmul.f32 %v773, %v1525
        %v1545 = vmul.f32 %v774, %v1525
        %v1546 = vmul.f32 %v775, %v1525
        %v1547 = vmul.f32 %v776, %v1525
        %v1548 = vmul.f32 %v777, %v1525
        %v1549 = vmul.f32 %v778, %v1525
        %v1550 = vmul.f32 %v779, %v1525
        %v1551 = vmul.f32 %v780, %v1525
        %v1552 = vmul.f32 %v781, %v1525
        %v1553 = vmul.f32 %v782, %v1525
        %v1554 = vmul.f32 %v783, %v1525
        %v1555 = vmul.f32 %v784, %v1525
        %v1556 = vmul.f32 %v785, %v1525
        %v1557 = vmul.f32 %v786, %v1525
        %v1558 = vmul.f32 %v787, %v1525
        %v1559 = vmul.f32 %v788, %v1525
        %v1560 = vmul.f32 %v789, %v1525
        %v1561 = vmul.f32 %v790, %v1525
        %v1562 = vmul.f32 %v791, %v1525
        %v1563 = vmul.f32 %v792, %v1525
        %v1564 = vmul.f32 %v793, %v1525
        %v1565 = vmul.f32 %v794, %v1525
        %v1566 = vmul.f32 %v795, %v1525
        %v1567 = vmul.f32 %v796, %v1525
        %v1568 = vmul.f32 %v797, %v1525
        %v1569 = vmul.f32 %v798, %v1525
        %v1570 = vmul.f32 %v799, %v1525
        %v1571 = vmul.f32 %v800, %v1525
        %v1572 = vmul.f32 %v801, %v1525
        %v1573 = vmul.f32 %v802, %v1525
        %v1574 = vmul.f32 %v803, %v1525
        %v1575 = vmul.f32 %v804, %v1525
        %v1576 = vmul.f32 %v805, %v1525
        %v1577 = vmul.f32 %v806, %v1525
        %v1578 = vmul.f32 %v807, %v1525
        %v1579 = vmul.f32 %v808, %v1525
        %v1580 = vmul.f32 %v809, %v1525
        %v1581 = vmul.f32 %v810, %v1525
        %v1582 = vmul.f32 %v811, %v1525
        %v1583 = vmul.f32 %v812, %v1525
        %v1584 = vmul.f32 %v813, %v1525
        %v1585 = vmul.f32 %v814, %v1525
        %v1586 = vmul.f32 %v815, %v1525
        %v1587 = vmul.f32 %v816, %v1525
        %v1588 = vmul.f32 %v817, %v1525
        %v1589 = vmul.f32 %v818, %v1525
        %v1590 = vmul.f32 %v819, %v1525
        %v1591 = vmul.f32 %v820, %v1525
        %v1592 = vmul.f32 %v821, %v1525
        %v1593 = vmul.f32 %v822, %v1525
        %v1594 = vmul.f32 %v823, %v1525
        %v1595 = vmul.f32 %v824, %v1525
        %v1596 = vmul.f32 %v825, %v1525
        %v1597 = vmul.f32 %v826, %v1525
        %v1598 = vmul.f32 %v827, %v1525
        %v1599 = vmul.f32 %v828, %v1525
        %v1600 = vmul.f32 %v829, %v1525
        %v1601 = vmul.f32 %v830, %v1525
        %v1602 = vmul.f32 %v831, %v1525
        %v1603 = vmul.f32 %v832, %v1525
        %v1604 = vmul.f32 %v833, %v1525
        %v1605 = vmul.f32 %v834, %v1525
        %v1606 = vmul.f32 %v835, %v1525
        %v1607 = vmul.f32 %v836, %v1525
        %v1608 = vmul.f32 %v837, %v1525
        %v1609 = vmul.f32 %v838, %v1525
        %v1610 = vmul.f32 %v839, %v1525
        %v1611 = vmul.f32 %v840, %v1525
        %v1612 = vmul.f32 %v841, %v1525
        %v1613 = vmul.f32 %v842, %v1525
        %v1614 = vmul.f32 %v843, %v1525
        %v1615 = vmul.f32 %v844, %v1525
        %v1616 = vmul.f32 %v845, %v1525
        %v1617 = vmul.f32 %v846, %v1525
        %v1618 = vmul.f32 %v847, %v1525
        %v1619 = vmul.f32 %v848, %v1525
        %v1620 = vmul.f32 %v849, %v1525
        %v1621 = vmul.f32 %v850, %v1525
        %v1622 = vmul.f32 %v851, %v1525
        %v1623 = vmul.f32 %v852, %v1525
        %v1624 = vmul.f32 %v853, %v1525
        %v1625 = vmul.f32 %v854, %v1525
        %v1626 = vmul.f32 %v855, %v1525
        %v1627 = vmul.f32 %v856, %v1525
        %v1628 = vmul.f32 %v857, %v1525
        %v1629 = vmul.f32 %v858, %v1525
        %v1630 = vmul.f32 %v859, %v1525
        %v1631 = vmul.f32 %v860, %v1525
        %v1632 = vmul.f32 %v861, %v1525
        %v1633 = vmul.f32 %v862, %v1525
        %v1634 = vmul.f32 %v863, %v1525
        %v1635 = vmul.f32 %v864, %v1525
        %v1636 = vmul.f32 %v865, %v1525
        %v1637 = vmul.f32 %v866, %v1525
        %v1638 = vmul.f32 %v867, %v1525
        %v1639 = vmul.f32 %v868, %v1525
        %v1640 = vmul.f32 %v869, %v1525
        %v1641 = vmul.f32 %v870, %v1525
        %v1642 = vmul.f32 %v871, %v1525
        %v1643 = vmul.f32 %v872, %v1525
        %v1644 = vmul.f32 %v873, %v1525
        %v1645 = vmul.f32 %v874, %v1525
        %v1646 = vmul.f32 %v875, %v1525
        %v1647 = vmul.f32 %v876, %v1525
        %v1648 = vmul.f32 %v877, %v1525
        %v1649 = vmul.f32 %v878, %v1525
        %v1650 = vmul.f32 %v879, %v1525
        %v1651 = vmul.f32 %v880, %v1525
        %v1652 = vmul.f32 %v881, %v1525
        %v1653 = vmul.f32 %v882, %v1525
        %v1654 = vmul.f32 %v883, %v1525
        %v1655 = vmul.f32 %v884, %v1525
        %v1656 = vmul.f32 %v885, %v1525
        %v1657 = vmul.f32 %v886, %v1525
        %v1658 = vmul.f32 %v887, %v1525
        %v1659 = vmul.f32 %v888, %v1525
        %v1660 = vmul.f32 %v889, %v1525
        %v1661 = vmul.f32 %v890, %v1525
        %v1662 = vmul.f32 %v891, %v1525
        %v1663 = vmul.f32 %v892, %v1525
        %v1664 = vmul.f32 %v893, %v1525
        %v1665 = vmul.f32 %v894, %v1525
        %v1666 = vmul.f32 %v895, %v1525
        %v1667 = vmul.f32 %v896, %v1525
        %v1668 = vmul.f32 %v897, %v1525
        %v1669 = vmul.f32 %v898, %v1525
        %v1670 = vmul.f32 %v899, %v1525
        %v1671 = vmul.f32 %v900, %v1525
        %v1672 = vmul.f32 %v901, %v1525
        %v1673 = vmul.f32 %v902, %v1525
        %v1674 = vmul.f32 %v903, %v1525
        %v1675 = vmul.f32 %v904, %v1525
        %v1676 = vmul.f32 %v905, %v1525
        %v1677 = vmul.f32 %v906, %v1525
        %v1678 = vmul.f32 %v907, %v1525
        %v1679 = vmul.f32 %v908, %v1525
        %v1680 = vmul.f32 %v909, %v1525
        %v1681 = vmul.f32 %v910, %v1525
        %v1682 = vmul.f32 %v911, %v1525
        %v1683 = vmul.f32 %v912, %v1525
        %v1684 = vmul.f32 %v913, %v1525
        %v1685 = vmul.f32 %v914, %v1525
        %v1686 = vmul.f32 %v915, %v1525
        %v1687 = vmul.f32 %v916, %v1525
        %v1688 = vmul.f32 %v917, %v1525
        %v1689 = vmul.f32 %v918, %v1525
        %v1690 = vmul.f32 %v919, %v1525
        %v1691 = vmul.f32 %v920, %v1525
        %v1692 = vmul.f32 %v921, %v1525
        %v1693 = vmul.f32 %v922, %v1525
        %v1694 = vmul.f32 %v923, %v1525
        %v1695 = vmul.f32 %v924, %v1525
        %v1696 = vmul.f32 %v925, %v1525
        %v1697 = vmul.f32 %v926, %v1525
        %v1698 = vmul.f32 %v927, %v1525
        %v1699 = vmul.f32 %v928, %v1525
        %v1700 = vmul.f32 %v929, %v1525
        %v1701 = vmul.f32 %v930, %v1525
        %v1702 = vmul.f32 %v931, %v1525
        %v1703 = vmul.f32 %v932, %v1525
        %v1704 = vmul.f32 %v933, %v1525
        %v1705 = vmul.f32 %v934, %v1525
        %v1706 = vmul.f32 %v935, %v1525
        %v1707 = vmul.f32 %v936, %v1525
        %v1708 = vmul.f32 %v937, %v1525
        %v1709 = vmul.f32 %v938, %v1525
        %v1710 = vmul.f32 %v939, %v1525
        %v1711 = vmul.f32 %v940, %v1525
        %v1712 = vmul.f32 %v941, %v1525
        %v1713 = vmul.f32 %v942, %v1525
        %v1714 = vmul.f32 %v943, %v1525
        %v1715 = vmul.f32 %v944, %v1525
        %v1716 = vmul.f32 %v945, %v1525
        %v1717 = vmul.f32 %v946, %v1525
        %v1718 = vmul.f32 %v947, %v1525
        %v1719 = vmul.f32 %v948, %v1525
        %v1720 = vmul.f32 %v949, %v1525
        %v1721 = vmul.f32 %v950, %v1525
        %v1722 = vmul.f32 %v951, %v1525
        %v1723 = vmul.f32 %v952, %v1525
        %v1724 = vmul.f32 %v953, %v1525
        %v1725 = vmul.f32 %v954, %v1525
        %v1726 = vmul.f32 %v955, %v1525
        %v1727 = vmul.f32 %v956, %v1525
        %v1728 = vmul.f32 %v957, %v1525
        %v1729 = vmul.f32 %v958, %v1525
        %v1730 = vmul.f32 %v959, %v1525
        %v1731 = vmul.f32 %v960, %v1525
        %v1732 = vmul.f32 %v961, %v1525
        %v1733 = vmul.f32 %v962, %v1525
        %v1734 = vmul.f32 %v963, %v1525
        %v1735 = vmul.f32 %v964, %v1525
        %v1736 = vmul.f32 %v965, %v1525
        %v1737 = vmul.f32 %v966, %v1525
        %v1738 = vmul.f32 %v967, %v1525
        %v1739 = vmul.f32 %v968, %v1525
        %v1740 = vmul.f32 %v969, %v1525
        %v1741 = vmul.f32 %v970, %v1525
        %v1742 = vmul.f32 %v971, %v1525
        %v1743 = vmul.f32 %v972, %v1525
        %v1744 = vmul.f32 %v973, %v1525
        %v1745 = vmul.f32 %v974, %v1525
        %v1746 = vmul.f32 %v975, %v1525
        %v1747 = vmul.f32 %v976, %v1525
        %v1748 = vmul.f32 %v977, %v1525
        %v1749 = vmul.f32 %v978, %v1525
        %v1750 = vmul.f32 %v979, %v1525
        %v1751 = vmul.f32 %v980, %v1525
        %v1752 = vmul.f32 %v981, %v1525
        %v1753 = vmul.f32 %v982, %v1525
        %v1754 = vmul.f32 %v983, %v1525
        %v1755 = vmul.f32 %v984, %v1525
        %v1756 = vmul.f32 %v985, %v1525
        %v1757 = vmul.f32 %v986, %v1525
        %v1758 = vmul.f32 %v987, %v1525
        %v1759 = vmul.f32 %v988, %v1525
        %v1760 = vmul.f32 %v989, %v1525
        %v1761 = vmul.f32 %v990, %v1525
        %v1762 = vmul.f32 %v991, %v1525
        %v1763 = vmul.f32 %v992, %v1525
        %v1764 = vmul.f32 %v993, %v1525
        %v1765 = vmul.f32 %v994, %v1525
        %v1766 = vmul.f32 %v995, %v1525
        %v1767 = vmul.f32 %v996, %v1525
        %v1768 = vmul.f32 %v997, %v1525
        %v1769 = vmul.f32 %v998, %v1525
        %v1770 = vmul.f32 %v999, %v1525
        %v1771 = vmul.f32 %v1000, %v1525
        %v1772 = vmul.f32 %v1001, %v1525
        %v1773 = vmul.f32 %v1002, %v1525
        %v1774 = vmul.f32 %v1003, %v1525
        %v1775 = vmul.f32 %v1004, %v1525
        %v1776 = vmul.f32 %v1005, %v1525
        %v1777 = vmul.f32 %v1006, %v1525
        %v1778 = vmul.f32 %v1007, %v1525
        %v1779 = vmul.f32 %v1008, %v1525
        %v1780 = vmul.f32 %v1009, %v1525
        %v1781 = vmul.f32 %v1010, %v1525
        %v1782 = vadd.f32 %v1268, %v1526
        %v1783 = vadd.f32 %v1269, %v1527
        %v1784 = vadd.f32 %v1270, %v1528
        %v1785 = vadd.f32 %v1271, %v1529
        %v1786 = vadd.f32 %v1272, %v1530
        %v1787 = vadd.f32 %v1273, %v1531
        %v1788 = vadd.f32 %v1274, %v1532
        %v1789 = vadd.f32 %v1275, %v1533
        %v1790 = vadd.f32 %v1276, %v1534
        %v1791 = vadd.f32 %v1277, %v1535
        %v1792 = vadd.f32 %v1278, %v1536
        %v1793 = vadd.f32 %v1279, %v1537
        %v1794 = vadd.f32 %v1280, %v1538
        %v1795 = vadd.f32 %v1281, %v1539
        %v1796 = vadd.f32 %v1282, %v1540
        %v1797 = vadd.f32 %v1283, %v1541
        %v1798 = vadd.f32 %v1284, %v1542
        %v1799 = vadd.f32 %v1285, %v1543
        %v1800 = vadd.f32 %v1286, %v1544
        %v1801 = vadd.f32 %v1287, %v1545
        %v1802 = vadd.f32 %v1288, %v1546
        %v1803 = vadd.f32 %v1289, %v1547
        %v1804 = vadd.f32 %v1290, %v1548
        %v1805 = vadd.f32 %v1291, %v1549
        %v1806 = vadd.f32 %v1292, %v1550
        %v1807 = vadd.f32 %v1293, %v1551
        %v1808 = vadd.f32 %v1294, %v1552
        %v1809 = vadd.f32 %v1295, %v1553
        %v1810 = vadd.f32 %v1296, %v1554
        %v1811 = vadd.f32 %v1297, %v1555
        %v1812 = vadd.f32 %v1298, %v1556
        %v1813 = vadd.f32 %v1299, %v1557
        %v1814 = vadd.f32 %v1300, %v1558
        %v1815 = vadd.f32 %v1301, %v1559
        %v1816 = vadd.f32 %v1302, %v1560
        %v1817 = vadd.f32 %v1303, %v1561
        %v1818 = vadd.f32 %v1304, %v1562
        %v1819 = vadd.f32 %v1305, %v1563
        %v1820 = vadd.f32 %v1306, %v1564
        %v1821 = vadd.f32 %v1307, %v1565
        %v1822 = vadd.f32 %v1308, %v1566
        %v1823 = vadd.f32 %v1309, %v1567
        %v1824 = vadd.f32 %v1310, %v1568
        %v1825 = vadd.f32 %v1311, %v1569
        %v1826 = vadd.f32 %v1312, %v1570
        %v1827 = vadd.f32 %v1313, %v1571
        %v1828 = vadd.f32 %v1314, %v1572
        %v1829 = vadd.f32 %v1315, %v1573
        %v1830 = vadd.f32 %v1316, %v1574
        %v1831 = vadd.f32 %v1317, %v1575
        %v1832 = vadd.f32 %v1318, %v1576
        %v1833 = vadd.f32 %v1319, %v1577
        %v1834 = vadd.f32 %v1320, %v1578
        %v1835 = vadd.f32 %v1321, %v1579
        %v1836 = vadd.f32 %v1322, %v1580
        %v1837 = vadd.f32 %v1323, %v1581
        %v1838 = vadd.f32 %v1324, %v1582
        %v1839 = vadd.f32 %v1325, %v1583
        %v1840 = vadd.f32 %v1326, %v1584
        %v1841 = vadd.f32 %v1327, %v1585
        %v1842 = vadd.f32 %v1328, %v1586
        %v1843 = vadd.f32 %v1329, %v1587
        %v1844 = vadd.f32 %v1330, %v1588
        %v1845 = vadd.f32 %v1331, %v1589
        %v1846 = vadd.f32 %v1332, %v1590
        %v1847 = vadd.f32 %v1333, %v1591
        %v1848 = vadd.f32 %v1334, %v1592
        %v1849 = vadd.f32 %v1335, %v1593
        %v1850 = vadd.f32 %v1336, %v1594
        %v1851 = vadd.f32 %v1337, %v1595
        %v1852 = vadd.f32 %v1338, %v1596
        %v1853 = vadd.f32 %v1339, %v1597
        %v1854 = vadd.f32 %v1340, %v1598
        %v1855 = vadd.f32 %v1341, %v1599
        %v1856 = vadd.f32 %v1342, %v1600
        %v1857 = vadd.f32 %v1343, %v1601
        %v1858 = vadd.f32 %v1344, %v1602
        %v1859 = vadd.f32 %v1345, %v1603
        %v1860 = vadd.f32 %v1346, %v1604
        %v1861 = vadd.f32 %v1347, %v1605
        %v1862 = vadd.f32 %v1348, %v1606
        %v1863 = vadd.f32 %v1349, %v1607
        %v1864 = vadd.f32 %v1350, %v1608
        %v1865 = vadd.f32 %v1351, %v1609
        %v1866 = vadd.f32 %v1352, %v1610
        %v1867 = vadd.f32 %v1353, %v1611
        %v1868 = vadd.f32 %v1354, %v1612
        %v1869 = vadd.f32 %v1355, %v1613
        %v1870 = vadd.f32 %v1356, %v1614
        %v1871 = vadd.f32 %v1357, %v1615
        %v1872 = vadd.f32 %v1358, %v1616
        %v1873 = vadd.f32 %v1359, %v1617
        %v1874 = vadd.f32 %v1360, %v1618
        %v1875 = vadd.f32 %v1361, %v1619
        %v1876 = vadd.f32 %v1362, %v1620
        %v1877 = vadd.f32 %v1363, %v1621
        %v1878 = vadd.f32 %v1364, %v1622
        %v1879 = vadd.f32 %v1365, %v1623
        %v1880 = vadd.f32 %v1366, %v1624
        %v1881 = vadd.f32 %v1367, %v1625
        %v1882 = vadd.f32 %v1368, %v1626
        %v1883 = vadd.f32 %v1369, %v1627
        %v1884 = vadd.f32 %v1370, %v1628
        %v1885 = vadd.f32 %v1371, %v1629
        %v1886 = vadd.f32 %v1372, %v1630
        %v1887 = vadd.f32 %v1373, %v1631
        %v1888 = vadd.f32 %v1374, %v1632
        %v1889 = vadd.f32 %v1375, %v1633
        %v1890 = vadd.f32 %v1376, %v1634
        %v1891 = vadd.f32 %v1377, %v1635
        %v1892 = vadd.f32 %v1378, %v1636
        %v1893 = vadd.f32 %v1379, %v1637
        %v1894 = vadd.f32 %v1380, %v1638
        %v1895 = vadd.f32 %v1381, %v1639
        %v1896 = vadd.f32 %v1382, %v1640
        %v1897 = vadd.f32 %v1383, %v1641
        %v1898 = vadd.f32 %v1384, %v1642
        %v1899 = vadd.f32 %v1385, %v1643
        %v1900 = vadd.f32 %v1386, %v1644
        %v1901 = vadd.f32 %v1387, %v1645
        %v1902 = vadd.f32 %v1388, %v1646
        %v1903 = vadd.f32 %v1389, %v1647
        %v1904 = vadd.f32 %v1390, %v1648
        %v1905 = vadd.f32 %v1391, %v1649
        %v1906 = vadd.f32 %v1392, %v1650
        %v1907 = vadd.f32 %v1393, %v1651
        %v1908 = vadd.f32 %v1394, %v1652
        %v1909 = vadd.f32 %v1395, %v1653
        %v1910 = vadd.f32 %v1396, %v1654
        %v1911 = vadd.f32 %v1397, %v1655
        %v1912 = vadd.f32 %v1398, %v1656
        %v1913 = vadd.f32 %v1399, %v1657
        %v1914 = vadd.f32 %v1400, %v1658
        %v1915 = vadd.f32 %v1401, %v1659
        %v1916 = vadd.f32 %v1402, %v1660
        %v1917 = vadd.f32 %v1403, %v1661
        %v1918 = vadd.f32 %v1404, %v1662
        %v1919 = vadd.f32 %v1405, %v1663
        %v1920 = vadd.f32 %v1406, %v1664
        %v1921 = vadd.f32 %v1407, %v1665
        %v1922 = vadd.f32 %v1408, %v1666
        %v1923 = vadd.f32 %v1409, %v1667
        %v1924 = vadd.f32 %v1410, %v1668
        %v1925 = vadd.f32 %v1411, %v1669
        %v1926 = vadd.f32 %v1412, %v1670
        %v1927 = vadd.f32 %v1413, %v1671
        %v1928 = vadd.f32 %v1414, %v1672
        %v1929 = vadd.f32 %v1415, %v1673
        %v1930 = vadd.f32 %v1416, %v1674
        %v1931 = vadd.f32 %v1417, %v1675
        %v1932 = vadd.f32 %v1418, %v1676
        %v1933 = vadd.f32 %v1419, %v1677
        %v1934 = vadd.f32 %v1420, %v1678
        %v1935 = vadd.f32 %v1421, %v1679
        %v1936 = vadd.f32 %v1422, %v1680
        %v1937 = vadd.f32 %v1423, %v1681
        %v1938 = vadd.f32 %v1424, %v1682
        %v1939 = vadd.f32 %v1425, %v1683
        %v1940 = vadd.f32 %v1426, %v1684
        %v1941 = vadd.f32 %v1427, %v1685
        %v1942 = vadd.f32 %v1428, %v1686
        %v1943 = vadd.f32 %v1429, %v1687
        %v1944 = vadd.f32 %v1430, %v1688
        %v1945 = vadd.f32 %v1431, %v1689
        %v1946 = vadd.f32 %v1432, %v1690
        %v1947 = vadd.f32 %v1433, %v1691
        %v1948 = vadd.f32 %v1434, %v1692
        %v1949 = vadd.f32 %v1435, %v1693
        %v1950 = vadd.f32 %v1436, %v1694
        %v1951 = vadd.f32 %v1437, %v1695
        %v1952 = vadd.f32 %v1438, %v1696
        %v1953 = vadd.f32 %v1439, %v1697
        %v1954 = vadd.f32 %v1440, %v1698
        %v1955 = vadd.f32 %v1441, %v1699
        %v1956 = vadd.f32 %v1442, %v1700
        %v1957 = vadd.f32 %v1443, %v1701
        %v1958 = vadd.f32 %v1444, %v1702
        %v1959 = vadd.f32 %v1445, %v1703
        %v1960 = vadd.f32 %v1446, %v1704
        %v1961 = vadd.f32 %v1447, %v1705
        %v1962 = vadd.f32 %v1448, %v1706
        %v1963 = vadd.f32 %v1449, %v1707
        %v1964 = vadd.f32 %v1450, %v1708
        %v1965 = vadd.f32 %v1451, %v1709
        %v1966 = vadd.f32 %v1452, %v1710
        %v1967 = vadd.f32 %v1453, %v1711
        %v1968 = vadd.f32 %v1454, %v1712
        %v1969 = vadd.f32 %v1455, %v1713
        %v1970 = vadd.f32 %v1456, %v1714
        %v1971 = vadd.f32 %v1457, %v1715
        %v1972 = vadd.f32 %v1458, %v1716
        %v1973 = vadd.f32 %v1459, %v1717
        %v1974 = vadd.f32 %v1460, %v1718
        %v1975 = vadd.f32 %v1461, %v1719
        %v1976 = vadd.f32 %v1462, %v1720
        %v1977 = vadd.f32 %v1463, %v1721
        %v1978 = vadd.f32 %v1464, %v1722
        %v1979 = vadd.f32 %v1465, %v1723
        %v1980 = vadd.f32 %v1466, %v1724
        %v1981 = vadd.f32 %v1467, %v1725
        %v1982 = vadd.f32 %v1468, %v1726
        %v1983 = vadd.f32 %v1469, %v1727
        %v1984 = vadd.f32 %v1470, %v1728
        %v1985 = vadd.f32 %v1471, %v1729
        %v1986 = vadd.f32 %v1472, %v1730
        %v1987 = vadd.f32 %v1473, %v1731
        %v1988 = vadd.f32 %v1474, %v1732
        %v1989 = vadd.f32 %v1475, %v1733
        %v1990 = vadd.f32 %v1476, %v1734
        %v1991 = vadd.f32 %v1477, %v1735
        %v1992 = vadd.f32 %v1478, %v1736
        %v1993 = vadd.f32 %v1479, %v1737
        %v1994 = vadd.f32 %v1480, %v1738
        %v1995 = vadd.f32 %v1481, %v1739
        %v1996 = vadd.f32 %v1482, %v1740
        %v1997 = vadd.f32 %v1483, %v1741
        %v1998 = vadd.f32 %v1484, %v1742
        %v1999 = vadd.f32 %v1485, %v1743
        %v2000 = vadd.f32 %v1486, %v1744
        %v2001 = vadd.f32 %v1487, %v1745
        %v2002 = vadd.f32 %v1488, %v1746
        %v2003 = vadd.f32 %v1489, %v1747
        %v2004 = vadd.f32 %v1490, %v1748
        %v2005 = vadd.f32 %v1491, %v1749
        %v2006 = vadd.f32 %v1492, %v1750
        %v2007 = vadd.f32 %v1493, %v1751
        %v2008 = vadd.f32 %v1494, %v1752
        %v2009 = vadd.f32 %v1495, %v1753
        %v2010 = vadd.f32 %v1496, %v1754
        %v2011 = vadd.f32 %v1497, %v1755
        %v2012 = vadd.f32 %v1498, %v1756
        %v2013 = vadd.f32 %v1499, %v1757
        %v2014 = vadd.f32 %v1500, %v1758
        %v2015 = vadd.f32 %v1501, %v1759
        %v2016 = vadd.f32 %v1502, %v1760
        %v2017 = vadd.f32 %v1503, %v1761
        %v2018 = vadd.f32 %v1504, %v1762
        %v2019 = vadd.f32 %v1505, %v1763
        %v2020 = vadd.f32 %v1506, %v1764
        %v2021 = vadd.f32 %v1507, %v1765
        %v2022 = vadd.f32 %v1508, %v1766
        %v2023 = vadd.f32 %v1509, %v1767
        %v2024 = vadd.f32 %v1510, %v1768
        %v2025 = vadd.f32 %v1511, %v1769
        %v2026 = vadd.f32 %v1512, %v1770
        %v2027 = vadd.f32 %v1513, %v1771
        %v2028 = vadd.f32 %v1514, %v1772
        %v2029 = vadd.f32 %v1515, %v1773
        %v2030 = vadd.f32 %v1516, %v1774
        %v2031 = vadd.f32 %v1517, %v1775
        %v2032 = vadd.f32 %v1518, %v1776
        %v2033 = vadd.f32 %v1519, %v1777
        %v2034 = vadd.f32 %v1520, %v1778
        %v2035 = vadd.f32 %v1521, %v1779
        %v2036 = vadd.f32 %v1522, %v1780
        %v2037 = vadd.f32 %v1523, %v1781
        %2038 = vst [vmem:[%s730] sm:$0xff] %v1782
        %2039 = vst [vmem:[%s730 + $0x8] sm:$0xff] %v1783
        %2040 = vst [vmem:[%s730 + $0x10] sm:$0xff] %v1784
        %2041 = vst [vmem:[%s730 + $0x18] sm:$0xff] %v1785
        %2042 = vst [vmem:[%s730 + $0x20] sm:$0xff] %v1786
        %2043 = vst [vmem:[%s730 + $0x28] sm:$0xff] %v1787
        %2044 = vst [vmem:[%s730 + $0x30] sm:$0xff] %v1788
        %2045 = vst [vmem:[%s730 + $0x38] sm:$0xff] %v1789
        %2046 = vst [vmem:[%s730 + $0x40] sm:$0xff] %v1790
        %2047 = vst [vmem:[%s730 + $0x48] sm:$0xff] %v1791
        %2048 = vst [vmem:[%s730 + $0x50] sm:$0xff] %v1792
        %2049 = vst [vmem:[%s730 + $0x58] sm:$0xff] %v1793
        %2050 = vst [vmem:[%s730 + $0x60] sm:$0xff] %v1794
        %2051 = vst [vmem:[%s730 + $0x68] sm:$0xff] %v1795
        %2052 = vst [vmem:[%s730 + $0x70] sm:$0xff] %v1796
        %2053 = vst [vmem:[%s730 + $0x78] sm:$0xff] %v1797
        %2054 = vst [vmem:[%s730 + $0x80] sm:$0xff] %v1798
        %2055 = vst [vmem:[%s730 + $0x88] sm:$0xff] %v1799
        %2056 = vst [vmem:[%s730 + $0x90] sm:$0xff] %v1800
        %2057 = vst [vmem:[%s730 + $0x98] sm:$0xff] %v1801
        %2058 = vst [vmem:[%s730 + $0xa0] sm:$0xff] %v1802
        %2059 = vst [vmem:[%s730 + $0xa8] sm:$0xff] %v1803
        %2060 = vst [vmem:[%s730 + $0xb0] sm:$0xff] %v1804
        %2061 = vst [vmem:[%s730 + $0xb8] sm:$0xff] %v1805
        %2062 = vst [vmem:[%s730 + $0xc0] sm:$0xff] %v1806
        %2063 = vst [vmem:[%s730 + $0xc8] sm:$0xff] %v1807
        %2064 = vst [vmem:[%s730 + $0xd0] sm:$0xff] %v1808
        %2065 = vst [vmem:[%s730 + $0xd8] sm:$0xff] %v1809
        %2066 = vst [vmem:[%s730 + $0xe0] sm:$0xff] %v1810
        %2067 = vst [vmem:[%s730 + $0xe8] sm:$0xff] %v1811
        %2068 = vst [vmem:[%s730 + $0xf0] sm:$0xff] %v1812
        %2069 = vst [vmem:[%s730 + $0xf8] sm:$0xff] %v1813
        %2070 = vst [vmem:[%s730 + $0x100] sm:$0xff] %v1814
        %2071 = vst [vmem:[%s730 + $0x108] sm:$0xff] %v1815
        %2072 = vst [vmem:[%s730 + $0x110] sm:$0xff] %v1816
        %2073 = vst [vmem:[%s730 + $0x118] sm:$0xff] %v1817
        %2074 = vst [vmem:[%s730 + $0x120] sm:$0xff] %v1818
        %2075 = vst [vmem:[%s730 + $0x128] sm:$0xff] %v1819
        %2076 = vst [vmem:[%s730 + $0x130] sm:$0xff] %v1820
        %2077 = vst [vmem:[%s730 + $0x138] sm:$0xff] %v1821
        %2078 = vst [vmem:[%s730 + $0x140] sm:$0xff] %v1822
        %2079 = vst [vmem:[%s730 + $0x148] sm:$0xff] %v1823
        %2080 = vst [vmem:[%s730 + $0x150] sm:$0xff] %v1824
        %2081 = vst [vmem:[%s730 + $0x158] sm:$0xff] %v1825
        %2082 = vst [vmem:[%s730 + $0x160] sm:$0xff] %v1826
        %2083 = vst [vmem:[%s730 + $0x168] sm:$0xff] %v1827
        %2084 = vst [vmem:[%s730 + $0x170] sm:$0xff] %v1828
        %2085 = vst [vmem:[%s730 + $0x178] sm:$0xff] %v1829
        %2086 = vst [vmem:[%s730 + $0x180] sm:$0xff] %v1830
        %2087 = vst [vmem:[%s730 + $0x188] sm:$0xff] %v1831
        %2088 = vst [vmem:[%s730 + $0x190] sm:$0xff] %v1832
        %2089 = vst [vmem:[%s730 + $0x198] sm:$0xff] %v1833
        %2090 = vst [vmem:[%s730 + $0x1a0] sm:$0xff] %v1834
        %2091 = vst [vmem:[%s730 + $0x1a8] sm:$0xff] %v1835
        %2092 = vst [vmem:[%s730 + $0x1b0] sm:$0xff] %v1836
        %2093 = vst [vmem:[%s730 + $0x1b8] sm:$0xff] %v1837
        %2094 = vst [vmem:[%s730 + $0x1c0] sm:$0xff] %v1838
        %2095 = vst [vmem:[%s730 + $0x1c8] sm:$0xff] %v1839
        %2096 = vst [vmem:[%s730 + $0x1d0] sm:$0xff] %v1840
        %2097 = vst [vmem:[%s730 + $0x1d8] sm:$0xff] %v1841
        %2098 = vst [vmem:[%s730 + $0x1e0] sm:$0xff] %v1842
        %2099 = vst [vmem:[%s730 + $0x1e8] sm:$0xff] %v1843
        %2100 = vst [vmem:[%s730 + $0x1f0] sm:$0xff] %v1844
        %2101 = vst [vmem:[%s730 + $0x1f8] sm:$0xff] %v1845
        %2102 = vst [vmem:[%s730 + $0x200] sm:$0xff] %v1846
        %2103 = vst [vmem:[%s730 + $0x208] sm:$0xff] %v1847
        %2104 = vst [vmem:[%s730 + $0x210] sm:$0xff] %v1848
        %2105 = vst [vmem:[%s730 + $0x218] sm:$0xff] %v1849
        %2106 = vst [vmem:[%s730 + $0x220] sm:$0xff] %v1850
        %2107 = vst [vmem:[%s730 + $0x228] sm:$0xff] %v1851
        %2108 = vst [vmem:[%s730 + $0x230] sm:$0xff] %v1852
        %2109 = vst [vmem:[%s730 + $0x238] sm:$0xff] %v1853
        %2110 = vst [vmem:[%s730 + $0x240] sm:$0xff] %v1854
        %2111 = vst [vmem:[%s730 + $0x248] sm:$0xff] %v1855
        %2112 = vst [vmem:[%s730 + $0x250] sm:$0xff] %v1856
        %2113 = vst [vmem:[%s730 + $0x258] sm:$0xff] %v1857
        %2114 = vst [vmem:[%s730 + $0x260] sm:$0xff] %v1858
        %2115 = vst [vmem:[%s730 + $0x268] sm:$0xff] %v1859
        %2116 = vst [vmem:[%s730 + $0x270] sm:$0xff] %v1860
        %2117 = vst [vmem:[%s730 + $0x278] sm:$0xff] %v1861
        %2118 = vst [vmem:[%s730 + $0x280] sm:$0xff] %v1862
        %2119 = vst [vmem:[%s730 + $0x288] sm:$0xff] %v1863
        %2120 = vst [vmem:[%s730 + $0x290] sm:$0xff] %v1864
        %2121 = vst [vmem:[%s730 + $0x298] sm:$0xff] %v1865
        %2122 = vst [vmem:[%s730 + $0x2a0] sm:$0xff] %v1866
        %2123 = vst [vmem:[%s730 + $0x2a8] sm:$0xff] %v1867
        %2124 = vst [vmem:[%s730 + $0x2b0] sm:$0xff] %v1868
        %2125 = vst [vmem:[%s730 + $0x2b8] sm:$0xff] %v1869
        %2126 = vst [vmem:[%s730 + $0x2c0] sm:$0xff] %v1870
        %2127 = vst [vmem:[%s730 + $0x2c8] sm:$0xff] %v1871
        %2128 = vst [vmem:[%s730 + $0x2d0] sm:$0xff] %v1872
        %2129 = vst [vmem:[%s730 + $0x2d8] sm:$0xff] %v1873
        %2130 = vst [vmem:[%s730 + $0x2e0] sm:$0xff] %v1874
        %2131 = vst [vmem:[%s730 + $0x2e8] sm:$0xff] %v1875
        %2132 = vst [vmem:[%s730 + $0x2f0] sm:$0xff] %v1876
        %2133 = vst [vmem:[%s730 + $0x2f8] sm:$0xff] %v1877
        %2134 = vst [vmem:[%s730 + $0x300] sm:$0xff] %v1878
        %2135 = vst [vmem:[%s730 + $0x308] sm:$0xff] %v1879
        %2136 = vst [vmem:[%s730 + $0x310] sm:$0xff] %v1880
        %2137 = vst [vmem:[%s730 + $0x318] sm:$0xff] %v1881
        %2138 = vst [vmem:[%s730 + $0x320] sm:$0xff] %v1882
        %2139 = vst [vmem:[%s730 + $0x328] sm:$0xff] %v1883
        %2140 = vst [vmem:[%s730 + $0x330] sm:$0xff] %v1884
        %2141 = vst [vmem:[%s730 + $0x338] sm:$0xff] %v1885
        %2142 = vst [vmem:[%s730 + $0x340] sm:$0xff] %v1886
        %2143 = vst [vmem:[%s730 + $0x348] sm:$0xff] %v1887
        %2144 = vst [vmem:[%s730 + $0x350] sm:$0xff] %v1888
        %2145 = vst [vmem:[%s730 + $0x358] sm:$0xff] %v1889
        %2146 = vst [vmem:[%s730 + $0x360] sm:$0xff] %v1890
        %2147 = vst [vmem:[%s730 + $0x368] sm:$0xff] %v1891
        %2148 = vst [vmem:[%s730 + $0x370] sm:$0xff] %v1892
        %2149 = vst [vmem:[%s730 + $0x378] sm:$0xff] %v1893
        %2150 = vst [vmem:[%s730 + $0x380] sm:$0xff] %v1894
        %2151 = vst [vmem:[%s730 + $0x388] sm:$0xff] %v1895
        %2152 = vst [vmem:[%s730 + $0x390] sm:$0xff] %v1896
        %2153 = vst [vmem:[%s730 + $0x398] sm:$0xff] %v1897
        %2154 = vst [vmem:[%s730 + $0x3a0] sm:$0xff] %v1898
        %2155 = vst [vmem:[%s730 + $0x3a8] sm:$0xff] %v1899
        %2156 = vst [vmem:[%s730 + $0x3b0] sm:$0xff] %v1900
        %2157 = vst [vmem:[%s730 + $0x3b8] sm:$0xff] %v1901
        %2158 = vst [vmem:[%s730 + $0x3c0] sm:$0xff] %v1902
        %2159 = vst [vmem:[%s730 + $0x3c8] sm:$0xff] %v1903
        %2160 = vst [vmem:[%s730 + $0x3d0] sm:$0xff] %v1904
        %2161 = vst [vmem:[%s730 + $0x3d8] sm:$0xff] %v1905
        %2162 = vst [vmem:[%s730 + $0x3e0] sm:$0xff] %v1906
        %2163 = vst [vmem:[%s730 + $0x3e8] sm:$0xff] %v1907
        %2164 = vst [vmem:[%s730 + $0x3f0] sm:$0xff] %v1908
        %2165 = vst [vmem:[%s730 + $0x3f8] sm:$0xff] %v1909
        %2166 = vst [vmem:[%s730 + $0x400] sm:$0xff] %v1910
        %2167 = vst [vmem:[%s730 + $0x408] sm:$0xff] %v1911
        %2168 = vst [vmem:[%s730 + $0x410] sm:$0xff] %v1912
        %2169 = vst [vmem:[%s730 + $0x418] sm:$0xff] %v1913
        %2170 = vst [vmem:[%s730 + $0x420] sm:$0xff] %v1914
        %2171 = vst [vmem:[%s730 + $0x428] sm:$0xff] %v1915
        %2172 = vst [vmem:[%s730 + $0x430] sm:$0xff] %v1916
        %2173 = vst [vmem:[%s730 + $0x438] sm:$0xff] %v1917
        %2174 = vst [vmem:[%s730 + $0x440] sm:$0xff] %v1918
        %2175 = vst [vmem:[%s730 + $0x448] sm:$0xff] %v1919
        %2176 = vst [vmem:[%s730 + $0x450] sm:$0xff] %v1920
        %2177 = vst [vmem:[%s730 + $0x458] sm:$0xff] %v1921
        %2178 = vst [vmem:[%s730 + $0x460] sm:$0xff] %v1922
        %2179 = vst [vmem:[%s730 + $0x468] sm:$0xff] %v1923
        %2180 = vst [vmem:[%s730 + $0x470] sm:$0xff] %v1924
        %2181 = vst [vmem:[%s730 + $0x478] sm:$0xff] %v1925
        %2182 = vst [vmem:[%s730 + $0x480] sm:$0xff] %v1926
        %2183 = vst [vmem:[%s730 + $0x488] sm:$0xff] %v1927
        %2184 = vst [vmem:[%s730 + $0x490] sm:$0xff] %v1928
        %2185 = vst [vmem:[%s730 + $0x498] sm:$0xff] %v1929
        %2186 = vst [vmem:[%s730 + $0x4a0] sm:$0xff] %v1930
        %2187 = vst [vmem:[%s730 + $0x4a8] sm:$0xff] %v1931
        %2188 = vst [vmem:[%s730 + $0x4b0] sm:$0xff] %v1932
        %2189 = vst [vmem:[%s730 + $0x4b8] sm:$0xff] %v1933
        %2190 = vst [vmem:[%s730 + $0x4c0] sm:$0xff] %v1934
        %2191 = vst [vmem:[%s730 + $0x4c8] sm:$0xff] %v1935
        %2192 = vst [vmem:[%s730 + $0x4d0] sm:$0xff] %v1936
        %2193 = vst [vmem:[%s730 + $0x4d8] sm:$0xff] %v1937
        %2194 = vst [vmem:[%s730 + $0x4e0] sm:$0xff] %v1938
        %2195 = vst [vmem:[%s730 + $0x4e8] sm:$0xff] %v1939
        %2196 = vst [vmem:[%s730 + $0x4f0] sm:$0xff] %v1940
        %2197 = vst [vmem:[%s730 + $0x4f8] sm:$0xff] %v1941
        %2198 = vst [vmem:[%s730 + $0x500] sm:$0xff] %v1942
        %2199 = vst [vmem:[%s730 + $0x508] sm:$0xff] %v1943
        %2200 = vst [vmem:[%s730 + $0x510] sm:$0xff] %v1944
        %2201 = vst [vmem:[%s730 + $0x518] sm:$0xff] %v1945
        %2202 = vst [vmem:[%s730 + $0x520] sm:$0xff] %v1946
        %2203 = vst [vmem:[%s730 + $0x528] sm:$0xff] %v1947
        %2204 = vst [vmem:[%s730 + $0x530] sm:$0xff] %v1948
        %2205 = vst [vmem:[%s730 + $0x538] sm:$0xff] %v1949
        %2206 = vst [vmem:[%s730 + $0x540] sm:$0xff] %v1950
        %2207 = vst [vmem:[%s730 + $0x548] sm:$0xff] %v1951
        %2208 = vst [vmem:[%s730 + $0x550] sm:$0xff] %v1952
        %2209 = vst [vmem:[%s730 + $0x558] sm:$0xff] %v1953
        %2210 = vst [vmem:[%s730 + $0x560] sm:$0xff] %v1954
        %2211 = vst [vmem:[%s730 + $0x568] sm:$0xff] %v1955
        %2212 = vst [vmem:[%s730 + $0x570] sm:$0xff] %v1956
        %2213 = vst [vmem:[%s730 + $0x578] sm:$0xff] %v1957
        %2214 = vst [vmem:[%s730 + $0x580] sm:$0xff] %v1958
        %2215 = vst [vmem:[%s730 + $0x588] sm:$0xff] %v1959
        %2216 = vst [vmem:[%s730 + $0x590] sm:$0xff] %v1960
        %2217 = vst [vmem:[%s730 + $0x598] sm:$0xff] %v1961
        %2218 = vst [vmem:[%s730 + $0x5a0] sm:$0xff] %v1962
        %2219 = vst [vmem:[%s730 + $0x5a8] sm:$0xff] %v1963
        %2220 = vst [vmem:[%s730 + $0x5b0] sm:$0xff] %v1964
        %2221 = vst [vmem:[%s730 + $0x5b8] sm:$0xff] %v1965
        %2222 = vst [vmem:[%s730 + $0x5c0] sm:$0xff] %v1966
        %2223 = vst [vmem:[%s730 + $0x5c8] sm:$0xff] %v1967
        %2224 = vst [vmem:[%s730 + $0x5d0] sm:$0xff] %v1968
        %2225 = vst [vmem:[%s730 + $0x5d8] sm:$0xff] %v1969
        %2226 = vst [vmem:[%s730 + $0x5e0] sm:$0xff] %v1970
        %2227 = vst [vmem:[%s730 + $0x5e8] sm:$0xff] %v1971
        %2228 = vst [vmem:[%s730 + $0x5f0] sm:$0xff] %v1972
        %2229 = vst [vmem:[%s730 + $0x5f8] sm:$0xff] %v1973
        %2230 = vst [vmem:[%s730 + $0x600] sm:$0xff] %v1974
        %2231 = vst [vmem:[%s730 + $0x608] sm:$0xff] %v1975
        %2232 = vst [vmem:[%s730 + $0x610] sm:$0xff] %v1976
        %2233 = vst [vmem:[%s730 + $0x618] sm:$0xff] %v1977
        %2234 = vst [vmem:[%s730 + $0x620] sm:$0xff] %v1978
        %2235 = vst [vmem:[%s730 + $0x628] sm:$0xff] %v1979
        %2236 = vst [vmem:[%s730 + $0x630] sm:$0xff] %v1980
        %2237 = vst [vmem:[%s730 + $0x638] sm:$0xff] %v1981
        %2238 = vst [vmem:[%s730 + $0x640] sm:$0xff] %v1982
        %2239 = vst [vmem:[%s730 + $0x648] sm:$0xff] %v1983
        %2240 = vst [vmem:[%s730 + $0x650] sm:$0xff] %v1984
        %2241 = vst [vmem:[%s730 + $0x658] sm:$0xff] %v1985
        %2242 = vst [vmem:[%s730 + $0x660] sm:$0xff] %v1986
        %2243 = vst [vmem:[%s730 + $0x668] sm:$0xff] %v1987
        %2244 = vst [vmem:[%s730 + $0x670] sm:$0xff] %v1988
        %2245 = vst [vmem:[%s730 + $0x678] sm:$0xff] %v1989
        %2246 = vst [vmem:[%s730 + $0x680] sm:$0xff] %v1990
        %2247 = vst [vmem:[%s730 + $0x688] sm:$0xff] %v1991
        %2248 = vst [vmem:[%s730 + $0x690] sm:$0xff] %v1992
        %2249 = vst [vmem:[%s730 + $0x698] sm:$0xff] %v1993
        %2250 = vst [vmem:[%s730 + $0x6a0] sm:$0xff] %v1994
        %2251 = vst [vmem:[%s730 + $0x6a8] sm:$0xff] %v1995
        %2252 = vst [vmem:[%s730 + $0x6b0] sm:$0xff] %v1996
        %2253 = vst [vmem:[%s730 + $0x6b8] sm:$0xff] %v1997
        %2254 = vst [vmem:[%s730 + $0x6c0] sm:$0xff] %v1998
        %2255 = vst [vmem:[%s730 + $0x6c8] sm:$0xff] %v1999
        %2256 = vst [vmem:[%s730 + $0x6d0] sm:$0xff] %v2000
        %2257 = vst [vmem:[%s730 + $0x6d8] sm:$0xff] %v2001
        %2258 = vst [vmem:[%s730 + $0x6e0] sm:$0xff] %v2002
        %2259 = vst [vmem:[%s730 + $0x6e8] sm:$0xff] %v2003
        %2260 = vst [vmem:[%s730 + $0x6f0] sm:$0xff] %v2004
        %2261 = vst [vmem:[%s730 + $0x6f8] sm:$0xff] %v2005
        %2262 = vst [vmem:[%s730 + $0x700] sm:$0xff] %v2006
        %2263 = vst [vmem:[%s730 + $0x708] sm:$0xff] %v2007
        %2264 = vst [vmem:[%s730 + $0x710] sm:$0xff] %v2008
        %2265 = vst [vmem:[%s730 + $0x718] sm:$0xff] %v2009
        %2266 = vst [vmem:[%s730 + $0x720] sm:$0xff] %v2010
        %2267 = vst [vmem:[%s730 + $0x728] sm:$0xff] %v2011
        %2268 = vst [vmem:[%s730 + $0x730] sm:$0xff] %v2012
        %2269 = vst [vmem:[%s730 + $0x738] sm:$0xff] %v2013
        %2270 = vst [vmem:[%s730 + $0x740] sm:$0xff] %v2014
        %2271 = vst [vmem:[%s730 + $0x748] sm:$0xff] %v2015
        %2272 = vst [vmem:[%s730 + $0x750] sm:$0xff] %v2016
        %2273 = vst [vmem:[%s730 + $0x758] sm:$0xff] %v2017
        %2274 = vst [vmem:[%s730 + $0x760] sm:$0xff] %v2018
        %2275 = vst [vmem:[%s730 + $0x768] sm:$0xff] %v2019
        %2276 = vst [vmem:[%s730 + $0x770] sm:$0xff] %v2020
        %2277 = vst [vmem:[%s730 + $0x778] sm:$0xff] %v2021
        %2278 = vst [vmem:[%s730 + $0x780] sm:$0xff] %v2022
        %2279 = vst [vmem:[%s730 + $0x788] sm:$0xff] %v2023
        %2280 = vst [vmem:[%s730 + $0x790] sm:$0xff] %v2024
        %2281 = vst [vmem:[%s730 + $0x798] sm:$0xff] %v2025
        %2282 = vst [vmem:[%s730 + $0x7a0] sm:$0xff] %v2026
        %2283 = vst [vmem:[%s730 + $0x7a8] sm:$0xff] %v2027
        %2284 = vst [vmem:[%s730 + $0x7b0] sm:$0xff] %v2028
        %2285 = vst [vmem:[%s730 + $0x7b8] sm:$0xff] %v2029
        %2286 = vst [vmem:[%s730 + $0x7c0] sm:$0xff] %v2030
        %2287 = vst [vmem:[%s730 + $0x7c8] sm:$0xff] %v2031
        %2288 = vst [vmem:[%s730 + $0x7d0] sm:$0xff] %v2032
        %2289 = vst [vmem:[%s730 + $0x7d8] sm:$0xff] %v2033
        %2290 = vst [vmem:[%s730 + $0x7e0] sm:$0xff] %v2034
        %2291 = vst [vmem:[%s730 + $0x7e8] sm:$0xff] %v2035
        %2292 = vst [vmem:[%s730 + $0x7f0] sm:$0xff] %v2036
        %2293 = vst [vmem:[%s730 + $0x7f8] sm:$0xff] %v2037
        %v2294 = vld [vmem:[#allocation2] sm:$0xff]
        %v2295 = vld [vmem:[#allocation2 + $0x8] sm:$0xff]
        %v2296 = vld [vmem:[#allocation2 + $0x10] sm:$0xff]
        %v2297 = vld [vmem:[#allocation2 + $0x18] sm:$0xff]
        %v2298 = vld [vmem:[%s612] sm:$0xff]
        %v2299 = vld [vmem:[%s612 + $0x8] sm:$0xff]
        %v2300 = vld [vmem:[%s612 + $0x10] sm:$0xff]
        %v2301 = vld [vmem:[%s612 + $0x18] sm:$0xff]
        %2302 = vmatpush.msra.mxu0 %v815
        %2303 = vmatpush.msra.mxu0 %v811
        %2304 = vmatpush.msra.mxu0 %v807
        %2305 = vmatpush.msra.mxu0 %v803
        %2306 = vmatpush.msra.mxu0 %v799
        %2307 = vmatpush.msra.mxu0 %v795
        %2308 = vmatpush.msra.mxu0 %v791
        %2309 = vmatpush.msra.mxu0 %v787
        %2310 = vmatpush.msra.mxu0 %v783
        %2311 = vmatpush.msra.mxu0 %v779
        %2312 = vmatpush.msra.mxu0 %v775
        %2313 = vmatpush.msra.mxu0 %v771
        %2314 = vmatpush.msra.mxu0 %v767
        %2315 = vmatpush.msra.mxu0 %v763
        %2316 = vmatpush.msra.mxu0 %v759
        %2317 = vmatpush.msra.mxu0 %v755
        %2318 = vmatmul.f32.gmra.mxu0 %v2298
        %v2319 = vpop.f32.mrf.mxu0
        %v2320 = vadd.f32 0.0, %v2319
        %2321 = vdwg.mxu0
        %2322 = vmatpush.msra.mxu0 %v879
        %2323 = vmatpush.msra.mxu0 %v875
        %2324 = vmatpush.msra.mxu0 %v871
        %2325 = vmatpush.msra.mxu0 %v867
        %2326 = vmatpush.msra.mxu0 %v863
        %2327 = vmatpush.msra.mxu0 %v859
        %2328 = vmatpush.msra.mxu0 %v855
        %2329 = vmatpush.msra.mxu0 %v851
        %2330 = vmatpush.msra.mxu0 %v847
        %2331 = vmatpush.msra.mxu0 %v843
        %2332 = vmatpush.msra.mxu0 %v839
        %2333 = vmatpush.msra.mxu0 %v835
        %2334 = vmatpush.msra.mxu0 %v831
        %2335 = vmatpush.msra.mxu0 %v827
        %2336 = vmatpush.msra.mxu0 %v823
        %2337 = vmatpush.msra.mxu0 %v819
        %2338 = vmatmul.f32.gmra.mxu0 %v2299
        %v2339 = vpop.f32.mrf.mxu0
        %v2340 = vadd.f32 %v2320, %v2339
        %2341 = vdwg.mxu0
        %2342 = vmatpush.msra.mxu0 %v943
        %2343 = vmatpush.msra.mxu0 %v939
        %2344 = vmatpush.msra.mxu0 %v935
        %2345 = vmatpush.msra.mxu0 %v931
        %2346 = vmatpush.msra.mxu0 %v927
        %2347 = vmatpush.msra.mxu0 %v923
        %2348 = vmatpush.msra.mxu0 %v919
        %2349 = vmatpush.msra.mxu0 %v915
        %2350 = vmatpush.msra.mxu0 %v911
        %2351 = vmatpush.msra.mxu0 %v907
        %2352 = vmatpush.msra.mxu0 %v903
        %2353 = vmatpush.msra.mxu0 %v899
        %2354 = vmatpush.msra.mxu0 %v895
        %2355 = vmatpush.msra.mxu0 %v891
        %2356 = vmatpush.msra.mxu0 %v887
        %2357 = vmatpush.msra.mxu0 %v883
        %2358 = vmatmul.f32.gmra.mxu0 %v2300
        %v2359 = vpop.f32.mrf.mxu0
        %v2360 = vadd.f32 %v2340, %v2359
        %2361 = vdwg.mxu0
        %2362 = vmatpush.msra.mxu0 %v1007
        %2363 = vmatpush.msra.mxu0 %v1003
        %2364 = vmatpush.msra.mxu0 %v999
        %2365 = vmatpush.msra.mxu0 %v995
        %2366 = vmatpush.msra.mxu0 %v991
        %2367 = vmatpush.msra.mxu0 %v987
        %2368 = vmatpush.msra.mxu0 %v983
        %2369 = vmatpush.msra.mxu0 %v979
        %2370 = vmatpush.msra.mxu0 %v975
        %2371 = vmatpush.msra.mxu0 %v971
        %2372 = vmatpush.msra.mxu0 %v967
        %2373 = vmatpush.msra.mxu0 %v963
        %2374 = vmatpush.msra.mxu0 %v959
        %2375 = vmatpush.msra.mxu0 %v955
        %2376 = vmatpush.msra.mxu0 %v951
        %2377 = vmatpush.msra.mxu0 %v947
        %2378 = vmatmul.f32.gmra.mxu0 %v2301
        %v2379 = vpop.f32.mrf.mxu0
        %v2380 = vadd.f32 %v2360, %v2379
        %2381 = vdwg.mxu0
        %2382 = vmatpush.msra.mxu0 %v816
        %2383 = vmatpush.msra.mxu0 %v812
        %2384 = vmatpush.msra.mxu0 %v808
        %2385 = vmatpush.msra.mxu0 %v804
        %2386 = vmatpush.msra.mxu0 %v800
        %2387 = vmatpush.msra.mxu0 %v796
        %2388 = vmatpush.msra.mxu0 %v792
        %2389 = vmatpush.msra.mxu0 %v788
        %2390 = vmatpush.msra.mxu0 %v784
        %2391 = vmatpush.msra.mxu0 %v780
        %2392 = vmatpush.msra.mxu0 %v776
        %2393 = vmatpush.msra.mxu0 %v772
        %2394 = vmatpush.msra.mxu0 %v768
        %2395 = vmatpush.msra.mxu0 %v764
        %2396 = vmatpush.msra.mxu0 %v760
        %2397 = vmatpush.msra.mxu0 %v756
        %2398 = vmatmul.f32.gmra.mxu0 %v2298
        %v2399 = vpop.f32.mrf.mxu0
        %v2400 = vadd.f32 0.0, %v2399
        %2401 = vdwg.mxu0
        %2402 = vmatpush.msra.mxu0 %v880
        %2403 = vmatpush.msra.mxu0 %v876
        %2404 = vmatpush.msra.mxu0 %v872
        %2405 = vmatpush.msra.mxu0 %v868
        %2406 = vmatpush.msra.mxu0 %v864
        %2407 = vmatpush.msra.mxu0 %v860
        %2408 = vmatpush.msra.mxu0 %v856
        %2409 = vmatpush.msra.mxu0 %v852
        %2410 = vmatpush.msra.mxu0 %v848
        %2411 = vmatpush.msra.mxu0 %v844
        %2412 = vmatpush.msra.mxu0 %v840
        %2413 = vmatpush.msra.mxu0 %v836
        %2414 = vmatpush.msra.mxu0 %v832
        %2415 = vmatpush.msra.mxu0 %v828
        %2416 = vmatpush.msra.mxu0 %v824
        %2417 = vmatpush.msra.mxu0 %v820
        %2418 = vmatmul.f32.gmra.mxu0 %v2299
        %v2419 = vpop.f32.mrf.mxu0
        %v2420 = vadd.f32 %v2400, %v2419
        %2421 = vdwg.mxu0
        %2422 = vmatpush.msra.mxu0 %v944
        %2423 = vmatpush.msra.mxu0 %v940
        %2424 = vmatpush.msra.mxu0 %v936
        %2425 = vmatpush.msra.mxu0 %v932
        %2426 = vmatpush.msra.mxu0 %v928
        %2427 = vmatpush.msra.mxu0 %v924
        %2428 = vmatpush.msra.mxu0 %v920
        %2429 = vmatpush.msra.mxu0 %v916
        %2430 = vmatpush.msra.mxu0 %v912
        %2431 = vmatpush.msra.mxu0 %v908
        %2432 = vmatpush.msra.mxu0 %v904
        %2433 = vmatpush.msra.mxu0 %v900
        %2434 = vmatpush.msra.mxu0 %v896
        %2435 = vmatpush.msra.mxu0 %v892
        %2436 = vmatpush.msra.mxu0 %v888
        %2437 = vmatpush.msra.mxu0 %v884
        %2438 = vmatmul.f32.gmra.mxu0 %v2300
        %v2439 = vpop.f32.mrf.mxu0
        %v2440 = vadd.f32 %v2420, %v2439
        %2441 = vdwg.mxu0
        %2442 = vmatpush.msra.mxu0 %v1008
        %2443 = vmatpush.msra.mxu0 %v1004
        %2444 = vmatpush.msra.mxu0 %v1000
        %2445 = vmatpush.msra.mxu0 %v996
        %2446 = vmatpush.msra.mxu0 %v992
        %2447 = vmatpush.msra.mxu0 %v988
        %2448 = vmatpush.msra.mxu0 %v984
        %2449 = vmatpush.msra.mxu0 %v980
        %2450 = vmatpush.msra.mxu0 %v976
        %2451 = vmatpush.msra.mxu0 %v972
        %2452 = vmatpush.msra.mxu0 %v968
        %2453 = vmatpush.msra.mxu0 %v964
        %2454 = vmatpush.msra.mxu0 %v960
        %2455 = vmatpush.msra.mxu0 %v956
        %2456 = vmatpush.msra.mxu0 %v952
        %2457 = vmatpush.msra.mxu0 %v948
        %2458 = vmatmul.f32.gmra.mxu0 %v2301
        %v2459 = vpop.f32.mrf.mxu0
        %v2460 = vadd.f32 %v2440, %v2459
        %2461 = vdwg.mxu0
        %2462 = vmatpush.msra.mxu0 %v817
        %2463 = vmatpush.msra.mxu0 %v813
        %2464 = vmatpush.msra.mxu0 %v809
        %2465 = vmatpush.msra.mxu0 %v805
        %2466 = vmatpush.msra.mxu0 %v801
        %2467 = vmatpush.msra.mxu0 %v797
        %2468 = vmatpush.msra.mxu0 %v793
        %2469 = vmatpush.msra.mxu0 %v789
        %2470 = vmatpush.msra.mxu0 %v785
        %2471 = vmatpush.msra.mxu0 %v781
        %2472 = vmatpush.msra.mxu0 %v777
        %2473 = vmatpush.msra.mxu0 %v773
        %2474 = vmatpush.msra.mxu0 %v769
        %2475 = vmatpush.msra.mxu0 %v765
        %2476 = vmatpush.msra.mxu0 %v761
        %2477 = vmatpush.msra.mxu0 %v757
        %2478 = vmatmul.f32.gmra.mxu0 %v2298
        %v2479 = vpop.f32.mrf.mxu0
        %v2480 = vadd.f32 0.0, %v2479
        %2481 = vdwg.mxu0
        %2482 = vmatpush.msra.mxu0 %v881
        %2483 = vmatpush.msra.mxu0 %v877
        %2484 = vmatpush.msra.mxu0 %v873
        %2485 = vmatpush.msra.mxu0 %v869
        %2486 = vmatpush.msra.mxu0 %v865
        %2487 = vmatpush.msra.mxu0 %v861
        %2488 = vmatpush.msra.mxu0 %v857
        %2489 = vmatpush.msra.mxu0 %v853
        %2490 = vmatpush.msra.mxu0 %v849
        %2491 = vmatpush.msra.mxu0 %v845
        %2492 = vmatpush.msra.mxu0 %v841
        %2493 = vmatpush.msra.mxu0 %v837
        %2494 = vmatpush.msra.mxu0 %v833
        %2495 = vmatpush.msra.mxu0 %v829
        %2496 = vmatpush.msra.mxu0 %v825
        %2497 = vmatpush.msra.mxu0 %v821
        %2498 = vmatmul.f32.gmra.mxu0 %v2299
        %v2499 = vpop.f32.mrf.mxu0
        %v2500 = vadd.f32 %v2480, %v2499
        %2501 = vdwg.mxu0
        %2502 = vmatpush.msra.mxu0 %v945
        %2503 = vmatpush.msra.mxu0 %v941
        %2504 = vmatpush.msra.mxu0 %v937
        %2505 = vmatpush.msra.mxu0 %v933
        %2506 = vmatpush.msra.mxu0 %v929
        %2507 = vmatpush.msra.mxu0 %v925
        %2508 = vmatpush.msra.mxu0 %v921
        %2509 = vmatpush.msra.mxu0 %v917
        %2510 = vmatpush.msra.mxu0 %v913
        %2511 = vmatpush.msra.mxu0 %v909
        %2512 = vmatpush.msra.mxu0 %v905
        %2513 = vmatpush.msra.mxu0 %v901
        %2514 = vmatpush.msra.mxu0 %v897
        %2515 = vmatpush.msra.mxu0 %v893
        %2516 = vmatpush.msra.mxu0 %v889
        %2517 = vmatpush.msra.mxu0 %v885
        %2518 = vmatmul.f32.gmra.mxu0 %v2300
        %v2519 = vpop.f32.mrf.mxu0
        %v2520 = vadd.f32 %v2500, %v2519
        %2521 = vdwg.mxu0
        %2522 = vmatpush.msra.mxu0 %v1009
        %2523 = vmatpush.msra.mxu0 %v1005
        %2524 = vmatpush.msra.mxu0 %v1001
        %2525 = vmatpush.msra.mxu0 %v997
        %2526 = vmatpush.msra.mxu0 %v993
        %2527 = vmatpush.msra.mxu0 %v989
        %2528 = vmatpush.msra.mxu0 %v985
        %2529 = vmatpush.msra.mxu0 %v981
        %2530 = vmatpush.msra.mxu0 %v977
        %2531 = vmatpush.msra.mxu0 %v973
        %2532 = vmatpush.msra.mxu0 %v969
        %2533 = vmatpush.msra.mxu0 %v965
        %2534 = vmatpush.msra.mxu0 %v961
        %2535 = vmatpush.msra.mxu0 %v957
        %2536 = vmatpush.msra.mxu0 %v953
        %2537 = vmatpush.msra.mxu0 %v949
        %2538 = vmatmul.f32.gmra.mxu0 %v2301
        %v2539 = vpop.f32.mrf.mxu0
        %v2540 = vadd.f32 %v2520, %v2539
        %2541 = vdwg.mxu0
        %2542 = vmatpush.msra.mxu0 %v818
        %2543 = vmatpush.msra.mxu0 %v814
        %2544 = vmatpush.msra.mxu0 %v810
        %2545 = vmatpush.msra.mxu0 %v806
        %2546 = vmatpush.msra.mxu0 %v802
        %2547 = vmatpush.msra.mxu0 %v798
        %2548 = vmatpush.msra.mxu0 %v794
        %2549 = vmatpush.msra.mxu0 %v790
        %2550 = vmatpush.msra.mxu0 %v786
        %2551 = vmatpush.msra.mxu0 %v782
        %2552 = vmatpush.msra.mxu0 %v778
        %2553 = vmatpush.msra.mxu0 %v774
        %2554 = vmatpush.msra.mxu0 %v770
        %2555 = vmatpush.msra.mxu0 %v766
        %2556 = vmatpush.msra.mxu0 %v762
        %2557 = vmatpush.msra.mxu0 %v758
        %2558 = vmatmul.f32.gmra.mxu0 %v2298
        %v2559 = vpop.f32.mrf.mxu0
        %v2560 = vadd.f32 0.0, %v2559
        %2561 = vdwg.mxu0
        %2562 = vmatpush.msra.mxu0 %v882
        %2563 = vmatpush.msra.mxu0 %v878
        %2564 = vmatpush.msra.mxu0 %v874
        %2565 = vmatpush.msra.mxu0 %v870
        %2566 = vmatpush.msra.mxu0 %v866
        %2567 = vmatpush.msra.mxu0 %v862
        %2568 = vmatpush.msra.mxu0 %v858
        %2569 = vmatpush.msra.mxu0 %v854
        %2570 = vmatpush.msra.mxu0 %v850
        %2571 = vmatpush.msra.mxu0 %v846
        %2572 = vmatpush.msra.mxu0 %v842
        %2573 = vmatpush.msra.mxu0 %v838
        %2574 = vmatpush.msra.mxu0 %v834
        %2575 = vmatpush.msra.mxu0 %v830
        %2576 = vmatpush.msra.mxu0 %v826
        %2577 = vmatpush.msra.mxu0 %v822
        %2578 = vmatmul.f32.gmra.mxu0 %v2299
        %v2579 = vpop.f32.mrf.mxu0
        %v2580 = vadd.f32 %v2560, %v2579
        %2581 = vdwg.mxu0
        %2582 = vmatpush.msra.mxu0 %v946
        %2583 = vmatpush.msra.mxu0 %v942
        %2584 = vmatpush.msra.mxu0 %v938
        %2585 = vmatpush.msra.mxu0 %v934
        %2586 = vmatpush.msra.mxu0 %v930
        %2587 = vmatpush.msra.mxu0 %v926
        %2588 = vmatpush.msra.mxu0 %v922
        %2589 = vmatpush.msra.mxu0 %v918
        %2590 = vmatpush.msra.mxu0 %v914
        %2591 = vmatpush.msra.mxu0 %v910
        %2592 = vmatpush.msra.mxu0 %v906
        %2593 = vmatpush.msra.mxu0 %v902
        %2594 = vmatpush.msra.mxu0 %v898
        %2595 = vmatpush.msra.mxu0 %v894
        %2596 = vmatpush.msra.mxu0 %v890
        %2597 = vmatpush.msra.mxu0 %v886
        %2598 = vmatmul.f32.gmra.mxu0 %v2300
        %v2599 = vpop.f32.mrf.mxu0
        %v2600 = vadd.f32 %v2580, %v2599
        %2601 = vdwg.mxu0
        %2602 = vmatpush.msra.mxu0 %v1010
        %2603 = vmatpush.msra.mxu0 %v1006
        %2604 = vmatpush.msra.mxu0 %v1002
        %2605 = vmatpush.msra.mxu0 %v998
        %2606 = vmatpush.msra.mxu0 %v994
        %2607 = vmatpush.msra.mxu0 %v990
        %2608 = vmatpush.msra.mxu0 %v986
        %2609 = vmatpush.msra.mxu0 %v982
        %2610 = vmatpush.msra.mxu0 %v978
        %2611 = vmatpush.msra.mxu0 %v974
        %2612 = vmatpush.msra.mxu0 %v970
        %2613 = vmatpush.msra.mxu0 %v966
        %2614 = vmatpush.msra.mxu0 %v962
        %2615 = vmatpush.msra.mxu0 %v958
        %2616 = vmatpush.msra.mxu0 %v954
        %2617 = vmatpush.msra.mxu0 %v950
        %2618 = vmatmul.f32.gmra.mxu0 %v2301
        %v2619 = vpop.f32.mrf.mxu0
        %v2620 = vadd.f32 %v2600, %v2619
        %2621 = vdwg.mxu0
        %v2622 = vadd.f32 %v2294, %v2380
        %v2623 = vadd.f32 %v2295, %v2460
        %v2624 = vadd.f32 %v2296, %v2540
        %v2625 = vadd.f32 %v2297, %v2620
        %2626 = vst [vmem:[#allocation2] sm:$0xff] %v2622
        %2627 = vst [vmem:[#allocation2 + $0x8] sm:$0xff] %v2623
        %2628 = vst [vmem:[#allocation2 + $0x10] sm:$0xff] %v2624
        %2629 = vst [vmem:[#allocation2 + $0x18] sm:$0xff] %v2625
        %v2630 = vld [vmem:[#allocation3] sm:$0xff]
        %v2631 = vld [vmem:[#allocation3 + $0x8] sm:$0xff]
        %v2632 = vld [vmem:[#allocation3 + $0x10] sm:$0xff]
        %v2633 = vld [vmem:[#allocation3 + $0x18] sm:$0xff]
        %v2634 = vld [vmem:[%s622] sm:$0xff]
        %v2635 = vld [vmem:[%s622 + $0x8] sm:$0xff]
        %v2636 = vld [vmem:[%s622 + $0x10] sm:$0xff]
        %v2637 = vld [vmem:[%s622 + $0x18] sm:$0xff]
        %2638 = vmatpush.msra.mxu0 %v1842
        %2639 = vmatpush.msra.mxu0 %v1838
        %2640 = vmatpush.msra.mxu0 %v1834
        %2641 = vmatpush.msra.mxu0 %v1830
        %2642 = vmatpush.msra.mxu0 %v1826
        %2643 = vmatpush.msra.mxu0 %v1822
        %2644 = vmatpush.msra.mxu0 %v1818
        %2645 = vmatpush.msra.mxu0 %v1814
        %2646 = vmatpush.msra.mxu0 %v1810
        %2647 = vmatpush.msra.mxu0 %v1806
        %2648 = vmatpush.msra.mxu0 %v1802
        %2649 = vmatpush.msra.mxu0 %v1798
        %2650 = vmatpush.msra.mxu0 %v1794
        %2651 = vmatpush.msra.mxu0 %v1790
        %2652 = vmatpush.msra.mxu0 %v1786
        %2653 = vmatpush.msra.mxu0 %v1782
        %2654 = vmatmul.f32.gmra.mxu0 %v2634
        %v2655 = vpop.f32.mrf.mxu0
        %v2656 = vadd.f32 0.0, %v2655
        %2657 = vdwg.mxu0
        %2658 = vmatpush.msra.mxu0 %v1906
        %2659 = vmatpush.msra.mxu0 %v1902
        %2660 = vmatpush.msra.mxu0 %v1898
        %2661 = vmatpush.msra.mxu0 %v1894
        %2662 = vmatpush.msra.mxu0 %v1890
        %2663 = vmatpush.msra.mxu0 %v1886
        %2664 = vmatpush.msra.mxu0 %v1882
        %2665 = vmatpush.msra.mxu0 %v1878
        %2666 = vmatpush.msra.mxu0 %v1874
        %2667 = vmatpush.msra.mxu0 %v1870
        %2668 = vmatpush.msra.mxu0 %v1866
        %2669 = vmatpush.msra.mxu0 %v1862
        %2670 = vmatpush.msra.mxu0 %v1858
        %2671 = vmatpush.msra.mxu0 %v1854
        %2672 = vmatpush.msra.mxu0 %v1850
        %2673 = vmatpush.msra.mxu0 %v1846
        %2674 = vmatmul.f32.gmra.mxu0 %v2635
        %v2675 = vpop.f32.mrf.mxu0
        %v2676 = vadd.f32 %v2656, %v2675
        %2677 = vdwg.mxu0
        %2678 = vmatpush.msra.mxu0 %v1970
        %2679 = vmatpush.msra.mxu0 %v1966
        %2680 = vmatpush.msra.mxu0 %v1962
        %2681 = vmatpush.msra.mxu0 %v1958
        %2682 = vmatpush.msra.mxu0 %v1954
        %2683 = vmatpush.msra.mxu0 %v1950
        %2684 = vmatpush.msra.mxu0 %v1946
        %2685 = vmatpush.msra.mxu0 %v1942
        %2686 = vmatpush.msra.mxu0 %v1938
        %2687 = vmatpush.msra.mxu0 %v1934
        %2688 = vmatpush.msra.mxu0 %v1930
        %2689 = vmatpush.msra.mxu0 %v1926
        %2690 = vmatpush.msra.mxu0 %v1922
        %2691 = vmatpush.msra.mxu0 %v1918
        %2692 = vmatpush.msra.mxu0 %v1914
        %2693 = vmatpush.msra.mxu0 %v1910
        %2694 = vmatmul.f32.gmra.mxu0 %v2636
        %v2695 = vpop.f32.mrf.mxu0
        %v2696 = vadd.f32 %v2676, %v2695
        %2697 = vdwg.mxu0
        %2698 = vmatpush.msra.mxu0 %v2034
        %2699 = vmatpush.msra.mxu0 %v2030
        %2700 = vmatpush.msra.mxu0 %v2026
        %2701 = vmatpush.msra.mxu0 %v2022
        %2702 = vmatpush.msra.mxu0 %v2018
        %2703 = vmatpush.msra.mxu0 %v2014
        %2704 = vmatpush.msra.mxu0 %v2010
        %2705 = vmatpush.msra.mxu0 %v2006
        %2706 = vmatpush.msra.mxu0 %v2002
        %2707 = vmatpush.msra.mxu0 %v1998
        %2708 = vmatpush.msra.mxu0 %v1994
        %2709 = vmatpush.msra.mxu0 %v1990
        %2710 = vmatpush.msra.mxu0 %v1986
        %2711 = vmatpush.msra.mxu0 %v1982
        %2712 = vmatpush.msra.mxu0 %v1978
        %2713 = vmatpush.msra.mxu0 %v1974
        %2714 = vmatmul.f32.gmra.mxu0 %v2637
        %v2715 = vpop.f32.mrf.mxu0
        %v2716 = vadd.f32 %v2696, %v2715
        %2717 = vdwg.mxu0
        %2718 = vmatpush.msra.mxu0 %v1843
        %2719 = vmatpush.msra.mxu0 %v1839
        %2720 = vmatpush.msra.mxu0 %v1835
        %2721 = vmatpush.msra.mxu0 %v1831
        %2722 = vmatpush.msra.mxu0 %v1827
        %2723 = vmatpush.msra.mxu0 %v1823
        %2724 = vmatpush.msra.mxu0 %v1819
        %2725 = vmatpush.msra.mxu0 %v1815
        %2726 = vmatpush.msra.mxu0 %v1811
        %2727 = vmatpush.msra.mxu0 %v1807
        %2728 = vmatpush.msra.mxu0 %v1803
        %2729 = vmatpush.msra.mxu0 %v1799
        %2730 = vmatpush.msra.mxu0 %v1795
        %2731 = vmatpush.msra.mxu0 %v1791
        %2732 = vmatpush.msra.mxu0 %v1787
        %2733 = vmatpush.msra.mxu0 %v1783
        %2734 = vmatmul.f32.gmra.mxu0 %v2634
        %v2735 = vpop.f32.mrf.mxu0
        %v2736 = vadd.f32 0.0, %v2735
        %2737 = vdwg.mxu0
        %2738 = vmatpush.msra.mxu0 %v1907
        %2739 = vmatpush.msra.mxu0 %v1903
        %2740 = vmatpush.msra.mxu0 %v1899
        %2741 = vmatpush.msra.mxu0 %v1895
        %2742 = vmatpush.msra.mxu0 %v1891
        %2743 = vmatpush.msra.mxu0 %v1887
        %2744 = vmatpush.msra.mxu0 %v1883
        %2745 = vmatpush.msra.mxu0 %v1879
        %2746 = vmatpush.msra.mxu0 %v1875
        %2747 = vmatpush.msra.mxu0 %v1871
        %2748 = vmatpush.msra.mxu0 %v1867
        %2749 = vmatpush.msra.mxu0 %v1863
        %2750 = vmatpush.msra.mxu0 %v1859
        %2751 = vmatpush.msra.mxu0 %v1855
        %2752 = vmatpush.msra.mxu0 %v1851
        %2753 = vmatpush.msra.mxu0 %v1847
        %2754 = vmatmul.f32.gmra.mxu0 %v2635
        %v2755 = vpop.f32.mrf.mxu0
        %v2756 = vadd.f32 %v2736, %v2755
        %2757 = vdwg.mxu0
        %2758 = vmatpush.msra.mxu0 %v1971
        %2759 = vmatpush.msra.mxu0 %v1967
        %2760 = vmatpush.msra.mxu0 %v1963
        %2761 = vmatpush.msra.mxu0 %v1959
        %2762 = vmatpush.msra.mxu0 %v1955
        %2763 = vmatpush.msra.mxu0 %v1951
        %2764 = vmatpush.msra.mxu0 %v1947
        %2765 = vmatpush.msra.mxu0 %v1943
        %2766 = vmatpush.msra.mxu0 %v1939
        %2767 = vmatpush.msra.mxu0 %v1935
        %2768 = vmatpush.msra.mxu0 %v1931
        %2769 = vmatpush.msra.mxu0 %v1927
        %2770 = vmatpush.msra.mxu0 %v1923
        %2771 = vmatpush.msra.mxu0 %v1919
        %2772 = vmatpush.msra.mxu0 %v1915
        %2773 = vmatpush.msra.mxu0 %v1911
        %2774 = vmatmul.f32.gmra.mxu0 %v2636
        %v2775 = vpop.f32.mrf.mxu0
        %v2776 = vadd.f32 %v2756, %v2775
        %2777 = vdwg.mxu0
        %2778 = vmatpush.msra.mxu0 %v2035
        %2779 = vmatpush.msra.mxu0 %v2031
        %2780 = vmatpush.msra.mxu0 %v2027
        %2781 = vmatpush.msra.mxu0 %v2023
        %2782 = vmatpush.msra.mxu0 %v2019
        %2783 = vmatpush.msra.mxu0 %v2015
        %2784 = vmatpush.msra.mxu0 %v2011
        %2785 = vmatpush.msra.mxu0 %v2007
        %2786 = vmatpush.msra.mxu0 %v2003
        %2787 = vmatpush.msra.mxu0 %v1999
        %2788 = vmatpush.msra.mxu0 %v1995
        %2789 = vmatpush.msra.mxu0 %v1991
        %2790 = vmatpush.msra.mxu0 %v1987
        %2791 = vmatpush.msra.mxu0 %v1983
        %2792 = vmatpush.msra.mxu0 %v1979
        %2793 = vmatpush.msra.mxu0 %v1975
        %2794 = vmatmul.f32.gmra.mxu0 %v2637
        %v2795 = vpop.f32.mrf.mxu0
        %v2796 = vadd.f32 %v2776, %v2795
        %2797 = vdwg.mxu0
        %2798 = vmatpush.msra.mxu0 %v1844
        %2799 = vmatpush.msra.mxu0 %v1840
        %2800 = vmatpush.msra.mxu0 %v1836
        %2801 = vmatpush.msra.mxu0 %v1832
        %2802 = vmatpush.msra.mxu0 %v1828
        %2803 = vmatpush.msra.mxu0 %v1824
        %2804 = vmatpush.msra.mxu0 %v1820
        %2805 = vmatpush.msra.mxu0 %v1816
        %2806 = vmatpush.msra.mxu0 %v1812
        %2807 = vmatpush.msra.mxu0 %v1808
        %2808 = vmatpush.msra.mxu0 %v1804
        %2809 = vmatpush.msra.mxu0 %v1800
        %2810 = vmatpush.msra.mxu0 %v1796
        %2811 = vmatpush.msra.mxu0 %v1792
        %2812 = vmatpush.msra.mxu0 %v1788
        %2813 = vmatpush.msra.mxu0 %v1784
        %2814 = vmatmul.f32.gmra.mxu0 %v2634
        %v2815 = vpop.f32.mrf.mxu0
        %v2816 = vadd.f32 0.0, %v2815
        %2817 = vdwg.mxu0
        %2818 = vmatpush.msra.mxu0 %v1908
        %2819 = vmatpush.msra.mxu0 %v1904
        %2820 = vmatpush.msra.mxu0 %v1900
        %2821 = vmatpush.msra.mxu0 %v1896
        %2822 = vmatpush.msra.mxu0 %v1892
        %2823 = vmatpush.msra.mxu0 %v1888
        %2824 = vmatpush.msra.mxu0 %v1884
        %2825 = vmatpush.msra.mxu0 %v1880
        %2826 = vmatpush.msra.mxu0 %v1876
        %2827 = vmatpush.msra.mxu0 %v1872
        %2828 = vmatpush.msra.mxu0 %v1868
        %2829 = vmatpush.msra.mxu0 %v1864
        %2830 = vmatpush.msra.mxu0 %v1860
        %2831 = vmatpush.msra.mxu0 %v1856
        %2832 = vmatpush.msra.mxu0 %v1852
        %2833 = vmatpush.msra.mxu0 %v1848
        %2834 = vmatmul.f32.gmra.mxu0 %v2635
        %v2835 = vpop.f32.mrf.mxu0
        %v2836 = vadd.f32 %v2816, %v2835
        %2837 = vdwg.mxu0
        %2838 = vmatpush.msra.mxu0 %v1972
        %2839 = vmatpush.msra.mxu0 %v1968
        %2840 = vmatpush.msra.mxu0 %v1964
        %2841 = vmatpush.msra.mxu0 %v1960
        %2842 = vmatpush.msra.mxu0 %v1956
        %2843 = vmatpush.msra.mxu0 %v1952
        %2844 = vmatpush.msra.mxu0 %v1948
        %2845 = vmatpush.msra.mxu0 %v1944
        %2846 = vmatpush.msra.mxu0 %v1940
        %2847 = vmatpush.msra.mxu0 %v1936
        %2848 = vmatpush.msra.mxu0 %v1932
        %2849 = vmatpush.msra.mxu0 %v1928
        %2850 = vmatpush.msra.mxu0 %v1924
        %2851 = vmatpush.msra.mxu0 %v1920
        %2852 = vmatpush.msra.mxu0 %v1916
        %2853 = vmatpush.msra.mxu0 %v1912
        %2854 = vmatmul.f32.gmra.mxu0 %v2636
        %v2855 = vpop.f32.mrf.mxu0
        %v2856 = vadd.f32 %v2836, %v2855
        %2857 = vdwg.mxu0
        %2858 = vmatpush.msra.mxu0 %v2036
        %2859 = vmatpush.msra.mxu0 %v2032
        %2860 = vmatpush.msra.mxu0 %v2028
        %2861 = vmatpush.msra.mxu0 %v2024
        %2862 = vmatpush.msra.mxu0 %v2020
        %2863 = vmatpush.msra.mxu0 %v2016
        %2864 = vmatpush.msra.mxu0 %v2012
        %2865 = vmatpush.msra.mxu0 %v2008
        %2866 = vmatpush.msra.mxu0 %v2004
        %2867 = vmatpush.msra.mxu0 %v2000
        %2868 = vmatpush.msra.mxu0 %v1996
        %2869 = vmatpush.msra.mxu0 %v1992
        %2870 = vmatpush.msra.mxu0 %v1988
        %2871 = vmatpush.msra.mxu0 %v1984
        %2872 = vmatpush.msra.mxu0 %v1980
        %2873 = vmatpush.msra.mxu0 %v1976
        %2874 = vmatmul.f32.gmra.mxu0 %v2637
        %v2875 = vpop.f32.mrf.mxu0
        %v2876 = vadd.f32 %v2856, %v2875
        %2877 = vdwg.mxu0
        %2878 = vmatpush.msra.mxu0 %v1845
        %2879 = vmatpush.msra.mxu0 %v1841
        %2880 = vmatpush.msra.mxu0 %v1837
        %2881 = vmatpush.msra.mxu0 %v1833
        %2882 = vmatpush.msra.mxu0 %v1829
        %2883 = vmatpush.msra.mxu0 %v1825
        %2884 = vmatpush.msra.mxu0 %v1821
        %2885 = vmatpush.msra.mxu0 %v1817
        %2886 = vmatpush.msra.mxu0 %v1813
        %2887 = vmatpush.msra.mxu0 %v1809
        %2888 = vmatpush.msra.mxu0 %v1805
        %2889 = vmatpush.msra.mxu0 %v1801
        %2890 = vmatpush.msra.mxu0 %v1797
        %2891 = vmatpush.msra.mxu0 %v1793
        %2892 = vmatpush.msra.mxu0 %v1789
        %2893 = vmatpush.msra.mxu0 %v1785
        %2894 = vmatmul.f32.gmra.mxu0 %v2634
        %v2895 = vpop.f32.mrf.mxu0
        %v2896 = vadd.f32 0.0, %v2895
        %2897 = vdwg.mxu0
        %2898 = vmatpush.msra.mxu0 %v1909
        %2899 = vmatpush.msra.mxu0 %v1905
        %2900 = vmatpush.msra.mxu0 %v1901
        %2901 = vmatpush.msra.mxu0 %v1897
        %2902 = vmatpush.msra.mxu0 %v1893
        %2903 = vmatpush.msra.mxu0 %v1889
        %2904 = vmatpush.msra.mxu0 %v1885
        %2905 = vmatpush.msra.mxu0 %v1881
        %2906 = vmatpush.msra.mxu0 %v1877
        %2907 = vmatpush.msra.mxu0 %v1873
        %2908 = vmatpush.msra.mxu0 %v1869
        %2909 = vmatpush.msra.mxu0 %v1865
        %2910 = vmatpush.msra.mxu0 %v1861
        %2911 = vmatpush.msra.mxu0 %v1857
        %2912 = vmatpush.msra.mxu0 %v1853
        %2913 = vmatpush.msra.mxu0 %v1849
        %2914 = vmatmul.f32.gmra.mxu0 %v2635
        %v2915 = vpop.f32.mrf.mxu0
        %v2916 = vadd.f32 %v2896, %v2915
        %2917 = vdwg.mxu0
        %2918 = vmatpush.msra.mxu0 %v1973
        %2919 = vmatpush.msra.mxu0 %v1969
        %2920 = vmatpush.msra.mxu0 %v1965
        %2921 = vmatpush.msra.mxu0 %v1961
        %2922 = vmatpush.msra.mxu0 %v1957
        %2923 = vmatpush.msra.mxu0 %v1953
        %2924 = vmatpush.msra.mxu0 %v1949
        %2925 = vmatpush.msra.mxu0 %v1945
        %2926 = vmatpush.msra.mxu0 %v1941
        %2927 = vmatpush.msra.mxu0 %v1937
        %2928 = vmatpush.msra.mxu0 %v1933
        %2929 = vmatpush.msra.mxu0 %v1929
        %2930 = vmatpush.msra.mxu0 %v1925
        %2931 = vmatpush.msra.mxu0 %v1921
        %2932 = vmatpush.msra.mxu0 %v1917
        %2933 = vmatpush.msra.mxu0 %v1913
        %2934 = vmatmul.f32.gmra.mxu0 %v2636
        %v2935 = vpop.f32.mrf.mxu0
        %v2936 = vadd.f32 %v2916, %v2935
        %2937 = vdwg.mxu0
        %2938 = vmatpush.msra.mxu0 %v2037
        %2939 = vmatpush.msra.mxu0 %v2033
        %2940 = vmatpush.msra.mxu0 %v2029
        %2941 = vmatpush.msra.mxu0 %v2025
        %2942 = vmatpush.msra.mxu0 %v2021
        %2943 = vmatpush.msra.mxu0 %v2017
        %2944 = vmatpush.msra.mxu0 %v2013
        %2945 = vmatpush.msra.mxu0 %v2009
        %2946 = vmatpush.msra.mxu0 %v2005
        %2947 = vmatpush.msra.mxu0 %v2001
        %2948 = vmatpush.msra.mxu0 %v1997
        %2949 = vmatpush.msra.mxu0 %v1993
        %2950 = vmatpush.msra.mxu0 %v1989
        %2951 = vmatpush.msra.mxu0 %v1985
        %2952 = vmatpush.msra.mxu0 %v1981
        %2953 = vmatpush.msra.mxu0 %v1977
        %2954 = vmatmul.f32.gmra.mxu0 %v2637
        %v2955 = vpop.f32.mrf.mxu0
        %v2956 = vadd.f32 %v2936, %v2955
        %2957 = vdwg.mxu0
        %v2958 = vadd.f32 %v2630, %v2716
        %v2959 = vadd.f32 %v2631, %v2796
        %v2960 = vadd.f32 %v2632, %v2876
        %v2961 = vadd.f32 %v2633, %v2956
        %2962 = vst [vmem:[#allocation3] sm:$0xff] %v2958
        %2963 = vst [vmem:[#allocation3 + $0x8] sm:$0xff] %v2959
        %2964 = vst [vmem:[#allocation3 + $0x10] sm:$0xff] %v2960
        %2965 = vst [vmem:[#allocation3 + $0x18] sm:$0xff] %v2961
        %p2966 = scmp.eq.s32.totalorder %s40, 1
        // Predicated region
        $region109: #{tpu_custom_call.1} parent=63 // pred_check
          %p2967 = pneg %p2966
        $region110: #{tpu_custom_call.1} parent=63 // pred_check_branch
          %2969 = sbr.rel (%p2967) target = $region112
        $region111: #{tpu_custom_call.1} parent=63 // pred_region
          %v2970 = vld [vmem:[#allocation11] sm:$0xf]
          %v2971 = vld [vmem:[#allocation13] sm:$0xff]
          %v2972 = vld [vmem:[#allocation13 + $0x8] sm:$0xff]
          %v2973 = vld [vmem:[#allocation13 + $0x10] sm:$0xff]
          %v2974 = vld [vmem:[#allocation13 + $0x18] sm:$0xff]
          %v2975 = vld [vmem:[#allocation13 + $0x20] sm:$0xff]
          %v2976 = vld [vmem:[#allocation13 + $0x28] sm:$0xff]
          %v2977 = vld [vmem:[#allocation13 + $0x30] sm:$0xff]
          %v2978 = vld [vmem:[#allocation13 + $0x38] sm:$0xff]
          %v2979 = vld [vmem:[#allocation13 + $0x40] sm:$0xff]
          %v2980 = vld [vmem:[#allocation13 + $0x48] sm:$0xff]
          %v2981 = vld [vmem:[#allocation13 + $0x50] sm:$0xff]
          %v2982 = vld [vmem:[#allocation13 + $0x58] sm:$0xff]
          %v2983 = vld [vmem:[#allocation13 + $0x60] sm:$0xff]
          %v2984 = vld [vmem:[#allocation13 + $0x68] sm:$0xff]
          %v2985 = vld [vmem:[#allocation13 + $0x70] sm:$0xff]
          %v2986 = vld [vmem:[#allocation13 + $0x78] sm:$0xff]
          %v2987 = vld [vmem:[#allocation13 + $0x80] sm:$0xff]
          %v2988 = vld [vmem:[#allocation13 + $0x88] sm:$0xff]
          %v2989 = vld [vmem:[#allocation13 + $0x90] sm:$0xff]
          %v2990 = vld [vmem:[#allocation13 + $0x98] sm:$0xff]
          %v2991 = vld [vmem:[#allocation13 + $0xa0] sm:$0xff]
          %v2992 = vld [vmem:[#allocation13 + $0xa8] sm:$0xff]
          %v2993 = vld [vmem:[#allocation13 + $0xb0] sm:$0xff]
          %v2994 = vld [vmem:[#allocation13 + $0xb8] sm:$0xff]
          %v2995 = vld [vmem:[#allocation13 + $0xc0] sm:$0xff]
          %v2996 = vld [vmem:[#allocation13 + $0xc8] sm:$0xff]
          %v2997 = vld [vmem:[#allocation13 + $0xd0] sm:$0xff]
          %v2998 = vld [vmem:[#allocation13 + $0xd8] sm:$0xff]
          %v2999 = vld [vmem:[#allocation13 + $0xe0] sm:$0xff]
          %v3000 = vld [vmem:[#allocation13 + $0xe8] sm:$0xff]
          %v3001 = vld [vmem:[#allocation13 + $0xf0] sm:$0xff]
          %v3002 = vld [vmem:[#allocation13 + $0xf8] sm:$0xff]
          %v3003 = vld [vmem:[#allocation13 + $0x100] sm:$0xff]
          %v3004 = vld [vmem:[#allocation13 + $0x108] sm:$0xff]
          %v3005 = vld [vmem:[#allocation13 + $0x110] sm:$0xff]
          %v3006 = vld [vmem:[#allocation13 + $0x118] sm:$0xff]
          %v3007 = vld [vmem:[#allocation13 + $0x120] sm:$0xff]
          %v3008 = vld [vmem:[#allocation13 + $0x128] sm:$0xff]
          %v3009 = vld [vmem:[#allocation13 + $0x130] sm:$0xff]
          %v3010 = vld [vmem:[#allocation13 + $0x138] sm:$0xff]
          %v3011 = vld [vmem:[#allocation13 + $0x140] sm:$0xff]
          %v3012 = vld [vmem:[#allocation13 + $0x148] sm:$0xff]
          %v3013 = vld [vmem:[#allocation13 + $0x150] sm:$0xff]
          %v3014 = vld [vmem:[#allocation13 + $0x158] sm:$0xff]
          %v3015 = vld [vmem:[#allocation13 + $0x160] sm:$0xff]
          %v3016 = vld [vmem:[#allocation13 + $0x168] sm:$0xff]
          %v3017 = vld [vmem:[#allocation13 + $0x170] sm:$0xff]
          %v3018 = vld [vmem:[#allocation13 + $0x178] sm:$0xff]
          %v3019 = vld [vmem:[#allocation13 + $0x180] sm:$0xff]
          %v3020 = vld [vmem:[#allocation13 + $0x188] sm:$0xff]
          %v3021 = vld [vmem:[#allocation13 + $0x190] sm:$0xff]
          %v3022 = vld [vmem:[#allocation13 + $0x198] sm:$0xff]
          %v3023 = vld [vmem:[#allocation13 + $0x1a0] sm:$0xff]
          %v3024 = vld [vmem:[#allocation13 + $0x1a8] sm:$0xff]
          %v3025 = vld [vmem:[#allocation13 + $0x1b0] sm:$0xff]
          %v3026 = vld [vmem:[#allocation13 + $0x1b8] sm:$0xff]
          %v3027 = vld [vmem:[#allocation13 + $0x1c0] sm:$0xff]
          %v3028 = vld [vmem:[#allocation13 + $0x1c8] sm:$0xff]
          %v3029 = vld [vmem:[#allocation13 + $0x1d0] sm:$0xff]
          %v3030 = vld [vmem:[#allocation13 + $0x1d8] sm:$0xff]
          %v3031 = vld [vmem:[#allocation13 + $0x1e0] sm:$0xff]
          %v3032 = vld [vmem:[#allocation13 + $0x1e8] sm:$0xff]
          %v3033 = vld [vmem:[#allocation13 + $0x1f0] sm:$0xff]
          %v3034 = vld [vmem:[#allocation13 + $0x1f8] sm:$0xff]
          %v3035 = vld [vmem:[#allocation14] sm:$0x1]
          %v3036 = vld [vmem:[#allocation17] sm:$0xf]
          %v3037 = vmul.f32 %v3036, %v1267
          %v3038 = vmul.f32 %v2970, %v1525
          %v3039 = vadd.f32 %v3037, %v3038
          %v3040 = vld [vmem:[#allocation18] sm:$0xff]
          %v3041 = vld [vmem:[#allocation18 + $0x8] sm:$0xff]
          %v3042 = vld [vmem:[#allocation18 + $0x10] sm:$0xff]
          %v3043 = vld [vmem:[#allocation18 + $0x18] sm:$0xff]
          %v3044 = vld [vmem:[#allocation18 + $0x20] sm:$0xff]
          %v3045 = vld [vmem:[#allocation18 + $0x28] sm:$0xff]
          %v3046 = vld [vmem:[#allocation18 + $0x30] sm:$0xff]
          %v3047 = vld [vmem:[#allocation18 + $0x38] sm:$0xff]
          %v3048 = vld [vmem:[#allocation18 + $0x40] sm:$0xff]
          %v3049 = vld [vmem:[#allocation18 + $0x48] sm:$0xff]
          %v3050 = vld [vmem:[#allocation18 + $0x50] sm:$0xff]
          %v3051 = vld [vmem:[#allocation18 + $0x58] sm:$0xff]
          %v3052 = vld [vmem:[#allocation18 + $0x60] sm:$0xff]
          %v3053 = vld [vmem:[#allocation18 + $0x68] sm:$0xff]
          %v3054 = vld [vmem:[#allocation18 + $0x70] sm:$0xff]
          %v3055 = vld [vmem:[#allocation18 + $0x78] sm:$0xff]
          %v3056 = vld [vmem:[#allocation18 + $0x80] sm:$0xff]
          %v3057 = vld [vmem:[#allocation18 + $0x88] sm:$0xff]
          %v3058 = vld [vmem:[#allocation18 + $0x90] sm:$0xff]
          %v3059 = vld [vmem:[#allocation18 + $0x98] sm:$0xff]
          %v3060 = vld [vmem:[#allocation18 + $0xa0] sm:$0xff]
          %v3061 = vld [vmem:[#allocation18 + $0xa8] sm:$0xff]
          %v3062 = vld [vmem:[#allocation18 + $0xb0] sm:$0xff]
          %v3063 = vld [vmem:[#allocation18 + $0xb8] sm:$0xff]
          %v3064 = vld [vmem:[#allocation18 + $0xc0] sm:$0xff]
          %v3065 = vld [vmem:[#allocation18 + $0xc8] sm:$0xff]
          %v3066 = vld [vmem:[#allocation18 + $0xd0] sm:$0xff]
          %v3067 = vld [vmem:[#allocation18 + $0xd8] sm:$0xff]
          %v3068 = vld [vmem:[#allocation18 + $0xe0] sm:$0xff]
          %v3069 = vld [vmem:[#allocation18 + $0xe8] sm:$0xff]
          %v3070 = vld [vmem:[#allocation18 + $0xf0] sm:$0xff]
          %v3071 = vld [vmem:[#allocation18 + $0xf8] sm:$0xff]
          %v3072 = vld [vmem:[#allocation18 + $0x100] sm:$0xff]
          %v3073 = vld [vmem:[#allocation18 + $0x108] sm:$0xff]
          %v3074 = vld [vmem:[#allocation18 + $0x110] sm:$0xff]
          %v3075 = vld [vmem:[#allocation18 + $0x118] sm:$0xff]
          %v3076 = vld [vmem:[#allocation18 + $0x120] sm:$0xff]
          %v3077 = vld [vmem:[#allocation18 + $0x128] sm:$0xff]
          %v3078 = vld [vmem:[#allocation18 + $0x130] sm:$0xff]
          %v3079 = vld [vmem:[#allocation18 + $0x138] sm:$0xff]
          %v3080 = vld [vmem:[#allocation18 + $0x140] sm:$0xff]
          %v3081 = vld [vmem:[#allocation18 + $0x148] sm:$0xff]
          %v3082 = vld [vmem:[#allocation18 + $0x150] sm:$0xff]
          %v3083 = vld [vmem:[#allocation18 + $0x158] sm:$0xff]
          %v3084 = vld [vmem:[#allocation18 + $0x160] sm:$0xff]
          %v3085 = vld [vmem:[#allocation18 + $0x168] sm:$0xff]
          %v3086 = vld [vmem:[#allocation18 + $0x170] sm:$0xff]
          %v3087 = vld [vmem:[#allocation18 + $0x178] sm:$0xff]
          %v3088 = vld [vmem:[#allocation18 + $0x180] sm:$0xff]
          %v3089 = vld [vmem:[#allocation18 + $0x188] sm:$0xff]
          %v3090 = vld [vmem:[#allocation18 + $0x190] sm:$0xff]
          %v3091 = vld [vmem:[#allocation18 + $0x198] sm:$0xff]
          %v3092 = vld [vmem:[#allocation18 + $0x1a0] sm:$0xff]
          %v3093 = vld [vmem:[#allocation18 + $0x1a8] sm:$0xff]
          %v3094 = vld [vmem:[#allocation18 + $0x1b0] sm:$0xff]
          %v3095 = vld [vmem:[#allocation18 + $0x1b8] sm:$0xff]
          %v3096 = vld [vmem:[#allocation18 + $0x1c0] sm:$0xff]
          %v3097 = vld [vmem:[#allocation18 + $0x1c8] sm:$0xff]
          %v3098 = vld [vmem:[#allocation18 + $0x1d0] sm:$0xff]
          %v3099 = vld [vmem:[#allocation18 + $0x1d8] sm:$0xff]
          %v3100 = vld [vmem:[#allocation18 + $0x1e0] sm:$0xff]
          %v3101 = vld [vmem:[#allocation18 + $0x1e8] sm:$0xff]
          %v3102 = vld [vmem:[#allocation18 + $0x1f0] sm:$0xff]
          %v3103 = vld [vmem:[#allocation18 + $0x1f8] sm:$0xff]
          %v3104 = vmul.f32 %v3040, %v1267
          %v3105 = vmul.f32 %v3041, %v1267
          %v3106 = vmul.f32 %v3042, %v1267
          %v3107 = vmul.f32 %v3043, %v1267
          %v3108 = vmul.f32 %v3044, %v1267
          %v3109 = vmul.f32 %v3045, %v1267
          %v3110 = vmul.f32 %v3046, %v1267
          %v3111 = vmul.f32 %v3047, %v1267
          %v3112 = vmul.f32 %v3048, %v1267
          %v3113 = vmul.f32 %v3049, %v1267
          %v3114 = vmul.f32 %v3050, %v1267
          %v3115 = vmul.f32 %v3051, %v1267
          %v3116 = vmul.f32 %v3052, %v1267
          %v3117 = vmul.f32 %v3053, %v1267
          %v3118 = vmul.f32 %v3054, %v1267
          %v3119 = vmul.f32 %v3055, %v1267
          %v3120 = vmul.f32 %v3056, %v1267
          %v3121 = vmul.f32 %v3057, %v1267
          %v3122 = vmul.f32 %v3058, %v1267
          %v3123 = vmul.f32 %v3059, %v1267
          %v3124 = vmul.f32 %v3060, %v1267
          %v3125 = vmul.f32 %v3061, %v1267
          %v3126 = vmul.f32 %v3062, %v1267
          %v3127 = vmul.f32 %v3063, %v1267
          %v3128 = vmul.f32 %v3064, %v1267
          %v3129 = vmul.f32 %v3065, %v1267
          %v3130 = vmul.f32 %v3066, %v1267
          %v3131 = vmul.f32 %v3067, %v1267
          %v3132 = vmul.f32 %v3068, %v1267
          %v3133 = vmul.f32 %v3069, %v1267
          %v3134 = vmul.f32 %v3070, %v1267
          %v3135 = vmul.f32 %v3071, %v1267
          %v3136 = vmul.f32 %v3072, %v1267
          %v3137 = vmul.f32 %v3073, %v1267
          %v3138 = vmul.f32 %v3074, %v1267
          %v3139 = vmul.f32 %v3075, %v1267
          %v3140 = vmul.f32 %v3076, %v1267
          %v3141 = vmul.f32 %v3077, %v1267
          %v3142 = vmul.f32 %v3078, %v1267
          %v3143 = vmul.f32 %v3079, %v1267
          %v3144 = vmul.f32 %v3080, %v1267
          %v3145 = vmul.f32 %v3081, %v1267
          %v3146 = vmul.f32 %v3082, %v1267
          %v3147 = vmul.f32 %v3083, %v1267
          %v3148 = vmul.f32 %v3084, %v1267
          %v3149 = vmul.f32 %v3085, %v1267
          %v3150 = vmul.f32 %v3086, %v1267
          %v3151 = vmul.f32 %v3087, %v1267
          %v3152 = vmul.f32 %v3088, %v1267
          %v3153 = vmul.f32 %v3089, %v1267
          %v3154 = vmul.f32 %v3090, %v1267
          %v3155 = vmul.f32 %v3091, %v1267
          %v3156 = vmul.f32 %v3092, %v1267
          %v3157 = vmul.f32 %v3093, %v1267
          %v3158 = vmul.f32 %v3094, %v1267
          %v3159 = vmul.f32 %v3095, %v1267
          %v3160 = vmul.f32 %v3096, %v1267
          %v3161 = vmul.f32 %v3097, %v1267
          %v3162 = vmul.f32 %v3098, %v1267
          %v3163 = vmul.f32 %v3099, %v1267
          %v3164 = vmul.f32 %v3100, %v1267
          %v3165 = vmul.f32 %v3101, %v1267
          %v3166 = vmul.f32 %v3102, %v1267
          %v3167 = vmul.f32 %v3103, %v1267
          %v3168 = vmul.f32 %v2971, %v1525
          %v3169 = vmul.f32 %v2972, %v1525
          %v3170 = vmul.f32 %v2973, %v1525
          %v3171 = vmul.f32 %v2974, %v1525
          %v3172 = vmul.f32 %v2975, %v1525
          %v3173 = vmul.f32 %v2976, %v1525
          %v3174 = vmul.f32 %v2977, %v1525
          %v3175 = vmul.f32 %v2978, %v1525
          %v3176 = vmul.f32 %v2979, %v1525
          %v3177 = vmul.f32 %v2980, %v1525
          %v3178 = vmul.f32 %v2981, %v1525
          %v3179 = vmul.f32 %v2982, %v1525
          %v3180 = vmul.f32 %v2983, %v1525
          %v3181 = vmul.f32 %v2984, %v1525
          %v3182 = vmul.f32 %v2985, %v1525
          %v3183 = vmul.f32 %v2986, %v1525
          %v3184 = vmul.f32 %v2987, %v1525
          %v3185 = vmul.f32 %v2988, %v1525
          %v3186 = vmul.f32 %v2989, %v1525
          %v3187 = vmul.f32 %v2990, %v1525
          %v3188 = vmul.f32 %v2991, %v1525
          %v3189 = vmul.f32 %v2992, %v1525
          %v3190 = vmul.f32 %v2993, %v1525
          %v3191 = vmul.f32 %v2994, %v1525
          %v3192 = vmul.f32 %v2995, %v1525
          %v3193 = vmul.f32 %v2996, %v1525
          %v3194 = vmul.f32 %v2997, %v1525
          %v3195 = vmul.f32 %v2998, %v1525
          %v3196 = vmul.f32 %v2999, %v1525
          %v3197 = vmul.f32 %v3000, %v1525
          %v3198 = vmul.f32 %v3001, %v1525
          %v3199 = vmul.f32 %v3002, %v1525
          %v3200 = vmul.f32 %v3003, %v1525
          %v3201 = vmul.f32 %v3004, %v1525
          %v3202 = vmul.f32 %v3005, %v1525
          %v3203 = vmul.f32 %v3006, %v1525
          %v3204 = vmul.f32 %v3007, %v1525
          %v3205 = vmul.f32 %v3008, %v1525
          %v3206 = vmul.f32 %v3009, %v1525
          %v3207 = vmul.f32 %v3010, %v1525
          %v3208 = vmul.f32 %v3011, %v1525
          %v3209 = vmul.f32 %v3012, %v1525
          %v3210 = vmul.f32 %v3013, %v1525
          %v3211 = vmul.f32 %v3014, %v1525
          %v3212 = vmul.f32 %v3015, %v1525
          %v3213 = vmul.f32 %v3016, %v1525
          %v3214 = vmul.f32 %v3017, %v1525
          %v3215 = vmul.f32 %v3018, %v1525
          %v3216 = vmul.f32 %v3019, %v1525
          %v3217 = vmul.f32 %v3020, %v1525
          %v3218 = vmul.f32 %v3021, %v1525
          %v3219 = vmul.f32 %v3022, %v1525
          %v3220 = vmul.f32 %v3023, %v1525
          %v3221 = vmul.f32 %v3024, %v1525
          %v3222 = vmul.f32 %v3025, %v1525
          %v3223 = vmul.f32 %v3026, %v1525
          %v3224 = vmul.f32 %v3027, %v1525
          %v3225 = vmul.f32 %v3028, %v1525
          %v3226 = vmul.f32 %v3029, %v1525
          %v3227 = vmul.f32 %v3030, %v1525
          %v3228 = vmul.f32 %v3031, %v1525
          %v3229 = vmul.f32 %v3032, %v1525
          %v3230 = vmul.f32 %v3033, %v1525
          %v3231 = vmul.f32 %v3034, %v1525
          %v3232 = vadd.f32 %v3104, %v3168
          %v3233 = vadd.f32 %v3105, %v3169
          %v3234 = vadd.f32 %v3106, %v3170
          %v3235 = vadd.f32 %v3107, %v3171
          %v3236 = vadd.f32 %v3108, %v3172
          %v3237 = vadd.f32 %v3109, %v3173
          %v3238 = vadd.f32 %v3110, %v3174
          %v3239 = vadd.f32 %v3111, %v3175
          %v3240 = vadd.f32 %v3112, %v3176
          %v3241 = vadd.f32 %v3113, %v3177
          %v3242 = vadd.f32 %v3114, %v3178
          %v3243 = vadd.f32 %v3115, %v3179
          %v3244 = vadd.f32 %v3116, %v3180
          %v3245 = vadd.f32 %v3117, %v3181
          %v3246 = vadd.f32 %v3118, %v3182
          %v3247 = vadd.f32 %v3119, %v3183
          %v3248 = vadd.f32 %v3120, %v3184
          %v3249 = vadd.f32 %v3121, %v3185
          %v3250 = vadd.f32 %v3122, %v3186
          %v3251 = vadd.f32 %v3123, %v3187
          %v3252 = vadd.f32 %v3124, %v3188
          %v3253 = vadd.f32 %v3125, %v3189
          %v3254 = vadd.f32 %v3126, %v3190
          %v3255 = vadd.f32 %v3127, %v3191
          %v3256 = vadd.f32 %v3128, %v3192
          %v3257 = vadd.f32 %v3129, %v3193
          %v3258 = vadd.f32 %v3130, %v3194
          %v3259 = vadd.f32 %v3131, %v3195
          %v3260 = vadd.f32 %v3132, %v3196
          %v3261 = vadd.f32 %v3133, %v3197
          %v3262 = vadd.f32 %v3134, %v3198
          %v3263 = vadd.f32 %v3135, %v3199
          %v3264 = vadd.f32 %v3136, %v3200
          %v3265 = vadd.f32 %v3137, %v3201
          %v3266 = vadd.f32 %v3138, %v3202
          %v3267 = vadd.f32 %v3139, %v3203
          %v3268 = vadd.f32 %v3140, %v3204
          %v3269 = vadd.f32 %v3141, %v3205
          %v3270 = vadd.f32 %v3142, %v3206
          %v3271 = vadd.f32 %v3143, %v3207
          %v3272 = vadd.f32 %v3144, %v3208
          %v3273 = vadd.f32 %v3145, %v3209
          %v3274 = vadd.f32 %v3146, %v3210
          %v3275 = vadd.f32 %v3147, %v3211
          %v3276 = vadd.f32 %v3148, %v3212
          %v3277 = vadd.f32 %v3149, %v3213
          %v3278 = vadd.f32 %v3150, %v3214
          %v3279 = vadd.f32 %v3151, %v3215
          %v3280 = vadd.f32 %v3152, %v3216
          %v3281 = vadd.f32 %v3153, %v3217
          %v3282 = vadd.f32 %v3154, %v3218
          %v3283 = vadd.f32 %v3155, %v3219
          %v3284 = vadd.f32 %v3156, %v3220
          %v3285 = vadd.f32 %v3157, %v3221
          %v3286 = vadd.f32 %v3158, %v3222
          %v3287 = vadd.f32 %v3159, %v3223
          %v3288 = vadd.f32 %v3160, %v3224
          %v3289 = vadd.f32 %v3161, %v3225
          %v3290 = vadd.f32 %v3162, %v3226
          %v3291 = vadd.f32 %v3163, %v3227
          %v3292 = vadd.f32 %v3164, %v3228
          %v3293 = vadd.f32 %v3165, %v3229
          %v3294 = vadd.f32 %v3166, %v3230
          %v3295 = vadd.f32 %v3167, %v3231
          %v3296 = vld [vmem:[#allocation19] sm:$0x1]
          %v3297 = vmul.f32 %v3296, %v1267
          %v3298 = vmul.f32 %v3035, %v1525
          %v3299 = vadd.f32 %v3297, %v3298
          %v3300 = vlaneseq
          %vm3301 = vcmp.ge.s32.totalorder %v3300, 0
          %vm3302 = vcmp.lt.s32.totalorder %v3300, 512
          %vm3303 = vmand %vm3301, %vm3302
          %3304 = vst.msk [vmem:[#allocation24] sm:$0xf] %vm3303, %v3039
          %3305 = vst [vmem:[#allocation25] sm:$0xff] %v3232
          %3306 = vst [vmem:[#allocation25 + $0x8] sm:$0xff] %v3233
          %3307 = vst [vmem:[#allocation25 + $0x10] sm:$0xff] %v3234
          %3308 = vst [vmem:[#allocation25 + $0x18] sm:$0xff] %v3235
          %3309 = vst [vmem:[#allocation25 + $0x20] sm:$0xff] %v3236
          %3310 = vst [vmem:[#allocation25 + $0x28] sm:$0xff] %v3237
          %3311 = vst [vmem:[#allocation25 + $0x30] sm:$0xff] %v3238
          %3312 = vst [vmem:[#allocation25 + $0x38] sm:$0xff] %v3239
          %3313 = vst [vmem:[#allocation25 + $0x40] sm:$0xff] %v3240
          %3314 = vst [vmem:[#allocation25 + $0x48] sm:$0xff] %v3241
          %3315 = vst [vmem:[#allocation25 + $0x50] sm:$0xff] %v3242
          %3316 = vst [vmem:[#allocation25 + $0x58] sm:$0xff] %v3243
          %3317 = vst [vmem:[#allocation25 + $0x60] sm:$0xff] %v3244
          %3318 = vst [vmem:[#allocation25 + $0x68] sm:$0xff] %v3245
          %3319 = vst [vmem:[#allocation25 + $0x70] sm:$0xff] %v3246
          %3320 = vst [vmem:[#allocation25 + $0x78] sm:$0xff] %v3247
          %3321 = vst [vmem:[#allocation25 + $0x80] sm:$0xff] %v3248
          %3322 = vst [vmem:[#allocation25 + $0x88] sm:$0xff] %v3249
          %3323 = vst [vmem:[#allocation25 + $0x90] sm:$0xff] %v3250
          %3324 = vst [vmem:[#allocation25 + $0x98] sm:$0xff] %v3251
          %3325 = vst [vmem:[#allocation25 + $0xa0] sm:$0xff] %v3252
          %3326 = vst [vmem:[#allocation25 + $0xa8] sm:$0xff] %v3253
          %3327 = vst [vmem:[#allocation25 + $0xb0] sm:$0xff] %v3254
          %3328 = vst [vmem:[#allocation25 + $0xb8] sm:$0xff] %v3255
          %3329 = vst [vmem:[#allocation25 + $0xc0] sm:$0xff] %v3256
          %3330 = vst [vmem:[#allocation25 + $0xc8] sm:$0xff] %v3257
          %3331 = vst [vmem:[#allocation25 + $0xd0] sm:$0xff] %v3258
          %3332 = vst [vmem:[#allocation25 + $0xd8] sm:$0xff] %v3259
          %3333 = vst [vmem:[#allocation25 + $0xe0] sm:$0xff] %v3260
          %3334 = vst [vmem:[#allocation25 + $0xe8] sm:$0xff] %v3261
          %3335 = vst [vmem:[#allocation25 + $0xf0] sm:$0xff] %v3262
          %3336 = vst [vmem:[#allocation25 + $0xf8] sm:$0xff] %v3263
          %3337 = vst [vmem:[#allocation25 + $0x100] sm:$0xff] %v3264
          %3338 = vst [vmem:[#allocation25 + $0x108] sm:$0xff] %v3265
          %3339 = vst [vmem:[#allocation25 + $0x110] sm:$0xff] %v3266
          %3340 = vst [vmem:[#allocation25 + $0x118] sm:$0xff] %v3267
          %3341 = vst [vmem:[#allocation25 + $0x120] sm:$0xff] %v3268
          %3342 = vst [vmem:[#allocation25 + $0x128] sm:$0xff] %v3269
          %3343 = vst [vmem:[#allocation25 + $0x130] sm:$0xff] %v3270
          %3344 = vst [vmem:[#allocation25 + $0x138] sm:$0xff] %v3271
          %3345 = vst [vmem:[#allocation25 + $0x140] sm:$0xff] %v3272
          %3346 = vst [vmem:[#allocation25 + $0x148] sm:$0xff] %v3273
          %3347 = vst [vmem:[#allocation25 + $0x150] sm:$0xff] %v3274
          %3348 = vst [vmem:[#allocation25 + $0x158] sm:$0xff] %v3275
          %3349 = vst [vmem:[#allocation25 + $0x160] sm:$0xff] %v3276
          %3350 = vst [vmem:[#allocation25 + $0x168] sm:$0xff] %v3277
          %3351 = vst [vmem:[#allocation25 + $0x170] sm:$0xff] %v3278
          %3352 = vst [vmem:[#allocation25 + $0x178] sm:$0xff] %v3279
          %3353 = vst [vmem:[#allocation25 + $0x180] sm:$0xff] %v3280
          %3354 = vst [vmem:[#allocation25 + $0x188] sm:$0xff] %v3281
          %3355 = vst [vmem:[#allocation25 + $0x190] sm:$0xff] %v3282
          %3356 = vst [vmem:[#allocation25 + $0x198] sm:$0xff] %v3283
          %3357 = vst [vmem:[#allocation25 + $0x1a0] sm:$0xff] %v3284
          %3358 = vst [vmem:[#allocation25 + $0x1a8] sm:$0xff] %v3285
          %3359 = vst [vmem:[#allocation25 + $0x1b0] sm:$0xff] %v3286
          %3360 = vst [vmem:[#allocation25 + $0x1b8] sm:$0xff] %v3287
          %3361 = vst [vmem:[#allocation25 + $0x1c0] sm:$0xff] %v3288
          %3362 = vst [vmem:[#allocation25 + $0x1c8] sm:$0xff] %v3289
          %3363 = vst [vmem:[#allocation25 + $0x1d0] sm:$0xff] %v3290
          %3364 = vst [vmem:[#allocation25 + $0x1d8] sm:$0xff] %v3291
          %3365 = vst [vmem:[#allocation25 + $0x1e0] sm:$0xff] %v3292
          %3366 = vst [vmem:[#allocation25 + $0x1e8] sm:$0xff] %v3293
          %3367 = vst [vmem:[#allocation25 + $0x1f0] sm:$0xff] %v3294
          %3368 = vst [vmem:[#allocation25 + $0x1f8] sm:$0xff] %v3295
          %3369 = vst [vmem:[#allocation27] sm:$0x1] %v3299
          %v3370 = vld [vmem:[#allocation2] sm:$0xff]
          %v3371 = vld [vmem:[#allocation2 + $0x8] sm:$0xff]
          %v3372 = vld [vmem:[#allocation2 + $0x10] sm:$0xff]
          %v3373 = vld [vmem:[#allocation2 + $0x18] sm:$0xff]
          %v3375 = vperm.slane %v2970, 0
          %v3376 = vperm.slane %v2970, 1
          %v3377 = vperm.slane %v2970, 2
          %v3378 = vperm.slane %v2970, 3
          %v3383 = vadd.f32 %v3370, %v3375
          %v3384 = vadd.f32 %v3371, %v3376
          %v3385 = vadd.f32 %v3372, %v3377
          %v3386 = vadd.f32 %v3373, %v3378
          %v3387 = vmax.f32 %v3383, 0.0
          %v3388 = vmax.f32 %v3384, 0.0
          %v3389 = vmax.f32 %v3385, 0.0
          %v3390 = vmax.f32 %v3386, 0.0
          %v3392 = vperm.slane %v3035, 0
          %3394 = vmatpush.msra.mxu0 %v2986
          %3395 = vmatpush.msra.mxu0 %v2985
          %3396 = vmatpush.msra.mxu0 %v2984
          %3397 = vmatpush.msra.mxu0 %v2983
          %3398 = vmatpush.msra.mxu0 %v2982
          %3399 = vmatpush.msra.mxu0 %v2981
          %3400 = vmatpush.msra.mxu0 %v2980
          %3401 = vmatpush.msra.mxu0 %v2979
          %3402 = vmatpush.msra.mxu0 %v2978
          %3403 = vmatpush.msra.mxu0 %v2977
          %3404 = vmatpush.msra.mxu0 %v2976
          %3405 = vmatpush.msra.mxu0 %v2975
          %3406 = vmatpush.msra.mxu0 %v2974
          %3407 = vmatpush.msra.mxu0 %v2973
          %3408 = vmatpush.msra.mxu0 %v2972
          %3409 = vmatpush.msra.mxu0 %v2971
          %3410 = vmatmul.f32.gmra.mxu0 %v3387
          %v3411 = vpop.f32.mrf.mxu0
          %v3412 = vadd.f32 %v3392, %v3411
          %3413 = vdwg.mxu0
          %3414 = vmatpush.msra.mxu0 %v3002
          %3415 = vmatpush.msra.mxu0 %v3001
          %3416 = vmatpush.msra.mxu0 %v3000
          %3417 = vmatpush.msra.mxu0 %v2999
          %3418 = vmatpush.msra.mxu0 %v2998
          %3419 = vmatpush.msra.mxu0 %v2997
          %3420 = vmatpush.msra.mxu0 %v2996
          %3421 = vmatpush.msra.mxu0 %v2995
          %3422 = vmatpush.msra.mxu0 %v2994
          %3423 = vmatpush.msra.mxu0 %v2993
          %3424 = vmatpush.msra.mxu0 %v2992
          %3425 = vmatpush.msra.mxu0 %v2991
          %3426 = vmatpush.msra.mxu0 %v2990
          %3427 = vmatpush.msra.mxu0 %v2989
          %3428 = vmatpush.msra.mxu0 %v2988
          %3429 = vmatpush.msra.mxu0 %v2987
          %3430 = vmatmul.f32.gmra.mxu0 %v3388
          %v3431 = vpop.f32.mrf.mxu0
          %v3432 = vadd.f32 %v3412, %v3431
          %3433 = vdwg.mxu0
          %3434 = vmatpush.msra.mxu0 %v3018
          %3435 = vmatpush.msra.mxu0 %v3017
          %3436 = vmatpush.msra.mxu0 %v3016
          %3437 = vmatpush.msra.mxu0 %v3015
          %3438 = vmatpush.msra.mxu0 %v3014
          %3439 = vmatpush.msra.mxu0 %v3013
          %3440 = vmatpush.msra.mxu0 %v3012
          %3441 = vmatpush.msra.mxu0 %v3011
          %3442 = vmatpush.msra.mxu0 %v3010
          %3443 = vmatpush.msra.mxu0 %v3009
          %3444 = vmatpush.msra.mxu0 %v3008
          %3445 = vmatpush.msra.mxu0 %v3007
          %3446 = vmatpush.msra.mxu0 %v3006
          %3447 = vmatpush.msra.mxu0 %v3005
          %3448 = vmatpush.msra.mxu0 %v3004
          %3449 = vmatpush.msra.mxu0 %v3003
          %3450 = vmatmul.f32.gmra.mxu0 %v3389
          %v3451 = vpop.f32.mrf.mxu0
          %v3452 = vadd.f32 %v3432, %v3451
          %3453 = vdwg.mxu0
          %3454 = vmatpush.msra.mxu0 %v3034
          %3455 = vmatpush.msra.mxu0 %v3033
          %3456 = vmatpush.msra.mxu0 %v3032
          %3457 = vmatpush.msra.mxu0 %v3031
          %3458 = vmatpush.msra.mxu0 %v3030
          %3459 = vmatpush.msra.mxu0 %v3029
          %3460 = vmatpush.msra.mxu0 %v3028
          %3461 = vmatpush.msra.mxu0 %v3027
          %3462 = vmatpush.msra.mxu0 %v3026
          %3463 = vmatpush.msra.mxu0 %v3025
          %3464 = vmatpush.msra.mxu0 %v3024
          %3465 = vmatpush.msra.mxu0 %v3023
          %3466 = vmatpush.msra.mxu0 %v3022
          %3467 = vmatpush.msra.mxu0 %v3021
          %3468 = vmatpush.msra.mxu0 %v3020
          %3469 = vmatpush.msra.mxu0 %v3019
          %3470 = vmatmul.f32.gmra.mxu0 %v3390
          %v3471 = vpop.f32.mrf.mxu0
          %v3472 = vadd.f32 %v3452, %v3471
          %3473 = vdwg.mxu0
          %3474 = vmax.xlane.f32.xlu0 %v3472
          %v3475 = vpop.xlane.xlu0 %3474
          %v3476 = vsub.f32 %v3472, %v3475
          %v3477 = vmul.f32 %v3476, 1.442695
          %v3478 = vpow.pop %v3477
          %3479 = vadd.xlane.f32.xlu0 %v3478
          %v3480 = vpop.xlane.xlu0 %3479
          %v3481 = vrcp.pop %v3480
          %v3482 = vmul.f32 %v3480, %v3481
          %v3483 = vsub.f32 1.0, %v3482
          %v3484 = vmul.f32 %v3481, %v3483
          %v3485 = vadd.f32 %v3481, %v3484
          %vm3486 = vweird.f32 %v3480
          %vm3487 = vweird.f32 %v3481
          %vm3488 = vmor %vm3486, %vm3487
          %v3489 = vsel %vm3488, %v3481, %v3485
          %v3490 = vand.u32 2147483647, %v3480
          %vm3491 = vcmp.eq.f32.partialorder %v3490, 8.507059e+37
          %v3492 = vand.u32 %v3480, 2147483648
          %v3493 = vor.u32 1.1754944e-38, %v3492
          %v3494 = vsel %vm3491, %v3493, %v3489
          %v3495 = vmul.f32 %v3478, %v3494
          %3496 = vst [vmem:[#allocation20] sm:$0xff] %v3495
          %v3497 = vld [vmem:[#allocation3] sm:$0xff]
          %v3498 = vld [vmem:[#allocation3 + $0x8] sm:$0xff]
          %v3499 = vld [vmem:[#allocation3 + $0x10] sm:$0xff]
          %v3500 = vld [vmem:[#allocation3 + $0x18] sm:$0xff]
          %v3502 = vperm.slane %v3039, 0
          %v3503 = vperm.slane %v3039, 1
          %v3504 = vperm.slane %v3039, 2
          %v3505 = vperm.slane %v3039, 3
          %v3510 = vadd.f32 %v3497, %v3502
          %v3511 = vadd.f32 %v3498, %v3503
          %v3512 = vadd.f32 %v3499, %v3504
          %v3513 = vadd.f32 %v3500, %v3505
          %v3514 = vmax.f32 %v3510, 0.0
          %v3515 = vmax.f32 %v3511, 0.0
          %v3516 = vmax.f32 %v3512, 0.0
          %v3517 = vmax.f32 %v3513, 0.0
          %v3519 = vperm.slane %v3299, 0
          %3521 = vmatpush.msra.mxu0 %v3247
          %3522 = vmatpush.msra.mxu0 %v3246
          %3523 = vmatpush.msra.mxu0 %v3245
          %3524 = vmatpush.msra.mxu0 %v3244
          %3525 = vmatpush.msra.mxu0 %v3243
          %3526 = vmatpush.msra.mxu0 %v3242
          %3527 = vmatpush.msra.mxu0 %v3241
          %3528 = vmatpush.msra.mxu0 %v3240
          %3529 = vmatpush.msra.mxu0 %v3239
          %3530 = vmatpush.msra.mxu0 %v3238
          %3531 = vmatpush.msra.mxu0 %v3237
          %3532 = vmatpush.msra.mxu0 %v3236
          %3533 = vmatpush.msra.mxu0 %v3235
          %3534 = vmatpush.msra.mxu0 %v3234
          %3535 = vmatpush.msra.mxu0 %v3233
          %3536 = vmatpush.msra.mxu0 %v3232
          %3537 = vmatmul.f32.gmra.mxu0 %v3514
          %v3538 = vpop.f32.mrf.mxu0
          %v3539 = vadd.f32 %v3519, %v3538
          %3540 = vdwg.mxu0
          %3541 = vmatpush.msra.mxu0 %v3263
          %3542 = vmatpush.msra.mxu0 %v3262
          %3543 = vmatpush.msra.mxu0 %v3261
          %3544 = vmatpush.msra.mxu0 %v3260
          %3545 = vmatpush.msra.mxu0 %v3259
          %3546 = vmatpush.msra.mxu0 %v3258
          %3547 = vmatpush.msra.mxu0 %v3257
          %3548 = vmatpush.msra.mxu0 %v3256
          %3549 = vmatpush.msra.mxu0 %v3255
          %3550 = vmatpush.msra.mxu0 %v3254
          %3551 = vmatpush.msra.mxu0 %v3253
          %3552 = vmatpush.msra.mxu0 %v3252
          %3553 = vmatpush.msra.mxu0 %v3251
          %3554 = vmatpush.msra.mxu0 %v3250
          %3555 = vmatpush.msra.mxu0 %v3249
          %3556 = vmatpush.msra.mxu0 %v3248
          %3557 = vmatmul.f32.gmra.mxu0 %v3515
          %v3558 = vpop.f32.mrf.mxu0
          %v3559 = vadd.f32 %v3539, %v3558
          %3560 = vdwg.mxu0
          %3561 = vmatpush.msra.mxu0 %v3279
          %3562 = vmatpush.msra.mxu0 %v3278
          %3563 = vmatpush.msra.mxu0 %v3277
          %3564 = vmatpush.msra.mxu0 %v3276
          %3565 = vmatpush.msra.mxu0 %v3275
          %3566 = vmatpush.msra.mxu0 %v3274
          %3567 = vmatpush.msra.mxu0 %v3273
          %3568 = vmatpush.msra.mxu0 %v3272
          %3569 = vmatpush.msra.mxu0 %v3271
          %3570 = vmatpush.msra.mxu0 %v3270
          %3571 = vmatpush.msra.mxu0 %v3269
          %3572 = vmatpush.msra.mxu0 %v3268
          %3573 = vmatpush.msra.mxu0 %v3267
          %3574 = vmatpush.msra.mxu0 %v3266
          %3575 = vmatpush.msra.mxu0 %v3265
          %3576 = vmatpush.msra.mxu0 %v3264
          %3577 = vmatmul.f32.gmra.mxu0 %v3516
          %v3578 = vpop.f32.mrf.mxu0
          %v3579 = vadd.f32 %v3559, %v3578
          %3580 = vdwg.mxu0
          %3581 = vmatpush.msra.mxu0 %v3295
          %3582 = vmatpush.msra.mxu0 %v3294
          %3583 = vmatpush.msra.mxu0 %v3293
          %3584 = vmatpush.msra.mxu0 %v3292
          %3585 = vmatpush.msra.mxu0 %v3291
          %3586 = vmatpush.msra.mxu0 %v3290
          %3587 = vmatpush.msra.mxu0 %v3289
          %3588 = vmatpush.msra.mxu0 %v3288
          %3589 = vmatpush.msra.mxu0 %v3287
          %3590 = vmatpush.msra.mxu0 %v3286
          %3591 = vmatpush.msra.mxu0 %v3285
          %3592 = vmatpush.msra.mxu0 %v3284
          %3593 = vmatpush.msra.mxu0 %v3283
          %3594 = vmatpush.msra.mxu0 %v3282
          %3595 = vmatpush.msra.mxu0 %v3281
          %3596 = vmatpush.msra.mxu0 %v3280
          %3597 = vmatmul.f32.gmra.mxu0 %v3517
          %v3598 = vpop.f32.mrf.mxu0
          %v3599 = vadd.f32 %v3579, %v3598
          %3600 = vdwg.mxu0
          %3601 = vmax.xlane.f32.xlu0 %v3599
          %v3602 = vpop.xlane.xlu0 %3601
          %v3603 = vsub.f32 %v3599, %v3602
          %v3604 = vmul.f32 %v3603, 1.442695
          %v3605 = vpow.pop %v3604
          %3606 = vadd.xlane.f32.xlu0 %v3605
          %v3607 = vpop.xlane.xlu0 %3606
          %v3608 = vrcp.pop %v3607
          %v3609 = vmul.f32 %v3607, %v3608
          %v3610 = vsub.f32 1.0, %v3609
          %v3611 = vmul.f32 %v3608, %v3610
          %v3612 = vadd.f32 %v3608, %v3611
          %vm3613 = vweird.f32 %v3607
          %vm3614 = vweird.f32 %v3608
          %vm3615 = vmor %vm3613, %vm3614
          %v3616 = vsel %vm3615, %v3608, %v3612
          %v3617 = vand.u32 2147483647, %v3607
          %vm3618 = vcmp.eq.f32.partialorder %v3617, 8.507059e+37
          %v3619 = vand.u32 %v3607, 2147483648
          %v3620 = vor.u32 1.1754944e-38, %v3619
          %v3621 = vsel %vm3618, %v3620, %v3616
          %v3622 = vmul.f32 %v3605, %v3621
          %3623 = vst [vmem:[#allocation21] sm:$0xff] %v3622
        $region112: #{tpu_custom_call.1} parent=63 // pred_fallthru
          _
        %s3624 = sand.u32 %s40, 1
        %s3625 = scalar_lea.sflag [#allocation7], %s3624
        %s3626 = sand.u32 %s341, 1
        %s3627 = smul.addr %s3626, 2048
        %s3628 = scalar_lea.vmem [#allocation23], %s3627
        // Predicated region
        $region113: #{tpu_custom_call.1} parent=63 // pred_check
          %p3629 = pneg %p304
        $region114: #{tpu_custom_call.1} parent=63 // pred_check_branch
          %3631 = sbr.rel (%p3629) target = $region116
        $region115: #{tpu_custom_call.1} parent=63 // pred_region
          %3633 = vsyncadd [#allocation7], 0
          %s3635 = sshll.u32 [#allocation20], 4
          %s3636 = int_to_ptr.vmem [resolvable:$true] %s3635
          %s3637 = sshll.u32 %s11, 4
          %s3638 = int_to_ptr.hbm [resolvable:$true] %s3637
          %3640 = dma.vmem_to_hbm [thread:$0]  %s3636, 128, %s3638, [#allocation7]
        $region116: #{tpu_custom_call.1} parent=63 // pred_fallthru
          _
        // Predicated region
        $region117: #{tpu_custom_call.1} parent=63 // pred_check
          %p3641 = pneg %p325
        $region118: #{tpu_custom_call.1} parent=63 // pred_check_branch
          %3643 = sbr.rel (%p3641) target = $region120
        $region119: #{tpu_custom_call.1} parent=63 // pred_region
          %3645 = vsyncadd [#allocation22], 0
          %s3647 = sshll.u32 [#allocation21], 4
          %s3648 = int_to_ptr.vmem [resolvable:$true] %s3647
          %s3649 = sshll.u32 %s12, 4
          %s3650 = int_to_ptr.hbm [resolvable:$true] %s3649
          %3652 = dma.vmem_to_hbm [thread:$0]  %s3648, 128, %s3650, [#allocation22]
        $region120: #{tpu_custom_call.1} parent=63 // pred_fallthru
          _
        // Predicated region
        $region121: #{tpu_custom_call.1} parent=63 // pred_check
          %p3653 = pneg %p351
        $region122: #{tpu_custom_call.1} parent=63 // pred_check_branch
          %3655 = sbr.rel (%p3653) target = $region124
        $region123: #{tpu_custom_call.1} parent=63 // pred_region
          %s3656 = smul.u32 64, %s40
          %3658 = vsyncadd %s3625, 0
          %s3659 = smul.addr %s3656, 4
          %s3660 = smul.addr %s3659, 8
          %s3661 = scalar_lea.hbm %s13, %s3660
          %s3662 = sshll.u32 %s3628, 4
          %s3663 = int_to_ptr.vmem [resolvable:$true] %s3662
          %s3664 = sshll.u32 %s3661, 4
          %s3665 = int_to_ptr.hbm [resolvable:$true] %s3664
          %3670 = dma.vmem_to_hbm [thread:$0]  %s3663, 32768, %s3665, %s3625, 512, 512, 32
        $region124: #{tpu_custom_call.1} parent=63 // pred_fallthru
          _
        // Predicated region
        $region125: #{tpu_custom_call.1} parent=63 // pred_check
          %p3671 = pneg %p372
        $region126: #{tpu_custom_call.1} parent=63 // pred_check_branch
          %3673 = sbr.rel (%p3671) target = $region128
        $region127: #{tpu_custom_call.1} parent=63 // pred_region
          %3675 = vsyncadd [#allocation22], 0
          %s3677 = sshll.u32 [#allocation24], 4
          %s3678 = int_to_ptr.vmem [resolvable:$true] %s3677
          %s3679 = sshll.u32 %s14, 4
          %s3680 = int_to_ptr.hbm [resolvable:$true] %s3679
          %3682 = dma.vmem_to_hbm [thread:$0]  %s3678, 64, %s3680, [#allocation22]
        $region128: #{tpu_custom_call.1} parent=63 // pred_fallthru
          _
        // Predicated region
        $region129: #{tpu_custom_call.1} parent=63 // pred_check
          %p3683 = pneg %p393
        $region130: #{tpu_custom_call.1} parent=63 // pred_check_branch
          %3685 = sbr.rel (%p3683) target = $region132
        $region131: #{tpu_custom_call.1} parent=63 // pred_region
          %3687 = vsyncadd [#allocation26], 0
          %s3688 = sshll.u32 [#allocation25], 4
          %s3689 = int_to_ptr.vmem [resolvable:$true] %s3688
          %s3690 = sshll.u32 %s15, 4
          %s3691 = int_to_ptr.hbm [resolvable:$true] %s3690
          %3696 = dma.vmem_to_hbm [thread:$0]  %s3689, 8192, %s3691, [#allocation26], 128, 128, 8
        $region132: #{tpu_custom_call.1} parent=63 // pred_fallthru
          _
        // Predicated region
        $region133: #{tpu_custom_call.1} parent=63 // pred_check
          %p3697 = pneg %p414
        $region134: #{tpu_custom_call.1} parent=63 // pred_check_branch
          %3699 = sbr.rel (%p3697) target = $region136
        $region135: #{tpu_custom_call.1} parent=63 // pred_region
          %3701 = vsyncadd [#allocation26], 0
          %s3703 = sshll.u32 [#allocation27], 4
          %s3704 = int_to_ptr.vmem [resolvable:$true] %s3703
          %s3705 = sshll.u32 %s16, 4
          %s3706 = int_to_ptr.hbm [resolvable:$true] %s3705
          %3708 = dma.vmem_to_hbm [thread:$0]  %s3704, 16, %s3706, [#allocation26]
        $region136: #{tpu_custom_call.1} parent=63 // pred_fallthru
          _
        // Predicated region
        $region137: #{tpu_custom_call.1} parent=63 // pred_check
          %p3709 = pneg %p304
        $region138: #{tpu_custom_call.1} parent=63 // pred_check_branch
          %3711 = sbr.rel (%p3709) target = $region140
        $region139: #{tpu_custom_call.1} parent=63 // pred_region
          %3713 = dma.done [#allocation7], 128
        $region140: #{tpu_custom_call.1} parent=63 // pred_fallthru
          _
        // Predicated region
        $region141: #{tpu_custom_call.1} parent=63 // pred_check
          %p3714 = pneg %p325
        $region142: #{tpu_custom_call.1} parent=63 // pred_check_branch
          %3716 = sbr.rel (%p3714) target = $region144
        $region143: #{tpu_custom_call.1} parent=63 // pred_region
          %3718 = dma.done [#allocation22], 128
        $region144: #{tpu_custom_call.1} parent=63 // pred_fallthru
          _
        // Predicated region
        $region145: #{tpu_custom_call.1} parent=63 // pred_check
          %p3719 = pneg %p372
        $region146: #{tpu_custom_call.1} parent=63 // pred_check_branch
          %3721 = sbr.rel (%p3719) target = $region148
        $region147: #{tpu_custom_call.1} parent=63 // pred_region
          %3723 = dma.done [#allocation22], 64
        $region148: #{tpu_custom_call.1} parent=63 // pred_fallthru
          _
        // Predicated region
        $region149: #{tpu_custom_call.1} parent=63 // pred_check
          %p3724 = pneg %p393
        $region150: #{tpu_custom_call.1} parent=63 // pred_check_branch
          %3726 = sbr.rel (%p3724) target = $region152
        $region151: #{tpu_custom_call.1} parent=63 // pred_region
          %3728 = dma.done [#allocation26], 8192
        $region152: #{tpu_custom_call.1} parent=63 // pred_fallthru
          _
        // Predicated region
        $region153: #{tpu_custom_call.1} parent=63 // pred_check
          %p3729 = pneg %p414
        $region154: #{tpu_custom_call.1} parent=63 // pred_check_branch
          %3731 = sbr.rel (%p3729) target = $region156
        $region155: #{tpu_custom_call.1} parent=63 // pred_region
          %3733 = dma.done [#allocation26], 16
        $region156: #{tpu_custom_call.1} parent=63 // pred_fallthru
          _
      $region64: #{tpu_custom_call.1} parent=5 // pred_fallthru
        _
      %p3734 = scmp.le.s32.totalorder 2, %s35
      // Predicated region
      $region157: #{tpu_custom_call.1} parent=5 // pred_check
        %p3735 = pneg %p3734
      $region158: #{tpu_custom_call.1} parent=5 // pred_check_branch
        %3737 = sbr.rel (%p3735) target = $region160
      $region159: #{tpu_custom_call.1} parent=5 // pred_region
        %s3738 = ssub.s32 %s35, 2
        // Predicated region
        $region161: #{tpu_custom_call.1} parent=159 // pred_check
          %p3739 = pneg %p357
        $region162: #{tpu_custom_call.1} parent=159 // pred_check_branch
          %3741 = sbr.rel (%p3739) target = $region164
        $region163: #{tpu_custom_call.1} parent=159 // pred_region
          %s3742 = sand.u32 %s41, 1
          %s3743 = scalar_lea.sflag [#allocation7], %s3742
          %s3744 = sand.u32 %s342, 1
          %s3745 = smul.addr %s3744, 2048
          %s3746 = scalar_lea.vmem [#allocation23], %s3745
          %3748 = dma.done %s3743, 32768
        $region164: #{tpu_custom_call.1} parent=159 // pred_fallthru
          _
      $region160: #{tpu_custom_call.1} parent=5 // pred_fallthru
        _
    $region6: #{tpu_custom_call.1} parent=1 // loop_footer
      %s39 = sadd.s32 1, %s35
    $region7: #{tpu_custom_call.1} parent=1 // loop_footer_branch
      %34 = sbr.rel target = $region3
    $region8: #{tpu_custom_call.1} parent=1 // loop_exit
      _
    %3749 = vsyncpa [#allocation6], 1
    %s3750 = scalar_lea.sflag [#allocation6], 1
    %3751 = vsyncpa %s3750, 1
    %3752 = vsyncpa [#allocation9], 1
    %s3753 = scalar_lea.sflag [#allocation9], 1
    %3754 = vsyncpa %s3753, 1
    %3755 = vsyncpa [#allocation12], 1
    %3756 = vsyncpa [#allocation15], 1
    %3757 = vsyncpa [#allocation7], 1
    %s3758 = scalar_lea.sflag [#allocation7], 1
    %3759 = vsyncpa %s3758, 1
    %3760 = vsyncpa [#allocation22], 1
    %3761 = vsyncpa [#allocation26], 1

</llo_original>
